<compile_context>
chip_gen: v7x
topology: tpu7x:2x2x1
jax: 0.10.0
libtpu: 0.0.40
codegen_flags: <defaults>
</compile_context>

<pallas_src>
import numpy as np
import jax
import jax.numpy as jnp
from jax import lax
from jax.experimental import pallas as pl
from jax.experimental.pallas import tpu as pltpu


# ----------------------------- configuration ------------------------------ #
N_FEATURES = 2        # len(features)
SEQ_LEN = 16          # input_size / seq_length
HIDDEN = 32           # hidden_size
OUT_SIZE = 8          # output_size
KERNEL_SIZE = 3
DILATION_FACTOR = 2


def calculate_num_levels(seq_length, kernel_size, dilation_factor):
    num_levels = 1
    rf = 1 + 2 * (kernel_size - 1) * (1 - dilation_factor ** num_levels) // (1 - dilation_factor)
    while rf < seq_length:
        num_levels += 1
        rf = 1 + 2 * (kernel_size - 1) * (1 - dilation_factor ** num_levels) // (1 - dilation_factor)
    return num_levels


NUM_LEVELS = calculate_num_levels(SEQ_LEN, KERNEL_SIZE, DILATION_FACTOR)   # -> 3
CHANNELS = [N_FEATURES] + [HIDDEN] * NUM_LEVELS
assert N_FEATURES != HIDDEN, "level 0 is assumed to carry the 1x1 downsample"


def _round_up(x, m):
    return (x + m - 1) // m * m


C_IN_EFF = _round_up(N_FEATURES, 8)          # input channels padded to 8 (lane-dense row = 128)
LH = SEQ_LEN * HIDDEN                        # 512: lane width of every hidden activation
W0_COLS = 2 * LH                             # level-0 fused [conv1 | downsample] output width
B_ROWS = _round_up(2 * NUM_LEVELS + 1, 8)    # bias rows (7 -> 8)
WSTACK_ROWS = (2 * NUM_LEVELS - 1) * LH      # conv2_0 + (conv1,conv2) for levels 1..


# ------------------------------ Pallas kernel ------------------------------ #
def tcn_kernel(x_ref, w0_ref, wstack_ref, wfc_ref, b_ref, out_ref):
    bf16 = jnp.bfloat16
    f32 = jnp.float32

    x = x_ref[...].astype(bf16)                                   # (tb, L*C_IN_EFF) lane-dense

    # ---- level 0: fused [causal conv1 | 1x1 downsample] as ONE wide matmul ----
    z = jnp.dot(x, w0_ref[...], preferred_element_type=f32) + b_ref[0:1, :]
    a = jnp.maximum(z[:, :LH], 0.0)                               # conv1 pre-act -> ReLU
    # TODO(synk): MaskDropout is identity at inference; training-mode random mask not modeled.
    res = z[:, LH:]                                               # 1x1 downsample residual (no ReLU)
    a2 = jnp.dot(a.astype(bf16), wstack_ref[0:LH, :],
                 preferred_element_type=f32) + b_ref[1:2, :LH]
    h = jnp.maximum(jnp.maximum(a2, 0.0) + res, 0.0)              # (tb, L*HIDDEN)

    # ---- levels 1..NUM_LEVELS-1 (identity residual, Cin == Cout) ----
    for lvl in range(1, NUM_LEVELS):
        w1 = wstack_ref[(2 * lvl - 1) * LH:(2 * lvl) * LH, :]
        w2 = wstack_ref[(2 * lvl) * LH:(2 * lvl + 1) * LH, :]
        a = jnp.maximum(
            jnp.dot(h.astype(bf16), w1, preferred_element_type=f32)
            + b_ref[2 * lvl:2 * lvl + 1, :LH], 0.0)
        a2 = jnp.maximum(
            jnp.dot(a.astype(bf16), w2, preferred_element_type=f32)
            + b_ref[2 * lvl + 1:2 * lvl + 2, :LH], 0.0)
        h = jnp.maximum(a2 + h, 0.0)

    # ---- final Linear on the LAST time step only ----
    # wfc rows are nonzero only for t = L-1, so this is exactly fc(h[:, -1, :]).
    y = jnp.dot(h.astype(bf16), wfc_ref[...], preferred_element_type=f32)
    out_ref[...] = y + b_ref[2 * NUM_LEVELS:2 * NUM_LEVELS + 1, :OUT_SIZE]


# ------------------------------ host wrapper ------------------------------- #
def tcn_predictor_forward(x, params, *, block_batch=None):
    """x: (B, SEQ_LEN, N_FEATURES) float32 -> (B, OUT_SIZE) float32."""
    w0, wstack, wfc, bias = params
    B, L, F = x.shape
    assert L == SEQ_LEN and F == N_FEATURES

    if block_batch is None:
        Bp8 = _round_up(B, 8)
        if Bp8 <= 16:
            tb = Bp8                                   # tiny batch: one grid step
        else:
            # >= 2 grid steps so v7x's second TensorCore is used; cap the block so
            # the (tb, 512) activations stay well inside v7x's 64 MiB VMEM.
            tb = min(_round_up((Bp8 + 1) // 2, 8), 512)
    else:
        assert block_batch % 8 == 0
        tb = block_batch
    Bp = _round_up(B, tb)

    # Lane-dense input: each sequence becomes one (L*C_IN_EFF)=128-lane row.
    xp = jnp.pad(x.astype(jnp.float32), ((0, Bp - B), (0, 0), (0, C_IN_EFF - F)))
    x2 = xp.reshape(Bp, L * C_IN_EFF)

    out = pl.pallas_call(
        tcn_kernel,
        out_shape=jax.ShapeDtypeStruct((Bp, OUT_SIZE), jnp.float32),
        grid_spec=pltpu.PrefetchScalarGridSpec(
            num_scalar_prefetch=0,
            grid=(Bp // tb,),
            in_specs=[
                pl.BlockSpec((tb, L * C_IN_EFF), lambda i: (i, 0)),
                pl.BlockSpec(w0.shape, lambda i: (0, 0)),        # resident params
                pl.BlockSpec(wstack.shape, lambda i: (0, 0)),
                pl.BlockSpec(wfc.shape, lambda i: (0, 0)),
                pl.BlockSpec(bias.shape, lambda i: (0, 0)),
            ],
            out_specs=pl.BlockSpec((tb, OUT_SIZE), lambda i: (i, 0)),
        ),
        compiler_params=pltpu.CompilerParams(
            dimension_semantics=("parallel",),         # batch axis -> both TCs on v7x
            vmem_limit_bytes=32 * 1024 * 1024,
        ),
    )(x2, w0, wstack, wfc, bias)

    return out[:B]


# --------------------------- parameter handling ---------------------------- #
def init_params(key):
    """Deterministic synthetic params in PyTorch layout (effective weight_norm weights)."""
    keys = iter(jax.random.split(key, 64))

    def nrm(shape, scale=0.1):
        return (scale * jax.random.normal(next(keys), shape)).astype(jnp.float32)

    blocks = []
    for i in range(NUM_LEVELS):
        cin, cout = CHANNELS[i], CHANNELS[i + 1]
        blk = dict(
            w1=nrm((cout, cin, KERNEL_SIZE)), b1=nrm((cout,)),
            w2=nrm((cout, cout, KERNEL_SIZE)), b2=nrm((cout,)),
        )
        if cin != cout:
            blk['wd'] = nrm((cout, cin, 1))
            blk['bd'] = nrm((cout,))
        blocks.append(blk)
    fc_w = nrm((OUT_SIZE, HIDDEN))
    fc_b = nrm((OUT_SIZE,))
    return blocks, fc_w, fc_b


def _conv_to_dense(w, b, dilation, cin_eff):
    """Causal dilated Conv1d (+Chomp) as a dense (L*cin_eff, L*cout) Toeplitz matrix.

    y[t] = sum_j W[:, :, j] @ x[t - (K-1-j)*dilation]  (index < 0 -> zero padding)
    Layout: rows = t'*cin_eff + c' (input), cols = t*cout + c (output).
    """
    w = np.asarray(w, np.float32)                 # (cout, cin, K) torch layout
    cout, cin, K = w.shape
    dense = np.zeros((SEQ_LEN * cin_eff, SEQ_LEN * cout), np.float32)
    for t in range(SEQ_LEN):
        for j in range(K):
            tp = t - (K - 1 - j) * dilation
            if tp < 0:
                continue
            dense[tp * cin_eff:tp * cin_eff + cin, t * cout:(t + 1) * cout] = w[:, :, j].T
    bias = np.tile(np.asarray(b, np.float32), SEQ_LEN)
    return dense, bias


def _downsample_to_dense(wd, bd, cin_eff):
    """1x1 Conv1d as a block-diagonal (L*cin_eff, L*cout) matrix."""
    wd = np.asarray(wd, np.float32)[:, :, 0]      # (cout, cin)
    cout, cin = wd.shape
    dense = np.zeros((SEQ_LEN * cin_eff, SEQ_LEN * cout), np.float32)
    for t in range(SEQ_LEN):
        dense[t * cin_eff:t * cin_eff + cin, t * cout:(t + 1) * cout] = wd.T
    bias = np.tile(np.asarray(bd, np.float32), SEQ_LEN)
    return dense, bias


def pack_params(blocks, fc_w, fc_b):
    """Pack torch-layout params into the kernel's dense Toeplitz blocks (bf16) + f32 biases."""
    bias = np.zeros((B_ROWS, W0_COLS), np.float32)

    # level 0: fused [conv1 | downsample]
    w1_0, b1_0 = _conv_to_dense(blocks[0]['w1'], blocks[0]['b1'], 1, C_IN_EFF)
    wd_0, bd_0 = _downsample_to_dense(blocks[0]['wd'], blocks[0]['bd'], C_IN_EFF)
    w0 = np.concatenate([w1_0, wd_0], axis=1)                      # (128, 1024)
    bias[0, :] = np.concatenate([b1_0, bd_0])

    wstack = np.zeros((WSTACK_ROWS, LH), np.float32)
    w2_0, b2_0 = _conv_to_dense(blocks[0]['w2'], blocks[0]['b2'], 1, HIDDEN)
    wstack[0:LH] = w2_0
    bias[1, :LH] = b2_0

    for lvl in range(1, NUM_LEVELS):
        d = DILATION_FACTOR ** lvl
        w1, b1 = _conv_to_dense(blocks[lvl]['w1'], blocks[lvl]['b1'], d, HIDDEN)
        w2, b2 = _conv_to_dense(blocks[lvl]['w2'], blocks[lvl]['b2'], d, HIDDEN)
        wstack[(2 * lvl - 1) * LH:(2 * lvl) * LH] = w1
        wstack[(2 * lvl) * LH:(2 * lvl + 1) * LH] = w2
        bias[2 * lvl, :LH] = b1
        bias[2 * lvl + 1, :LH] = b2

    # final Linear: nonzero rows only for the last time step
    wfc = np.zeros((LH, OUT_SIZE), np.float32)
    wfc[(SEQ_LEN - 1) * HIDDEN:, :] = np.asarray(fc_w, np.float32).T
    bias[2 * NUM_LEVELS, :OUT_SIZE] = np.asarray(fc_b, np.float32)

    return (jnp.asarray(w0, jnp.bfloat16), jnp.asarray(wstack, jnp.bfloat16),
            jnp.asarray(wfc, jnp.bfloat16), jnp.asarray(bias, jnp.float32))


# ----------------------------- pure-JAX reference -------------------------- #
def ref_forward(x, blocks, fc_w, fc_b):
    h = jnp.transpose(x, (0, 2, 1))  # NCW, like torch after x.transpose(1, 2)

    def conv(inp, w, b, dil, pad):
        y = lax.conv_general_dilated(
            inp, w, window_strides=(1,), padding=[(pad, pad)],
            rhs_dilation=(dil,), dimension_numbers=('NCH', 'OIH', 'NCH'),
            precision=lax.Precision.HIGHEST)
        y = y[:, :, :inp.shape[2]]  # Chomp1d
        return y + b[None, :, None]

    for i, blk in enumerate(blocks):
        d = DILATION_FACTOR ** i
        pad = (KERNEL_SIZE - 1) * d
        out = jax.nn.relu(conv(h, blk['w1'], blk['b1'], d, pad))
        out = jax.nn.relu(conv(out, blk['w2'], blk['b2'], d, pad))
        if 'wd' in blk:
            res = lax.conv_general_dilated(
                h, blk['wd'], (1,), [(0, 0)],
                dimension_numbers=('NCH', 'OIH', 'NCH'),
                precision=lax.Precision.HIGHEST) + blk['bd'][None, :, None]
        else:
            res = h
        h = jax.nn.relu(out + res)

    last = h[:, :, -1]  # (B, HIDDEN)
    return last @ fc_w.T + fc_b


# ---------------------------------- main ----------------------------------- #
if __name__ == "__main__":
    key = jax.random.PRNGKey(0)
    k_x, k_p, k_x2 = jax.random.split(key, 3)

    blocks, fc_w, fc_b = init_params(k_p)
    params = pack_params(blocks, fc_w, fc_b)

    # Small demo batch: single grid step, everything resident in VMEM.
    B = 2
    x = jax.random.normal(k_x, (B, SEQ_LEN, N_FEATURES), dtype=jnp.float32)
    y = jax.block_until_ready(tcn_predictor_forward(x, params))
    y_ref = jax.block_until_ready(ref_forward(x, blocks, fc_w, fc_b))
    assert y.shape == (B, OUT_SIZE), y.shape
    err = float(jnp.max(jnp.abs(y - y_ref)))
    # bf16 MXU operands with f32 accumulation -> a few 1e-3 absolute error.
    assert jnp.allclose(y, y_ref, rtol=2e-2, atol=7e-3), ("max_abs_err", err)

    # Also exercise the multi-step grid / batch-padding path.
    B2 = 20
    x2 = jax.random.normal(k_x2, (B2, SEQ_LEN, N_FEATURES), dtype=jnp.float32)
    y2 = jax.block_until_ready(tcn_predictor_forward(x2, params, block_batch=8))
    y2_ref = jax.block_until_ready(ref_forward(x2, blocks, fc_w, fc_b))
    assert y2.shape == (B2, OUT_SIZE), y2.shape
    err2 = float(jnp.max(jnp.abs(y2 - y2_ref)))
    assert jnp.allclose(y2, y2_ref, rtol=2e-2, atol=7e-3), ("max_abs_err", err2)

    print("KERNEL_OK")
</pallas_src>

<mosaic_0001>
module attributes {stable_mosaic.version = 11 : i64} {
  func.func @tcn_kernel(%arg0: i32, %arg1: memref<8x128xf32, #tpu.memory_space<vmem>>, %arg2: memref<128x1024xbf16, #tpu.memory_space<vmem>>, %arg3: memref<2560x512xbf16, #tpu.memory_space<vmem>>, %arg4: memref<512x8xbf16, #tpu.memory_space<vmem>>, %arg5: memref<8x1024xf32, #tpu.memory_space<vmem>>, %arg6: memref<8x8xf32, #tpu.memory_space<vmem>>) attributes {dimension_semantics = [#tpu.dimension_semantics<parallel>], iteration_bounds = array<i64: 1>, scalar_prefetch = 0 : i64, scratch_operands = 0 : i64, tpu.core_type = #tpu.core_type<tc>, window_params = [{transform_indices = @transform_0, window_bounds = array<i64: 8, 128>}, {pipeline_mode = #tpu.pipeline_mode<synchronous>, transform_indices = @transform_1, window_bounds = array<i64: 128, 1024>}, {pipeline_mode = #tpu.pipeline_mode<synchronous>, transform_indices = @transform_2, window_bounds = array<i64: 2560, 512>}, {pipeline_mode = #tpu.pipeline_mode<synchronous>, transform_indices = @transform_3, window_bounds = array<i64: 512, 8>}, {pipeline_mode = #tpu.pipeline_mode<synchronous>, transform_indices = @transform_4, window_bounds = array<i64: 8, 1024>}, {transform_indices = @transform_5, window_bounds = array<i64: 8, 8>}]} {
    %c0 = arith.constant 0 : index
    %c0_0 = arith.constant 0 : index
    %0 = vector.load %arg1[%c0, %c0_0] : memref<8x128xf32, #tpu.memory_space<vmem>>, vector<8x128xf32>
    %1 = arith.truncf %0 : vector<8x128xf32> to vector<8x128xbf16>
    %c0_1 = arith.constant 0 : index
    %c0_2 = arith.constant 0 : index
    %2 = vector.load %arg2[%c0_1, %c0_2] : memref<128x1024xbf16, #tpu.memory_space<vmem>>, vector<128x1024xbf16>
    %cst = arith.constant dense<0.000000e+00> : vector<8x1024xf32>
    %3 = tpu.matmul %1, %2, %cst {dimension_numbers = #tpu.dot_dimension_numbers<[1], [0], [0], [1], [0, 0, 1, 1], [], []>} : vector<8x128xbf16>, vector<128x1024xbf16>, vector<8x1024xf32> -> vector<8x1024xf32>
    %c0_3 = arith.constant 0 : index
    %c0_4 = arith.constant 0 : index
    %4 = vector.load %arg5[%c0_3, %c0_4] : memref<8x1024xf32, #tpu.memory_space<vmem>>, vector<1x1024xf32>
    %5 = vector.broadcast %4 : vector<1x1024xf32> to vector<8x1024xf32>
    %6 = arith.addf %3, %5 : vector<8x1024xf32>
    %7 = vector.extract_strided_slice %6 {offsets = [0, 0], sizes = [8, 512], strides = [1, 1]} : vector<8x1024xf32> to vector<8x512xf32>
    %cst_5 = arith.constant 0.000000e+00 : f32
    %8 = vector.broadcast %cst_5 : f32 to vector<8x512xf32>
    %9 = arith.maximumf %7, %8 : vector<8x512xf32>
    %10 = vector.extract_strided_slice %6 {offsets = [0, 512], sizes = [8, 512], strides = [1, 1]} : vector<8x1024xf32> to vector<8x512xf32>
    %11 = arith.truncf %9 : vector<8x512xf32> to vector<8x512xbf16>
    %c0_6 = arith.constant 0 : index
    %c0_7 = arith.constant 0 : index
    %12 = vector.load %arg3[%c0_6, %c0_7] : memref<2560x512xbf16, #tpu.memory_space<vmem>>, vector<512x512xbf16>
    %cst_8 = arith.constant dense<0.000000e+00> : vector<8x512xf32>
    %13 = tpu.matmul %11, %12, %cst_8 {dimension_numbers = #tpu.dot_dimension_numbers<[1], [0], [0], [1], [0, 0, 1, 1], [], []>} : vector<8x512xbf16>, vector<512x512xbf16>, vector<8x512xf32> -> vector<8x512xf32>
    %c1 = arith.constant 1 : index
    %c0_9 = arith.constant 0 : index
    %14 = vector.load %arg5[%c1, %c0_9] : memref<8x1024xf32, #tpu.memory_space<vmem>>, vector<1x512xf32>
    %15 = vector.broadcast %14 : vector<1x512xf32> to vector<8x512xf32>
    %16 = arith.addf %13, %15 : vector<8x512xf32>
    %cst_10 = arith.constant 0.000000e+00 : f32
    %17 = vector.broadcast %cst_10 : f32 to vector<8x512xf32>
    %18 = arith.maximumf %16, %17 : vector<8x512xf32>
    %19 = arith.addf %18, %10 : vector<8x512xf32>
    %cst_11 = arith.constant 0.000000e+00 : f32
    %20 = vector.broadcast %cst_11 : f32 to vector<8x512xf32>
    %21 = arith.maximumf %19, %20 : vector<8x512xf32>
    %c512 = arith.constant 512 : index
    %c0_12 = arith.constant 0 : index
    %22 = vector.load %arg3[%c512, %c0_12] : memref<2560x512xbf16, #tpu.memory_space<vmem>>, vector<512x512xbf16>
    %c1024 = arith.constant 1024 : index
    %c0_13 = arith.constant 0 : index
    %23 = vector.load %arg3[%c1024, %c0_13] : memref<2560x512xbf16, #tpu.memory_space<vmem>>, vector<512x512xbf16>
    %24 = arith.truncf %21 : vector<8x512xf32> to vector<8x512xbf16>
    %cst_14 = arith.constant dense<0.000000e+00> : vector<8x512xf32>
    %25 = tpu.matmul %24, %22, %cst_14 {dimension_numbers = #tpu.dot_dimension_numbers<[1], [0], [0], [1], [0, 0, 1, 1], [], []>} : vector<8x512xbf16>, vector<512x512xbf16>, vector<8x512xf32> -> vector<8x512xf32>
    %c2 = arith.constant 2 : index
    %c0_15 = arith.constant 0 : index
    %26 = vector.load %arg5[%c2, %c0_15] : memref<8x1024xf32, #tpu.memory_space<vmem>>, vector<1x512xf32>
    %27 = vector.broadcast %26 : vector<1x512xf32> to vector<8x512xf32>
    %28 = arith.addf %25, %27 : vector<8x512xf32>
    %cst_16 = arith.constant 0.000000e+00 : f32
    %29 = vector.broadcast %cst_16 : f32 to vector<8x512xf32>
    %30 = arith.maximumf %28, %29 : vector<8x512xf32>
    %31 = arith.truncf %30 : vector<8x512xf32> to vector<8x512xbf16>
    %cst_17 = arith.constant dense<0.000000e+00> : vector<8x512xf32>
    %32 = tpu.matmul %31, %23, %cst_17 {dimension_numbers = #tpu.dot_dimension_numbers<[1], [0], [0], [1], [0, 0, 1, 1], [], []>} : vector<8x512xbf16>, vector<512x512xbf16>, vector<8x512xf32> -> vector<8x512xf32>
    %c3 = arith.constant 3 : index
    %c0_18 = arith.constant 0 : index
    %33 = vector.load %arg5[%c3, %c0_18] : memref<8x1024xf32, #tpu.memory_space<vmem>>, vector<1x512xf32>
    %34 = vector.broadcast %33 : vector<1x512xf32> to vector<8x512xf32>
    %35 = arith.addf %32, %34 : vector<8x512xf32>
    %cst_19 = arith.constant 0.000000e+00 : f32
    %36 = vector.broadcast %cst_19 : f32 to vector<8x512xf32>
    %37 = arith.maximumf %35, %36 : vector<8x512xf32>
    %38 = arith.addf %37, %21 : vector<8x512xf32>
    %cst_20 = arith.constant 0.000000e+00 : f32
    %39 = vector.broadcast %cst_20 : f32 to vector<8x512xf32>
    %40 = arith.maximumf %38, %39 : vector<8x512xf32>
    %c1536 = arith.constant 1536 : index
    %c0_21 = arith.constant 0 : index
    %41 = vector.load %arg3[%c1536, %c0_21] : memref<2560x512xbf16, #tpu.memory_space<vmem>>, vector<512x512xbf16>
    %c2048 = arith.constant 2048 : index
    %c0_22 = arith.constant 0 : index
    %42 = vector.load %arg3[%c2048, %c0_22] : memref<2560x512xbf16, #tpu.memory_space<vmem>>, vector<512x512xbf16>
    %43 = arith.truncf %40 : vector<8x512xf32> to vector<8x512xbf16>
    %cst_23 = arith.constant dense<0.000000e+00> : vector<8x512xf32>
    %44 = tpu.matmul %43, %41, %cst_23 {dimension_numbers = #tpu.dot_dimension_numbers<[1], [0], [0], [1], [0, 0, 1, 1], [], []>} : vector<8x512xbf16>, vector<512x512xbf16>, vector<8x512xf32> -> vector<8x512xf32>
    %c4 = arith.constant 4 : index
    %c0_24 = arith.constant 0 : index
    %45 = vector.load %arg5[%c4, %c0_24] : memref<8x1024xf32, #tpu.memory_space<vmem>>, vector<1x512xf32>
    %46 = vector.broadcast %45 : vector<1x512xf32> to vector<8x512xf32>
    %47 = arith.addf %44, %46 : vector<8x512xf32>
    %cst_25 = arith.constant 0.000000e+00 : f32
    %48 = vector.broadcast %cst_25 : f32 to vector<8x512xf32>
    %49 = arith.maximumf %47, %48 : vector<8x512xf32>
    %50 = arith.truncf %49 : vector<8x512xf32> to vector<8x512xbf16>
    %cst_26 = arith.constant dense<0.000000e+00> : vector<8x512xf32>
    %51 = tpu.matmul %50, %42, %cst_26 {dimension_numbers = #tpu.dot_dimension_numbers<[1], [0], [0], [1], [0, 0, 1, 1], [], []>} : vector<8x512xbf16>, vector<512x512xbf16>, vector<8x512xf32> -> vector<8x512xf32>
    %c5 = arith.constant 5 : index
    %c0_27 = arith.constant 0 : index
    %52 = vector.load %arg5[%c5, %c0_27] : memref<8x1024xf32, #tpu.memory_space<vmem>>, vector<1x512xf32>
    %53 = vector.broadcast %52 : vector<1x512xf32> to vector<8x512xf32>
    %54 = arith.addf %51, %53 : vector<8x512xf32>
    %cst_28 = arith.constant 0.000000e+00 : f32
    %55 = vector.broadcast %cst_28 : f32 to vector<8x512xf32>
    %56 = arith.maximumf %54, %55 : vector<8x512xf32>
    %57 = arith.addf %56, %40 : vector<8x512xf32>
    %cst_29 = arith.constant 0.000000e+00 : f32
    %58 = vector.broadcast %cst_29 : f32 to vector<8x512xf32>
    %59 = arith.maximumf %57, %58 : vector<8x512xf32>
    %60 = arith.truncf %59 : vector<8x512xf32> to vector<8x512xbf16>
    %c0_30 = arith.constant 0 : index
    %c0_31 = arith.constant 0 : index
    %61 = vector.load %arg4[%c0_30, %c0_31] : memref<512x8xbf16, #tpu.memory_space<vmem>>, vector<512x8xbf16>
    %cst_32 = arith.constant dense<0.000000e+00> : vector<8x8xf32>
    %62 = tpu.matmul %60, %61, %cst_32 {dimension_numbers = #tpu.dot_dimension_numbers<[1], [0], [0], [1], [0, 0, 1, 1], [], []>} : vector<8x512xbf16>, vector<512x8xbf16>, vector<8x8xf32> -> vector<8x8xf32>
    %c6 = arith.constant 6 : index
    %c0_33 = arith.constant 0 : index
    %63 = vector.load %arg5[%c6, %c0_33] : memref<8x1024xf32, #tpu.memory_space<vmem>>, vector<1x8xf32>
    %64 = vector.broadcast %63 : vector<1x8xf32> to vector<8x8xf32>
    %65 = arith.addf %62, %64 : vector<8x8xf32>
    %c0_34 = arith.constant 0 : index
    %c0_35 = arith.constant 0 : index
    %66 = vector.load %arg6[%c0_34, %c0_35] : memref<8x8xf32, #tpu.memory_space<vmem>>, vector<8x8xf32>
    tpu.vector_store %arg6[%c0_34, %c0_35], %65 {strides = array<i32>} : memref<8x8xf32, #tpu.memory_space<vmem>>, vector<8x8xf32>,
    return
  }
  func.func @transform_0(%arg0: i32) -> (i32, i32) {
    %c0_i32 = arith.constant 0 : i32
    %c0_i32_0 = arith.constant 0 : i32
    return %arg0, %c0_i32 : i32, i32
  }
  func.func @transform_1(%arg0: i32) -> (i32, i32) {
    %c0_i32 = arith.constant 0 : i32
    %c0_i32_0 = arith.constant 0 : i32
    %c0_i32_1 = arith.constant 0 : i32
    return %c0_i32, %c0_i32_0 : i32, i32
  }
  func.func @transform_2(%arg0: i32) -> (i32, i32) {
    %c0_i32 = arith.constant 0 : i32
    %c0_i32_0 = arith.constant 0 : i32
    %c0_i32_1 = arith.constant 0 : i32
    return %c0_i32, %c0_i32_0 : i32, i32
  }
  func.func @transform_3(%arg0: i32) -> (i32, i32) {
    %c0_i32 = arith.constant 0 : i32
    %c0_i32_0 = arith.constant 0 : i32
    %c0_i32_1 = arith.constant 0 : i32
    return %c0_i32, %c0_i32_0 : i32, i32
  }
  func.func @transform_4(%arg0: i32) -> (i32, i32) {
    %c0_i32 = arith.constant 0 : i32
    %c0_i32_0 = arith.constant 0 : i32
    %c0_i32_1 = arith.constant 0 : i32
    return %c0_i32, %c0_i32_0 : i32, i32
  }
  func.func @transform_5(%arg0: i32) -> (i32, i32) {
    %c0_i32 = arith.constant 0 : i32
    %c0_i32_0 = arith.constant 0 : i32
    return %arg0, %c0_i32 : i32, i32
  }
}

</mosaic_0001>

<llo_original>
// kernel: tpu_custom_call.1
$region0: #{tpu_custom_call.1}
  #allocation0 [shape = 'u32[]', space=smem, size = 0x4, offset = 0x4, fixed_abs, tag = 'smem constant byte address 0x4 - core index']
  #allocation1 [shape = 'u32[144,128]{1,0:T(1,128)}', space=vmem, size = 0x12000, scoped, tag = 'internal scratch']
  %s0 = inlined_call_operand.hbm [shape: f32[8,128], index: 0, kind: input, shape index: {}]
  %s1 = inlined_call_operand.hbm [shape: bf16[128,1024], index: 1, kind: input, shape index: {}]
  %s2 = inlined_call_operand.hbm [shape: bf16[2560,512], index: 2, kind: input, shape index: {}]
  %s3 = inlined_call_operand.vmem [shape: bf16[512,8], index: 3, kind: input, shape index: {}]
  %s4 = inlined_call_operand.hbm [shape: f32[8,1024], index: 4, kind: input, shape index: {}]
  %s5 = inlined_call_operand.hbm [shape: f32[8,8], index: 5, kind: output, shape index: {}]
  %s6 = sld [smem:[#allocation0]]
  $region46: #{tpu_custom_call.1} parent=0
    _
  %s8 = ssub.s32 1, %s6
  %s9 = scalar_select 0, %s8, %s6
  $region1: #{tpu_custom_call.1} parent=0
    #allocation2 [shape = 'u8[4096]{0}', space=vmem, size = 0x1000, scoped, tag = 'input window, operand 0, single buffered']
    #allocation3 [shape = 's32[1]{0}', space=sflag, size = 0x4, scoped, tag = 'scoped memory for tpu_custom_call.1']
    #allocation4 [shape = 's32[1]{0}', space=sflag, size = 0x4, scoped, tag = 'scoped memory for tpu_custom_call.1']
    #allocation5 [shape = 'u8[262144]{0}', space=vmem, size = 0x40000, scoped, tag = 'input window, operand 1, single buffered']
    #allocation6 [shape = 's32[1]{0}', space=sflag, size = 0x4, scoped, tag = 'scoped memory for tpu_custom_call.1']
    #allocation7 [shape = 'u8[2621440]{0}', space=vmem, size = 0x280000, scoped, tag = 'input window, operand 2, single buffered']
    #allocation8 [shape = 'u8[32768]{0}', space=vmem, size = 0x8000, scoped, tag = 'input window, operand 4, single buffered']
    #allocation9 [shape = 's32[1]{0}', space=sflag, size = 0x4, scoped, tag = 'scoped memory for tpu_custom_call.1']
    #allocation10 [shape = 'u8[4096]{0}', space=vmem, size = 0x1000, scoped, tag = 'output window, operand 0, single buffered']
    %10 = vsyncpa [#allocation3], 0
    %11 = vsyncpa [#allocation6], 0
    %12 = vsyncpa [#allocation9], 0
    %13 = vsyncpa [#allocation4], 0
    // Predicated region
    $region2: #{tpu_custom_call.1} parent=1 // pred_check
      _
    $region3: #{tpu_custom_call.1} parent=1 // pred_check_branch
      %15 = sbr.rel (0) target = $region5
    $region4: #{tpu_custom_call.1} parent=1 // pred_region
      %s17 = ssub.s32 128, 128
      %18 = vsyncadd [#allocation3], %s17
      %s20 = sshll.u32 [#allocation2], 4
      %s21 = int_to_ptr.vmem [resolvable:$true] %s20
      %23 = dma.hbm_to_vmem [thread:$0]  %s0, 128, %s21, [#allocation3]
    $region5: #{tpu_custom_call.1} parent=1 // pred_fallthru
      _
    // Predicated region
    $region6: #{tpu_custom_call.1} parent=1 // pred_check
      _
    $region7: #{tpu_custom_call.1} parent=1 // pred_check_branch
      %25 = sbr.rel (0) target = $region9
    $region8: #{tpu_custom_call.1} parent=1 // pred_region
      %s27 = ssub.s32 8192, 8192
      %28 = vsyncadd [#allocation6], %s27
      %s29 = sshll.u32 [#allocation5], 4
      %s30 = int_to_ptr.vmem [resolvable:$true] %s29
      %35 = dma.hbm_to_vmem [thread:$0]  %s1, 8192, %s30, [#allocation6], 512, 512, 32
    $region9: #{tpu_custom_call.1} parent=1 // pred_fallthru
      _
    // Predicated region
    $region10: #{tpu_custom_call.1} parent=1 // pred_check
      _
    $region11: #{tpu_custom_call.1} parent=1 // pred_check_branch
      %37 = sbr.rel (0) target = $region13
    $region12: #{tpu_custom_call.1} parent=1 // pred_region
      %s39 = ssub.s32 81920, 81920
      %40 = vsyncadd [#allocation6], %s39
      %s41 = sshll.u32 [#allocation7], 4
      %s42 = int_to_ptr.vmem [resolvable:$true] %s41
      %47 = dma.hbm_to_vmem [thread:$0]  %s2, 81920, %s42, [#allocation6], 256, 256, 16
    $region13: #{tpu_custom_call.1} parent=1 // pred_fallthru
      _
    // Predicated region
    $region14: #{tpu_custom_call.1} parent=1 // pred_check
      _
    $region15: #{tpu_custom_call.1} parent=1 // pred_check_branch
      %49 = sbr.rel (0) target = $region17
    $region16: #{tpu_custom_call.1} parent=1 // pred_region
      _
    $region17: #{tpu_custom_call.1} parent=1 // pred_fallthru
      _
    // Predicated region
    $region18: #{tpu_custom_call.1} parent=1 // pred_check
      _
    $region19: #{tpu_custom_call.1} parent=1 // pred_check_branch
      %51 = sbr.rel (0) target = $region21
    $region20: #{tpu_custom_call.1} parent=1 // pred_region
      %s53 = ssub.s32 1024, 1024
      %54 = vsyncadd [#allocation9], %s53
      %s56 = sshll.u32 [#allocation8], 4
      %s57 = int_to_ptr.vmem [resolvable:$true] %s56
      %59 = dma.hbm_to_vmem [thread:$0]  %s4, 1024, %s57, [#allocation9]
    $region21: #{tpu_custom_call.1} parent=1 // pred_fallthru
      _
    // Predicated region
    $region22: #{tpu_custom_call.1} parent=1 // pred_check
      _
    $region23: #{tpu_custom_call.1} parent=1 // pred_check_branch
      %61 = sbr.rel (0) target = $region25
    $region24: #{tpu_custom_call.1} parent=1 // pred_region
      %62 = dma.done [#allocation3], 128
    $region25: #{tpu_custom_call.1} parent=1 // pred_fallthru
      _
    // Predicated region
    $region26: #{tpu_custom_call.1} parent=1 // pred_check
      _
    $region27: #{tpu_custom_call.1} parent=1 // pred_check_branch
      %64 = sbr.rel (0) target = $region29
    $region28: #{tpu_custom_call.1} parent=1 // pred_region
      %65 = dma.done [#allocation6], 8192
    $region29: #{tpu_custom_call.1} parent=1 // pred_fallthru
      _
    // Predicated region
    $region30: #{tpu_custom_call.1} parent=1 // pred_check
      _
    $region31: #{tpu_custom_call.1} parent=1 // pred_check_branch
      %67 = sbr.rel (0) target = $region33
    $region32: #{tpu_custom_call.1} parent=1 // pred_region
      %68 = dma.done [#allocation6], 81920
    $region33: #{tpu_custom_call.1} parent=1 // pred_fallthru
      _
    // Predicated region
    $region34: #{tpu_custom_call.1} parent=1 // pred_check
      _
    $region35: #{tpu_custom_call.1} parent=1 // pred_check_branch
      %70 = sbr.rel (0) target = $region37
    $region36: #{tpu_custom_call.1} parent=1 // pred_region
      %71 = dma.done [#allocation9], 1024
    $region37: #{tpu_custom_call.1} parent=1 // pred_fallthru
      _
    %v73 = vld [vmem:[#allocation2] sm:$0xff]
    %v74 = vpack.c.bf16 %v73, %v73
    %v75 = vld [vmem:[#allocation5] sm:$0xff]
    %v76 = vld [vmem:[#allocation5 + $0x8] sm:$0xff]
    %v77 = vld [vmem:[#allocation5 + $0x10] sm:$0xff]
    %v78 = vld [vmem:[#allocation5 + $0x18] sm:$0xff]
    %v79 = vld [vmem:[#allocation5 + $0x20] sm:$0xff]
    %v80 = vld [vmem:[#allocation5 + $0x28] sm:$0xff]
    %v81 = vld [vmem:[#allocation5 + $0x30] sm:$0xff]
    %v82 = vld [vmem:[#allocation5 + $0x38] sm:$0xff]
    %v83 = vld [vmem:[#allocation5 + $0x40] sm:$0xff]
    %v84 = vld [vmem:[#allocation5 + $0x48] sm:$0xff]
    %v85 = vld [vmem:[#allocation5 + $0x50] sm:$0xff]
    %v86 = vld [vmem:[#allocation5 + $0x58] sm:$0xff]
    %v87 = vld [vmem:[#allocation5 + $0x60] sm:$0xff]
    %v88 = vld [vmem:[#allocation5 + $0x68] sm:$0xff]
    %v89 = vld [vmem:[#allocation5 + $0x70] sm:$0xff]
    %v90 = vld [vmem:[#allocation5 + $0x78] sm:$0xff]
    %v91 = vld [vmem:[#allocation5 + $0x80] sm:$0xff]
    %v92 = vld [vmem:[#allocation5 + $0x88] sm:$0xff]
    %v93 = vld [vmem:[#allocation5 + $0x90] sm:$0xff]
    %v94 = vld [vmem:[#allocation5 + $0x98] sm:$0xff]
    %v95 = vld [vmem:[#allocation5 + $0xa0] sm:$0xff]
    %v96 = vld [vmem:[#allocation5 + $0xa8] sm:$0xff]
    %v97 = vld [vmem:[#allocation5 + $0xb0] sm:$0xff]
    %v98 = vld [vmem:[#allocation5 + $0xb8] sm:$0xff]
    %v99 = vld [vmem:[#allocation5 + $0xc0] sm:$0xff]
    %v100 = vld [vmem:[#allocation5 + $0xc8] sm:$0xff]
    %v101 = vld [vmem:[#allocation5 + $0xd0] sm:$0xff]
    %v102 = vld [vmem:[#allocation5 + $0xd8] sm:$0xff]
    %v103 = vld [vmem:[#allocation5 + $0xe0] sm:$0xff]
    %v104 = vld [vmem:[#allocation5 + $0xe8] sm:$0xff]
    %v105 = vld [vmem:[#allocation5 + $0xf0] sm:$0xff]
    %v106 = vld [vmem:[#allocation5 + $0xf8] sm:$0xff]
    %v107 = vld [vmem:[#allocation5 + $0x100] sm:$0xff]
    %v108 = vld [vmem:[#allocation5 + $0x108] sm:$0xff]
    %v109 = vld [vmem:[#allocation5 + $0x110] sm:$0xff]
    %v110 = vld [vmem:[#allocation5 + $0x118] sm:$0xff]
    %v111 = vld [vmem:[#allocation5 + $0x120] sm:$0xff]
    %v112 = vld [vmem:[#allocation5 + $0x128] sm:$0xff]
    %v113 = vld [vmem:[#allocation5 + $0x130] sm:$0xff]
    %v114 = vld [vmem:[#allocation5 + $0x138] sm:$0xff]
    %v115 = vld [vmem:[#allocation5 + $0x140] sm:$0xff]
    %v116 = vld [vmem:[#allocation5 + $0x148] sm:$0xff]
    %v117 = vld [vmem:[#allocation5 + $0x150] sm:$0xff]
    %v118 = vld [vmem:[#allocation5 + $0x158] sm:$0xff]
    %v119 = vld [vmem:[#allocation5 + $0x160] sm:$0xff]
    %v120 = vld [vmem:[#allocation5 + $0x168] sm:$0xff]
    %v121 = vld [vmem:[#allocation5 + $0x170] sm:$0xff]
    %v122 = vld [vmem:[#allocation5 + $0x178] sm:$0xff]
    %v123 = vld [vmem:[#allocation5 + $0x180] sm:$0xff]
    %v124 = vld [vmem:[#allocation5 + $0x188] sm:$0xff]
    %v125 = vld [vmem:[#allocation5 + $0x190] sm:$0xff]
    %v126 = vld [vmem:[#allocation5 + $0x198] sm:$0xff]
    %v127 = vld [vmem:[#allocation5 + $0x1a0] sm:$0xff]
    %v128 = vld [vmem:[#allocation5 + $0x1a8] sm:$0xff]
    %v129 = vld [vmem:[#allocation5 + $0x1b0] sm:$0xff]
    %v130 = vld [vmem:[#allocation5 + $0x1b8] sm:$0xff]
    %v131 = vld [vmem:[#allocation5 + $0x1c0] sm:$0xff]
    %v132 = vld [vmem:[#allocation5 + $0x1c8] sm:$0xff]
    %v133 = vld [vmem:[#allocation5 + $0x1d0] sm:$0xff]
    %v134 = vld [vmem:[#allocation5 + $0x1d8] sm:$0xff]
    %v135 = vld [vmem:[#allocation5 + $0x1e0] sm:$0xff]
    %v136 = vld [vmem:[#allocation5 + $0x1e8] sm:$0xff]
    %v137 = vld [vmem:[#allocation5 + $0x1f0] sm:$0xff]
    %v138 = vld [vmem:[#allocation5 + $0x1f8] sm:$0xff]
    %v139 = vld [vmem:[#allocation8] ss:$8 sm:$0xf]
    %v140 = vld [vmem:[#allocation8] ss:$8 sm:$0xf0]
    %v141 = vor.u32 %v139, %v140
    %v143 = vlaneseq
    %v144 = vshrl.u32 %v143, 7
    %v145 = vsub.s32 0, %v144
    %v146 = vrot.slane %v141, %v145
    %v147 = vlaneseq
    %v148 = vshrl.u32 %v147, 7
    %v149 = vsub.s32 1, %v148
    %v150 = vrot.slane %v141, %v149
    %v151 = vlaneseq
    %v152 = vshrl.u32 %v151, 7
    %v153 = vsub.s32 2, %v152
    %v154 = vrot.slane %v141, %v153
    %v155 = vlaneseq
    %v156 = vshrl.u32 %v155, 7
    %v157 = vsub.s32 3, %v156
    %v158 = vrot.slane %v141, %v157
    %v159 = vlaneseq
    %v160 = vshrl.u32 %v159, 7
    %v161 = vsub.s32 4, %v160
    %v162 = vrot.slane %v141, %v161
    %v163 = vlaneseq
    %v164 = vshrl.u32 %v163, 7
    %v165 = vsub.s32 5, %v164
    %v166 = vrot.slane %v141, %v165
    %v167 = vlaneseq
    %v168 = vshrl.u32 %v167, 7
    %v169 = vsub.s32 6, %v168
    %v170 = vrot.slane %v141, %v169
    %v171 = vlaneseq
    %v172 = vshrl.u32 %v171, 7
    %v173 = vsub.s32 7, %v172
    %v174 = vrot.slane %v141, %v173
    %v247 = vunpack.c.l.b16 %v75
    %v248 = vunpack.c.h.b16 %v75
    %v249 = vunpack.c.l.b16 %v76
    %v250 = vunpack.c.h.b16 %v76
    %v251 = vunpack.c.l.b16 %v77
    %v252 = vunpack.c.h.b16 %v77
    %v253 = vunpack.c.l.b16 %v78
    %v254 = vunpack.c.h.b16 %v78
    %v255 = vunpack.c.l.b16 %v79
    %v256 = vunpack.c.h.b16 %v79
    %v257 = vunpack.c.l.b16 %v80
    %v258 = vunpack.c.h.b16 %v80
    %v259 = vunpack.c.l.b16 %v81
    %v260 = vunpack.c.h.b16 %v81
    %v261 = vunpack.c.l.b16 %v82
    %v262 = vunpack.c.h.b16 %v82
    %v263 = vunpack.c.l.b16 %v83
    %v264 = vunpack.c.h.b16 %v83
    %v265 = vunpack.c.l.b16 %v84
    %v266 = vunpack.c.h.b16 %v84
    %v267 = vunpack.c.l.b16 %v85
    %v268 = vunpack.c.h.b16 %v85
    %v269 = vunpack.c.l.b16 %v86
    %v270 = vunpack.c.h.b16 %v86
    %v271 = vunpack.c.l.b16 %v87
    %v272 = vunpack.c.h.b16 %v87
    %v273 = vunpack.c.l.b16 %v88
    %v274 = vunpack.c.h.b16 %v88
    %v275 = vunpack.c.l.b16 %v89
    %v276 = vunpack.c.h.b16 %v89
    %v277 = vunpack.c.l.b16 %v90
    %v278 = vunpack.c.h.b16 %v90
    %v279 = vunpack.c.l.b16 %v91
    %v280 = vunpack.c.h.b16 %v91
    %v281 = vunpack.c.l.b16 %v92
    %v282 = vunpack.c.h.b16 %v92
    %v283 = vunpack.c.l.b16 %v93
    %v284 = vunpack.c.h.b16 %v93
    %v285 = vunpack.c.l.b16 %v94
    %v286 = vunpack.c.h.b16 %v94
    %v287 = vunpack.c.l.b16 %v95
    %v288 = vunpack.c.h.b16 %v95
    %v289 = vunpack.c.l.b16 %v96
    %v290 = vunpack.c.h.b16 %v96
    %v291 = vunpack.c.l.b16 %v97
    %v292 = vunpack.c.h.b16 %v97
    %v293 = vunpack.c.l.b16 %v98
    %v294 = vunpack.c.h.b16 %v98
    %v295 = vunpack.c.l.b16 %v99
    %v296 = vunpack.c.h.b16 %v99
    %v297 = vunpack.c.l.b16 %v100
    %v298 = vunpack.c.h.b16 %v100
    %v299 = vunpack.c.l.b16 %v101
    %v300 = vunpack.c.h.b16 %v101
    %v301 = vunpack.c.l.b16 %v102
    %v302 = vunpack.c.h.b16 %v102
    %v303 = vunpack.c.l.b16 %v103
    %v304 = vunpack.c.h.b16 %v103
    %v305 = vunpack.c.l.b16 %v104
    %v306 = vunpack.c.h.b16 %v104
    %v307 = vunpack.c.l.b16 %v105
    %v308 = vunpack.c.h.b16 %v105
    %v309 = vunpack.c.l.b16 %v106
    %v310 = vunpack.c.h.b16 %v106
    %v311 = vunpack.c.l.b16 %v107
    %v312 = vunpack.c.h.b16 %v107
    %v313 = vunpack.c.l.b16 %v108
    %v314 = vunpack.c.h.b16 %v108
    %v315 = vunpack.c.l.b16 %v109
    %v316 = vunpack.c.h.b16 %v109
    %v317 = vunpack.c.l.b16 %v110
    %v318 = vunpack.c.h.b16 %v110
    %v319 = vunpack.c.l.b16 %v111
    %v320 = vunpack.c.h.b16 %v111
    %v321 = vunpack.c.l.b16 %v112
    %v322 = vunpack.c.h.b16 %v112
    %v323 = vunpack.c.l.b16 %v113
    %v324 = vunpack.c.h.b16 %v113
    %v325 = vunpack.c.l.b16 %v114
    %v326 = vunpack.c.h.b16 %v114
    %v327 = vunpack.c.l.b16 %v115
    %v328 = vunpack.c.h.b16 %v115
    %v329 = vunpack.c.l.b16 %v116
    %v330 = vunpack.c.h.b16 %v116
    %v331 = vunpack.c.l.b16 %v117
    %v332 = vunpack.c.h.b16 %v117
    %v333 = vunpack.c.l.b16 %v118
    %v334 = vunpack.c.h.b16 %v118
    %v335 = vunpack.c.l.b16 %v119
    %v336 = vunpack.c.h.b16 %v119
    %v337 = vunpack.c.l.b16 %v120
    %v338 = vunpack.c.h.b16 %v120
    %v339 = vunpack.c.l.b16 %v121
    %v340 = vunpack.c.h.b16 %v121
    %v341 = vunpack.c.l.b16 %v122
    %v342 = vunpack.c.h.b16 %v122
    %v343 = vunpack.c.l.b16 %v123
    %v344 = vunpack.c.h.b16 %v123
    %v345 = vunpack.c.l.b16 %v124
    %v346 = vunpack.c.h.b16 %v124
    %v347 = vunpack.c.l.b16 %v125
    %v348 = vunpack.c.h.b16 %v125
    %v349 = vunpack.c.l.b16 %v126
    %v350 = vunpack.c.h.b16 %v126
    %v351 = vunpack.c.l.b16 %v127
    %v352 = vunpack.c.h.b16 %v127
    %v353 = vunpack.c.l.b16 %v128
    %v354 = vunpack.c.h.b16 %v128
    %v355 = vunpack.c.l.b16 %v129
    %v356 = vunpack.c.h.b16 %v129
    %v357 = vunpack.c.l.b16 %v130
    %v358 = vunpack.c.h.b16 %v130
    %v359 = vunpack.c.l.b16 %v131
    %v360 = vunpack.c.h.b16 %v131
    %v361 = vunpack.c.l.b16 %v132
    %v362 = vunpack.c.h.b16 %v132
    %v363 = vunpack.c.l.b16 %v133
    %v364 = vunpack.c.h.b16 %v133
    %v365 = vunpack.c.l.b16 %v134
    %v366 = vunpack.c.h.b16 %v134
    %v367 = vunpack.c.l.b16 %v135
    %v368 = vunpack.c.h.b16 %v135
    %v369 = vunpack.c.l.b16 %v136
    %v370 = vunpack.c.h.b16 %v136
    %v371 = vunpack.c.l.b16 %v137
    %v372 = vunpack.c.h.b16 %v137
    %v373 = vunpack.c.l.b16 %v138
    %v374 = vunpack.c.h.b16 %v138
    %v375 = vpack.c.b16 %v255, %v247
    %v376 = vpack.c.b16 %v256, %v248
    %v377 = vpack.c.b16 %v257, %v249
    %v378 = vpack.c.b16 %v258, %v250
    %v379 = vpack.c.b16 %v259, %v251
    %v380 = vpack.c.b16 %v260, %v252
    %v381 = vpack.c.b16 %v261, %v253
    %v382 = vpack.c.b16 %v262, %v254
    %v383 = vpack.c.b16 %v271, %v263
    %v384 = vpack.c.b16 %v272, %v264
    %v385 = vpack.c.b16 %v273, %v265
    %v386 = vpack.c.b16 %v274, %v266
    %v387 = vpack.c.b16 %v275, %v267
    %v388 = vpack.c.b16 %v276, %v268
    %v389 = vpack.c.b16 %v277, %v269
    %v390 = vpack.c.b16 %v278, %v270
    %v391 = vpack.c.b16 %v287, %v279
    %v392 = vpack.c.b16 %v288, %v280
    %v393 = vpack.c.b16 %v289, %v281
    %v394 = vpack.c.b16 %v290, %v282
    %v395 = vpack.c.b16 %v291, %v283
    %v396 = vpack.c.b16 %v292, %v284
    %v397 = vpack.c.b16 %v293, %v285
    %v398 = vpack.c.b16 %v294, %v286
    %v399 = vpack.c.b16 %v303, %v295
    %v400 = vpack.c.b16 %v304, %v296
    %v401 = vpack.c.b16 %v305, %v297
    %v402 = vpack.c.b16 %v306, %v298
    %v403 = vpack.c.b16 %v307, %v299
    %v404 = vpack.c.b16 %v308, %v300
    %v405 = vpack.c.b16 %v309, %v301
    %v406 = vpack.c.b16 %v310, %v302
    %v407 = vpack.c.b16 %v319, %v311
    %v408 = vpack.c.b16 %v320, %v312
    %v409 = vpack.c.b16 %v321, %v313
    %v410 = vpack.c.b16 %v322, %v314
    %v411 = vpack.c.b16 %v323, %v315
    %v412 = vpack.c.b16 %v324, %v316
    %v413 = vpack.c.b16 %v325, %v317
    %v414 = vpack.c.b16 %v326, %v318
    %v415 = vpack.c.b16 %v335, %v327
    %v416 = vpack.c.b16 %v336, %v328
    %v417 = vpack.c.b16 %v337, %v329
    %v418 = vpack.c.b16 %v338, %v330
    %v419 = vpack.c.b16 %v339, %v331
    %v420 = vpack.c.b16 %v340, %v332
    %v421 = vpack.c.b16 %v341, %v333
    %v422 = vpack.c.b16 %v342, %v334
    %v423 = vpack.c.b16 %v351, %v343
    %v424 = vpack.c.b16 %v352, %v344
    %v425 = vpack.c.b16 %v353, %v345
    %v426 = vpack.c.b16 %v354, %v346
    %v427 = vpack.c.b16 %v355, %v347
    %v428 = vpack.c.b16 %v356, %v348
    %v429 = vpack.c.b16 %v357, %v349
    %v430 = vpack.c.b16 %v358, %v350
    %v431 = vpack.c.b16 %v367, %v359
    %v432 = vpack.c.b16 %v368, %v360
    %v433 = vpack.c.b16 %v369, %v361
    %v434 = vpack.c.b16 %v370, %v362
    %v435 = vpack.c.b16 %v371, %v363
    %v436 = vpack.c.b16 %v372, %v364
    %v437 = vpack.c.b16 %v373, %v365
    %v438 = vpack.c.b16 %v374, %v366
    %503 = vmatprep.subr.bf16.mxu0 %v376
    %504 = vmatpush1.bf16.msra.mxu0 %v375
    %505 = vmatprep.subr.bf16.mxu0 %v384
    %506 = vmatpush1.bf16.msra.mxu0 %v383
    %507 = vmatprep.subr.bf16.mxu0 %v392
    %508 = vmatpush1.bf16.msra.mxu0 %v391
    %509 = vmatprep.subr.bf16.mxu0 %v400
    %510 = vmatpush1.bf16.msra.mxu0 %v399
    %511 = vmatprep.subr.bf16.mxu0 %v408
    %512 = vmatpush1.bf16.msra.mxu0 %v407
    %513 = vmatprep.subr.bf16.mxu0 %v416
    %514 = vmatpush1.bf16.msra.mxu0 %v415
    %515 = vmatprep.subr.bf16.mxu0 %v424
    %516 = vmatpush1.bf16.msra.mxu0 %v423
    %517 = vmatprep.subr.bf16.mxu0 %v432
    %518 = vmatpush1.bf16.msra.mxu0 %v431
    %519 = vmatprep.subr.bf16.mxu0 0
    %520 = vmatpush1.bf16.msra.mxu0 0
    %521 = vmatprep.subr.bf16.mxu0 0
    %522 = vmatpush1.bf16.msra.mxu0 0
    %523 = vmatprep.subr.bf16.mxu0 0
    %524 = vmatpush1.bf16.msra.mxu0 0
    %525 = vmatprep.subr.bf16.mxu0 0
    %526 = vmatpush1.bf16.msra.mxu0 0
    %527 = vmatprep.subr.bf16.mxu0 0
    %528 = vmatpush1.bf16.msra.mxu0 0
    %529 = vmatprep.subr.bf16.mxu0 0
    %530 = vmatpush1.bf16.msra.mxu0 0
    %531 = vmatprep.subr.bf16.mxu0 0
    %532 = vmatpush1.bf16.msra.mxu0 0
    %533 = vmatprep.subr.bf16.mxu0 0
    %534 = vmatpush1.bf16.msra.mxu0 0
    %535 = vmatprep.mubr.bf16.mxu0 0
    %536 = vmatmul.mubr.bf16.gmra.mrb[0].mxu0 %v74
    %v537 = vpop.f32.mrb[0].mxu0
    %v538 = vadd.f32 %v146, %v537
    %v539 = vpop.f32.mrb[0].mxu0
    %v540 = vadd.f32 %v150, %v539
    %v541 = vpop.f32.mrb[0].mxu0
    %v542 = vpop.f32.mrb[0].mxu0
    %543 = vdwg.mxu0
    %544 = vmatprep.subr.bf16.mxu0 %v378
    %545 = vmatpush1.bf16.msra.mxu0 %v377
    %546 = vmatprep.subr.bf16.mxu0 %v386
    %547 = vmatpush1.bf16.msra.mxu0 %v385
    %548 = vmatprep.subr.bf16.mxu0 %v394
    %549 = vmatpush1.bf16.msra.mxu0 %v393
    %550 = vmatprep.subr.bf16.mxu0 %v402
    %551 = vmatpush1.bf16.msra.mxu0 %v401
    %552 = vmatprep.subr.bf16.mxu0 %v410
    %553 = vmatpush1.bf16.msra.mxu0 %v409
    %554 = vmatprep.subr.bf16.mxu0 %v418
    %555 = vmatpush1.bf16.msra.mxu0 %v417
    %556 = vmatprep.subr.bf16.mxu0 %v426
    %557 = vmatpush1.bf16.msra.mxu0 %v425
    %558 = vmatprep.subr.bf16.mxu0 %v434
    %559 = vmatpush1.bf16.msra.mxu0 %v433
    %560 = vmatprep.subr.bf16.mxu0 0
    %561 = vmatpush1.bf16.msra.mxu0 0
    %562 = vmatprep.subr.bf16.mxu0 0
    %563 = vmatpush1.bf16.msra.mxu0 0
    %564 = vmatprep.subr.bf16.mxu0 0
    %565 = vmatpush1.bf16.msra.mxu0 0
    %566 = vmatprep.subr.bf16.mxu0 0
    %567 = vmatpush1.bf16.msra.mxu0 0
    %568 = vmatprep.subr.bf16.mxu0 0
    %569 = vmatpush1.bf16.msra.mxu0 0
    %570 = vmatprep.subr.bf16.mxu0 0
    %571 = vmatpush1.bf16.msra.mxu0 0
    %572 = vmatprep.subr.bf16.mxu0 0
    %573 = vmatpush1.bf16.msra.mxu0 0
    %574 = vmatprep.subr.bf16.mxu0 0
    %575 = vmatpush1.bf16.msra.mxu0 0
    %576 = vmatprep.mubr.bf16.mxu0 0
    %577 = vmatmul.mubr.bf16.gmra.mrb[0].mxu0 %v74
    %v578 = vpop.f32.mrb[0].mxu0
    %v579 = vadd.f32 %v154, %v578
    %v580 = vpop.f32.mrb[0].mxu0
    %v581 = vadd.f32 %v158, %v580
    %v582 = vpop.f32.mrb[0].mxu0
    %v583 = vpop.f32.mrb[0].mxu0
    %584 = vdwg.mxu0
    %585 = vmatprep.subr.bf16.mxu0 %v380
    %586 = vmatpush1.bf16.msra.mxu0 %v379
    %587 = vmatprep.subr.bf16.mxu0 %v388
    %588 = vmatpush1.bf16.msra.mxu0 %v387
    %589 = vmatprep.subr.bf16.mxu0 %v396
    %590 = vmatpush1.bf16.msra.mxu0 %v395
    %591 = vmatprep.subr.bf16.mxu0 %v404
    %592 = vmatpush1.bf16.msra.mxu0 %v403
    %593 = vmatprep.subr.bf16.mxu0 %v412
    %594 = vmatpush1.bf16.msra.mxu0 %v411
    %595 = vmatprep.subr.bf16.mxu0 %v420
    %596 = vmatpush1.bf16.msra.mxu0 %v419
    %597 = vmatprep.subr.bf16.mxu0 %v428
    %598 = vmatpush1.bf16.msra.mxu0 %v427
    %599 = vmatprep.subr.bf16.mxu0 %v436
    %600 = vmatpush1.bf16.msra.mxu0 %v435
    %601 = vmatprep.subr.bf16.mxu0 0
    %602 = vmatpush1.bf16.msra.mxu0 0
    %603 = vmatprep.subr.bf16.mxu0 0
    %604 = vmatpush1.bf16.msra.mxu0 0
    %605 = vmatprep.subr.bf16.mxu0 0
    %606 = vmatpush1.bf16.msra.mxu0 0
    %607 = vmatprep.subr.bf16.mxu0 0
    %608 = vmatpush1.bf16.msra.mxu0 0
    %609 = vmatprep.subr.bf16.mxu0 0
    %610 = vmatpush1.bf16.msra.mxu0 0
    %611 = vmatprep.subr.bf16.mxu0 0
    %612 = vmatpush1.bf16.msra.mxu0 0
    %613 = vmatprep.subr.bf16.mxu0 0
    %614 = vmatpush1.bf16.msra.mxu0 0
    %615 = vmatprep.subr.bf16.mxu0 0
    %616 = vmatpush1.bf16.msra.mxu0 0
    %617 = vmatprep.mubr.bf16.mxu0 0
    %618 = vmatmul.mubr.bf16.gmra.mrb[0].mxu0 %v74
    %v619 = vpop.f32.mrb[0].mxu0
    %v620 = vadd.f32 %v162, %v619
    %v621 = vpop.f32.mrb[0].mxu0
    %v622 = vadd.f32 %v166, %v621
    %v623 = vpop.f32.mrb[0].mxu0
    %v624 = vpop.f32.mrb[0].mxu0
    %625 = vdwg.mxu0
    %626 = vmatprep.subr.bf16.mxu0 %v382
    %627 = vmatpush1.bf16.msra.mxu0 %v381
    %628 = vmatprep.subr.bf16.mxu0 %v390
    %629 = vmatpush1.bf16.msra.mxu0 %v389
    %630 = vmatprep.subr.bf16.mxu0 %v398
    %631 = vmatpush1.bf16.msra.mxu0 %v397
    %632 = vmatprep.subr.bf16.mxu0 %v406
    %633 = vmatpush1.bf16.msra.mxu0 %v405
    %634 = vmatprep.subr.bf16.mxu0 %v414
    %635 = vmatpush1.bf16.msra.mxu0 %v413
    %636 = vmatprep.subr.bf16.mxu0 %v422
    %637 = vmatpush1.bf16.msra.mxu0 %v421
    %638 = vmatprep.subr.bf16.mxu0 %v430
    %639 = vmatpush1.bf16.msra.mxu0 %v429
    %640 = vmatprep.subr.bf16.mxu0 %v438
    %641 = vmatpush1.bf16.msra.mxu0 %v437
    %642 = vmatprep.subr.bf16.mxu0 0
    %643 = vmatpush1.bf16.msra.mxu0 0
    %644 = vmatprep.subr.bf16.mxu0 0
    %645 = vmatpush1.bf16.msra.mxu0 0
    %646 = vmatprep.subr.bf16.mxu0 0
    %647 = vmatpush1.bf16.msra.mxu0 0
    %648 = vmatprep.subr.bf16.mxu0 0
    %649 = vmatpush1.bf16.msra.mxu0 0
    %650 = vmatprep.subr.bf16.mxu0 0
    %651 = vmatpush1.bf16.msra.mxu0 0
    %652 = vmatprep.subr.bf16.mxu0 0
    %653 = vmatpush1.bf16.msra.mxu0 0
    %654 = vmatprep.subr.bf16.mxu0 0
    %655 = vmatpush1.bf16.msra.mxu0 0
    %656 = vmatprep.subr.bf16.mxu0 0
    %657 = vmatpush1.bf16.msra.mxu0 0
    %658 = vmatprep.mubr.bf16.mxu0 0
    %659 = vmatmul.mubr.bf16.gmra.mrb[0].mxu0 %v74
    %v660 = vpop.f32.mrb[0].mxu0
    %v661 = vadd.f32 %v170, %v660
    %v662 = vpop.f32.mrb[0].mxu0
    %v663 = vadd.f32 %v174, %v662
    %v664 = vpop.f32.mrb[0].mxu0
    %v665 = vpop.f32.mrb[0].mxu0
    %666 = vdwg.mxu0
    %v667 = vmax.f32 %v538, 0.0
    %v668 = vmax.f32 %v540, 0.0
    %v669 = vmax.f32 %v579, 0.0
    %v670 = vmax.f32 %v581, 0.0
    %v671 = vpack.c.bf16 %v667, %v667
    %v672 = vpack.c.bf16 %v668, %v668
    %v673 = vpack.c.bf16 %v669, %v669
    %v674 = vpack.c.bf16 %v670, %v670
    %v675 = vld [vmem:[#allocation7] sm:$0xff]
    %v676 = vld [vmem:[#allocation7 + $0x8] sm:$0xff]
    %v677 = vld [vmem:[#allocation7 + $0x10] sm:$0xff]
    %v678 = vld [vmem:[#allocation7 + $0x18] sm:$0xff]
    %v679 = vld [vmem:[#allocation7 + $0x20] sm:$0xff]
    %v680 = vld [vmem:[#allocation7 + $0x28] sm:$0xff]
    %v681 = vld [vmem:[#allocation7 + $0x30] sm:$0xff]
    %v682 = vld [vmem:[#allocation7 + $0x38] sm:$0xff]
    %v683 = vld [vmem:[#allocation7 + $0x40] sm:$0xff]
    %v684 = vld [vmem:[#allocation7 + $0x48] sm:$0xff]
    %v685 = vld [vmem:[#allocation7 + $0x50] sm:$0xff]
    %v686 = vld [vmem:[#allocation7 + $0x58] sm:$0xff]
    %v687 = vld [vmem:[#allocation7 + $0x60] sm:$0xff]
    %v688 = vld [vmem:[#allocation7 + $0x68] sm:$0xff]
    %v689 = vld [vmem:[#allocation7 + $0x70] sm:$0xff]
    %v690 = vld [vmem:[#allocation7 + $0x78] sm:$0xff]
    %v691 = vld [vmem:[#allocation7 + $0x80] sm:$0xff]
    %v692 = vld [vmem:[#allocation7 + $0x88] sm:$0xff]
    %v693 = vld [vmem:[#allocation7 + $0x90] sm:$0xff]
    %v694 = vld [vmem:[#allocation7 + $0x98] sm:$0xff]
    %v695 = vld [vmem:[#allocation7 + $0xa0] sm:$0xff]
    %v696 = vld [vmem:[#allocation7 + $0xa8] sm:$0xff]
    %v697 = vld [vmem:[#allocation7 + $0xb0] sm:$0xff]
    %v698 = vld [vmem:[#allocation7 + $0xb8] sm:$0xff]
    %v699 = vld [vmem:[#allocation7 + $0xc0] sm:$0xff]
    %v700 = vld [vmem:[#allocation7 + $0xc8] sm:$0xff]
    %v701 = vld [vmem:[#allocation7 + $0xd0] sm:$0xff]
    %v702 = vld [vmem:[#allocation7 + $0xd8] sm:$0xff]
    %v703 = vld [vmem:[#allocation7 + $0xe0] sm:$0xff]
    %v704 = vld [vmem:[#allocation7 + $0xe8] sm:$0xff]
    %v705 = vld [vmem:[#allocation7 + $0xf0] sm:$0xff]
    %v706 = vld [vmem:[#allocation7 + $0xf8] sm:$0xff]
    %v707 = vld [vmem:[#allocation7 + $0x100] sm:$0xff]
    %v708 = vld [vmem:[#allocation7 + $0x108] sm:$0xff]
    %v709 = vld [vmem:[#allocation7 + $0x110] sm:$0xff]
    %v710 = vld [vmem:[#allocation7 + $0x118] sm:$0xff]
    %v711 = vld [vmem:[#allocation7 + $0x120] sm:$0xff]
    %v712 = vld [vmem:[#allocation7 + $0x128] sm:$0xff]
    %v713 = vld [vmem:[#allocation7 + $0x130] sm:$0xff]
    %v714 = vld [vmem:[#allocation7 + $0x138] sm:$0xff]
    %v715 = vld [vmem:[#allocation7 + $0x140] sm:$0xff]
    %v716 = vld [vmem:[#allocation7 + $0x148] sm:$0xff]
    %v717 = vld [vmem:[#allocation7 + $0x150] sm:$0xff]
    %v718 = vld [vmem:[#allocation7 + $0x158] sm:$0xff]
    %v719 = vld [vmem:[#allocation7 + $0x160] sm:$0xff]
    %v720 = vld [vmem:[#allocation7 + $0x168] sm:$0xff]
    %v721 = vld [vmem:[#allocation7 + $0x170] sm:$0xff]
    %v722 = vld [vmem:[#allocation7 + $0x178] sm:$0xff]
    %v723 = vld [vmem:[#allocation7 + $0x180] sm:$0xff]
    %v724 = vld [vmem:[#allocation7 + $0x188] sm:$0xff]
    %v725 = vld [vmem:[#allocation7 + $0x190] sm:$0xff]
    %v726 = vld [vmem:[#allocation7 + $0x198] sm:$0xff]
    %v727 = vld [vmem:[#allocation7 + $0x1a0] sm:$0xff]
    %v728 = vld [vmem:[#allocation7 + $0x1a8] sm:$0xff]
    %v729 = vld [vmem:[#allocation7 + $0x1b0] sm:$0xff]
    %v730 = vld [vmem:[#allocation7 + $0x1b8] sm:$0xff]
    %v731 = vld [vmem:[#allocation7 + $0x1c0] sm:$0xff]
    %v732 = vld [vmem:[#allocation7 + $0x1c8] sm:$0xff]
    %v733 = vld [vmem:[#allocation7 + $0x1d0] sm:$0xff]
    %v734 = vld [vmem:[#allocation7 + $0x1d8] sm:$0xff]
    %v735 = vld [vmem:[#allocation7 + $0x1e0] sm:$0xff]
    %v736 = vld [vmem:[#allocation7 + $0x1e8] sm:$0xff]
    %v737 = vld [vmem:[#allocation7 + $0x1f0] sm:$0xff]
    %v738 = vld [vmem:[#allocation7 + $0x1f8] sm:$0xff]
    %v739 = vld [vmem:[#allocation7 + $0x200] sm:$0xff]
    %v740 = vld [vmem:[#allocation7 + $0x208] sm:$0xff]
    %v741 = vld [vmem:[#allocation7 + $0x210] sm:$0xff]
    %v742 = vld [vmem:[#allocation7 + $0x218] sm:$0xff]
    %v743 = vld [vmem:[#allocation7 + $0x220] sm:$0xff]
    %v744 = vld [vmem:[#allocation7 + $0x228] sm:$0xff]
    %v745 = vld [vmem:[#allocation7 + $0x230] sm:$0xff]
    %v746 = vld [vmem:[#allocation7 + $0x238] sm:$0xff]
    %v747 = vld [vmem:[#allocation7 + $0x240] sm:$0xff]
    %v748 = vld [vmem:[#allocation7 + $0x248] sm:$0xff]
    %v749 = vld [vmem:[#allocation7 + $0x250] sm:$0xff]
    %v750 = vld [vmem:[#allocation7 + $0x258] sm:$0xff]
    %v751 = vld [vmem:[#allocation7 + $0x260] sm:$0xff]
    %v752 = vld [vmem:[#allocation7 + $0x268] sm:$0xff]
    %v753 = vld [vmem:[#allocation7 + $0x270] sm:$0xff]
    %v754 = vld [vmem:[#allocation7 + $0x278] sm:$0xff]
    %v755 = vld [vmem:[#allocation7 + $0x280] sm:$0xff]
    %v756 = vld [vmem:[#allocation7 + $0x288] sm:$0xff]
    %v757 = vld [vmem:[#allocation7 + $0x290] sm:$0xff]
    %v758 = vld [vmem:[#allocation7 + $0x298] sm:$0xff]
    %v759 = vld [vmem:[#allocation7 + $0x2a0] sm:$0xff]
    %v760 = vld [vmem:[#allocation7 + $0x2a8] sm:$0xff]
    %v761 = vld [vmem:[#allocation7 + $0x2b0] sm:$0xff]
    %v762 = vld [vmem:[#allocation7 + $0x2b8] sm:$0xff]
    %v763 = vld [vmem:[#allocation7 + $0x2c0] sm:$0xff]
    %v764 = vld [vmem:[#allocation7 + $0x2c8] sm:$0xff]
    %v765 = vld [vmem:[#allocation7 + $0x2d0] sm:$0xff]
    %v766 = vld [vmem:[#allocation7 + $0x2d8] sm:$0xff]
    %v767 = vld [vmem:[#allocation7 + $0x2e0] sm:$0xff]
    %v768 = vld [vmem:[#allocation7 + $0x2e8] sm:$0xff]
    %v769 = vld [vmem:[#allocation7 + $0x2f0] sm:$0xff]
    %v770 = vld [vmem:[#allocation7 + $0x2f8] sm:$0xff]
    %v771 = vld [vmem:[#allocation7 + $0x300] sm:$0xff]
    %v772 = vld [vmem:[#allocation7 + $0x308] sm:$0xff]
    %v773 = vld [vmem:[#allocation7 + $0x310] sm:$0xff]
    %v774 = vld [vmem:[#allocation7 + $0x318] sm:$0xff]
    %v775 = vld [vmem:[#allocation7 + $0x320] sm:$0xff]
    %v776 = vld [vmem:[#allocation7 + $0x328] sm:$0xff]
    %v777 = vld [vmem:[#allocation7 + $0x330] sm:$0xff]
    %v778 = vld [vmem:[#allocation7 + $0x338] sm:$0xff]
    %v779 = vld [vmem:[#allocation7 + $0x340] sm:$0xff]
    %v780 = vld [vmem:[#allocation7 + $0x348] sm:$0xff]
    %v781 = vld [vmem:[#allocation7 + $0x350] sm:$0xff]
    %v782 = vld [vmem:[#allocation7 + $0x358] sm:$0xff]
    %v783 = vld [vmem:[#allocation7 + $0x360] sm:$0xff]
    %v784 = vld [vmem:[#allocation7 + $0x368] sm:$0xff]
    %v785 = vld [vmem:[#allocation7 + $0x370] sm:$0xff]
    %v786 = vld [vmem:[#allocation7 + $0x378] sm:$0xff]
    %v787 = vld [vmem:[#allocation7 + $0x380] sm:$0xff]
    %v788 = vld [vmem:[#allocation7 + $0x388] sm:$0xff]
    %v789 = vld [vmem:[#allocation7 + $0x390] sm:$0xff]
    %v790 = vld [vmem:[#allocation7 + $0x398] sm:$0xff]
    %v791 = vld [vmem:[#allocation7 + $0x3a0] sm:$0xff]
    %v792 = vld [vmem:[#allocation7 + $0x3a8] sm:$0xff]
    %v793 = vld [vmem:[#allocation7 + $0x3b0] sm:$0xff]
    %v794 = vld [vmem:[#allocation7 + $0x3b8] sm:$0xff]
    %v795 = vld [vmem:[#allocation7 + $0x3c0] sm:$0xff]
    %v796 = vld [vmem:[#allocation7 + $0x3c8] sm:$0xff]
    %v797 = vld [vmem:[#allocation7 + $0x3d0] sm:$0xff]
    %v798 = vld [vmem:[#allocation7 + $0x3d8] sm:$0xff]
    %v799 = vld [vmem:[#allocation7 + $0x3e0] sm:$0xff]
    %v800 = vld [vmem:[#allocation7 + $0x3e8] sm:$0xff]
    %v801 = vld [vmem:[#allocation7 + $0x3f0] sm:$0xff]
    %v802 = vld [vmem:[#allocation7 + $0x3f8] sm:$0xff]
    %s803 = scalar_lea.vmem [#allocation8], 1
    %v804 = vld [vmem:[%s803] ss:$8 sm:$0xf]
    %v806 = vlaneseq
    %v807 = vshrl.u32 %v806, 7
    %v808 = vsub.s32 0, %v807
    %v809 = vrot.slane %v804, %v808
    %v810 = vlaneseq
    %v811 = vshrl.u32 %v810, 7
    %v812 = vsub.s32 1, %v811
    %v813 = vrot.slane %v804, %v812
    %v814 = vlaneseq
    %v815 = vshrl.u32 %v814, 7
    %v816 = vsub.s32 2, %v815
    %v817 = vrot.slane %v804, %v816
    %v818 = vlaneseq
    %v819 = vshrl.u32 %v818, 7
    %v820 = vsub.s32 3, %v819
    %v821 = vrot.slane %v804, %v820
    %v954 = vunpack.c.l.b16 %v675
    %v955 = vunpack.c.h.b16 %v675
    %v956 = vunpack.c.l.b16 %v676
    %v957 = vunpack.c.h.b16 %v676
    %v958 = vunpack.c.l.b16 %v677
    %v959 = vunpack.c.h.b16 %v677
    %v960 = vunpack.c.l.b16 %v678
    %v961 = vunpack.c.h.b16 %v678
    %v962 = vunpack.c.l.b16 %v679
    %v963 = vunpack.c.h.b16 %v679
    %v964 = vunpack.c.l.b16 %v680
    %v965 = vunpack.c.h.b16 %v680
    %v966 = vunpack.c.l.b16 %v681
    %v967 = vunpack.c.h.b16 %v681
    %v968 = vunpack.c.l.b16 %v682
    %v969 = vunpack.c.h.b16 %v682
    %v970 = vunpack.c.l.b16 %v683
    %v971 = vunpack.c.h.b16 %v683
    %v972 = vunpack.c.l.b16 %v684
    %v973 = vunpack.c.h.b16 %v684
    %v974 = vunpack.c.l.b16 %v685
    %v975 = vunpack.c.h.b16 %v685
    %v976 = vunpack.c.l.b16 %v686
    %v977 = vunpack.c.h.b16 %v686
    %v978 = vunpack.c.l.b16 %v687
    %v979 = vunpack.c.h.b16 %v687
    %v980 = vunpack.c.l.b16 %v688
    %v981 = vunpack.c.h.b16 %v688
    %v982 = vunpack.c.l.b16 %v689
    %v983 = vunpack.c.h.b16 %v689
    %v984 = vunpack.c.l.b16 %v690
    %v985 = vunpack.c.h.b16 %v690
    %v986 = vunpack.c.l.b16 %v691
    %v987 = vunpack.c.h.b16 %v691
    %v988 = vunpack.c.l.b16 %v692
    %v989 = vunpack.c.h.b16 %v692
    %v990 = vunpack.c.l.b16 %v693
    %v991 = vunpack.c.h.b16 %v693
    %v992 = vunpack.c.l.b16 %v694
    %v993 = vunpack.c.h.b16 %v694
    %v994 = vunpack.c.l.b16 %v695
    %v995 = vunpack.c.h.b16 %v695
    %v996 = vunpack.c.l.b16 %v696
    %v997 = vunpack.c.h.b16 %v696
    %v998 = vunpack.c.l.b16 %v697
    %v999 = vunpack.c.h.b16 %v697
    %v1000 = vunpack.c.l.b16 %v698
    %v1001 = vunpack.c.h.b16 %v698
    %v1002 = vunpack.c.l.b16 %v699
    %v1003 = vunpack.c.h.b16 %v699
    %v1004 = vunpack.c.l.b16 %v700
    %v1005 = vunpack.c.h.b16 %v700
    %v1006 = vunpack.c.l.b16 %v701
    %v1007 = vunpack.c.h.b16 %v701
    %v1008 = vunpack.c.l.b16 %v702
    %v1009 = vunpack.c.h.b16 %v702
    %v1010 = vunpack.c.l.b16 %v703
    %v1011 = vunpack.c.h.b16 %v703
    %v1012 = vunpack.c.l.b16 %v704
    %v1013 = vunpack.c.h.b16 %v704
    %v1014 = vunpack.c.l.b16 %v705
    %v1015 = vunpack.c.h.b16 %v705
    %v1016 = vunpack.c.l.b16 %v706
    %v1017 = vunpack.c.h.b16 %v706
    %v1018 = vunpack.c.l.b16 %v707
    %v1019 = vunpack.c.h.b16 %v707
    %v1020 = vunpack.c.l.b16 %v708
    %v1021 = vunpack.c.h.b16 %v708
    %v1022 = vunpack.c.l.b16 %v709
    %v1023 = vunpack.c.h.b16 %v709
    %v1024 = vunpack.c.l.b16 %v710
    %v1025 = vunpack.c.h.b16 %v710
    %v1026 = vunpack.c.l.b16 %v711
    %v1027 = vunpack.c.h.b16 %v711
    %v1028 = vunpack.c.l.b16 %v712
    %v1029 = vunpack.c.h.b16 %v712
    %v1030 = vunpack.c.l.b16 %v713
    %v1031 = vunpack.c.h.b16 %v713
    %v1032 = vunpack.c.l.b16 %v714
    %v1033 = vunpack.c.h.b16 %v714
    %v1034 = vunpack.c.l.b16 %v715
    %v1035 = vunpack.c.h.b16 %v715
    %v1036 = vunpack.c.l.b16 %v716
    %v1037 = vunpack.c.h.b16 %v716
    %v1038 = vunpack.c.l.b16 %v717
    %v1039 = vunpack.c.h.b16 %v717
    %v1040 = vunpack.c.l.b16 %v718
    %v1041 = vunpack.c.h.b16 %v718
    %v1042 = vunpack.c.l.b16 %v719
    %v1043 = vunpack.c.h.b16 %v719
    %v1044 = vunpack.c.l.b16 %v720
    %v1045 = vunpack.c.h.b16 %v720
    %v1046 = vunpack.c.l.b16 %v721
    %v1047 = vunpack.c.h.b16 %v721
    %v1048 = vunpack.c.l.b16 %v722
    %v1049 = vunpack.c.h.b16 %v722
    %v1050 = vunpack.c.l.b16 %v723
    %v1051 = vunpack.c.h.b16 %v723
    %v1052 = vunpack.c.l.b16 %v724
    %v1053 = vunpack.c.h.b16 %v724
    %v1054 = vunpack.c.l.b16 %v725
    %v1055 = vunpack.c.h.b16 %v725
    %v1056 = vunpack.c.l.b16 %v726
    %v1057 = vunpack.c.h.b16 %v726
    %v1058 = vunpack.c.l.b16 %v727
    %v1059 = vunpack.c.h.b16 %v727
    %v1060 = vunpack.c.l.b16 %v728
    %v1061 = vunpack.c.h.b16 %v728
    %v1062 = vunpack.c.l.b16 %v729
    %v1063 = vunpack.c.h.b16 %v729
    %v1064 = vunpack.c.l.b16 %v730
    %v1065 = vunpack.c.h.b16 %v730
    %v1066 = vunpack.c.l.b16 %v731
    %v1067 = vunpack.c.h.b16 %v731
    %v1068 = vunpack.c.l.b16 %v732
    %v1069 = vunpack.c.h.b16 %v732
    %v1070 = vunpack.c.l.b16 %v733
    %v1071 = vunpack.c.h.b16 %v733
    %v1072 = vunpack.c.l.b16 %v734
    %v1073 = vunpack.c.h.b16 %v734
    %v1074 = vunpack.c.l.b16 %v735
    %v1075 = vunpack.c.h.b16 %v735
    %v1076 = vunpack.c.l.b16 %v736
    %v1077 = vunpack.c.h.b16 %v736
    %v1078 = vunpack.c.l.b16 %v737
    %v1079 = vunpack.c.h.b16 %v737
    %v1080 = vunpack.c.l.b16 %v738
    %v1081 = vunpack.c.h.b16 %v738
    %v1082 = vunpack.c.l.b16 %v739
    %v1083 = vunpack.c.h.b16 %v739
    %v1084 = vunpack.c.l.b16 %v740
    %v1085 = vunpack.c.h.b16 %v740
    %v1086 = vunpack.c.l.b16 %v741
    %v1087 = vunpack.c.h.b16 %v741
    %v1088 = vunpack.c.l.b16 %v742
    %v1089 = vunpack.c.h.b16 %v742
    %v1090 = vunpack.c.l.b16 %v743
    %v1091 = vunpack.c.h.b16 %v743
    %v1092 = vunpack.c.l.b16 %v744
    %v1093 = vunpack.c.h.b16 %v744
    %v1094 = vunpack.c.l.b16 %v745
    %v1095 = vunpack.c.h.b16 %v745
    %v1096 = vunpack.c.l.b16 %v746
    %v1097 = vunpack.c.h.b16 %v746
    %v1098 = vunpack.c.l.b16 %v747
    %v1099 = vunpack.c.h.b16 %v747
    %v1100 = vunpack.c.l.b16 %v748
    %v1101 = vunpack.c.h.b16 %v748
    %v1102 = vunpack.c.l.b16 %v749
    %v1103 = vunpack.c.h.b16 %v749
    %v1104 = vunpack.c.l.b16 %v750
    %v1105 = vunpack.c.h.b16 %v750
    %v1106 = vunpack.c.l.b16 %v751
    %v1107 = vunpack.c.h.b16 %v751
    %v1108 = vunpack.c.l.b16 %v752
    %v1109 = vunpack.c.h.b16 %v752
    %v1110 = vunpack.c.l.b16 %v753
    %v1111 = vunpack.c.h.b16 %v753
    %v1112 = vunpack.c.l.b16 %v754
    %v1113 = vunpack.c.h.b16 %v754
    %v1114 = vunpack.c.l.b16 %v755
    %v1115 = vunpack.c.h.b16 %v755
    %v1116 = vunpack.c.l.b16 %v756
    %v1117 = vunpack.c.h.b16 %v756
    %v1118 = vunpack.c.l.b16 %v757
    %v1119 = vunpack.c.h.b16 %v757
    %v1120 = vunpack.c.l.b16 %v758
    %v1121 = vunpack.c.h.b16 %v758
    %v1122 = vunpack.c.l.b16 %v759
    %v1123 = vunpack.c.h.b16 %v759
    %v1124 = vunpack.c.l.b16 %v760
    %v1125 = vunpack.c.h.b16 %v760
    %v1126 = vunpack.c.l.b16 %v761
    %v1127 = vunpack.c.h.b16 %v761
    %v1128 = vunpack.c.l.b16 %v762
    %v1129 = vunpack.c.h.b16 %v762
    %v1130 = vunpack.c.l.b16 %v763
    %v1131 = vunpack.c.h.b16 %v763
    %v1132 = vunpack.c.l.b16 %v764
    %v1133 = vunpack.c.h.b16 %v764
    %v1134 = vunpack.c.l.b16 %v765
    %v1135 = vunpack.c.h.b16 %v765
    %v1136 = vunpack.c.l.b16 %v766
    %v1137 = vunpack.c.h.b16 %v766
    %v1138 = vunpack.c.l.b16 %v767
    %v1139 = vunpack.c.h.b16 %v767
    %v1140 = vunpack.c.l.b16 %v768
    %v1141 = vunpack.c.h.b16 %v768
    %v1142 = vunpack.c.l.b16 %v769
    %v1143 = vunpack.c.h.b16 %v769
    %v1144 = vunpack.c.l.b16 %v770
    %v1145 = vunpack.c.h.b16 %v770
    %v1146 = vunpack.c.l.b16 %v771
    %v1147 = vunpack.c.h.b16 %v771
    %v1148 = vunpack.c.l.b16 %v772
    %v1149 = vunpack.c.h.b16 %v772
    %v1150 = vunpack.c.l.b16 %v773
    %v1151 = vunpack.c.h.b16 %v773
    %v1152 = vunpack.c.l.b16 %v774
    %v1153 = vunpack.c.h.b16 %v774
    %v1154 = vunpack.c.l.b16 %v775
    %v1155 = vunpack.c.h.b16 %v775
    %v1156 = vunpack.c.l.b16 %v776
    %v1157 = vunpack.c.h.b16 %v776
    %v1158 = vunpack.c.l.b16 %v777
    %v1159 = vunpack.c.h.b16 %v777
    %v1160 = vunpack.c.l.b16 %v778
    %v1161 = vunpack.c.h.b16 %v778
    %v1162 = vunpack.c.l.b16 %v779
    %v1163 = vunpack.c.h.b16 %v779
    %v1164 = vunpack.c.l.b16 %v780
    %v1165 = vunpack.c.h.b16 %v780
    %v1166 = vunpack.c.l.b16 %v781
    %v1167 = vunpack.c.h.b16 %v781
    %v1168 = vunpack.c.l.b16 %v782
    %v1169 = vunpack.c.h.b16 %v782
    %v1170 = vunpack.c.l.b16 %v783
    %v1171 = vunpack.c.h.b16 %v783
    %v1172 = vunpack.c.l.b16 %v784
    %v1173 = vunpack.c.h.b16 %v784
    %v1174 = vunpack.c.l.b16 %v785
    %v1175 = vunpack.c.h.b16 %v785
    %v1176 = vunpack.c.l.b16 %v786
    %v1177 = vunpack.c.h.b16 %v786
    %v1178 = vunpack.c.l.b16 %v787
    %v1179 = vunpack.c.h.b16 %v787
    %v1180 = vunpack.c.l.b16 %v788
    %v1181 = vunpack.c.h.b16 %v788
    %v1182 = vunpack.c.l.b16 %v789
    %v1183 = vunpack.c.h.b16 %v789
    %v1184 = vunpack.c.l.b16 %v790
    %v1185 = vunpack.c.h.b16 %v790
    %v1186 = vunpack.c.l.b16 %v791
    %v1187 = vunpack.c.h.b16 %v791
    %v1188 = vunpack.c.l.b16 %v792
    %v1189 = vunpack.c.h.b16 %v792
    %v1190 = vunpack.c.l.b16 %v793
    %v1191 = vunpack.c.h.b16 %v793
    %v1192 = vunpack.c.l.b16 %v794
    %v1193 = vunpack.c.h.b16 %v794
    %v1194 = vunpack.c.l.b16 %v795
    %v1195 = vunpack.c.h.b16 %v795
    %v1196 = vunpack.c.l.b16 %v796
    %v1197 = vunpack.c.h.b16 %v796
    %v1198 = vunpack.c.l.b16 %v797
    %v1199 = vunpack.c.h.b16 %v797
    %v1200 = vunpack.c.l.b16 %v798
    %v1201 = vunpack.c.h.b16 %v798
    %v1202 = vunpack.c.l.b16 %v799
    %v1203 = vunpack.c.h.b16 %v799
    %v1204 = vunpack.c.l.b16 %v800
    %v1205 = vunpack.c.h.b16 %v800
    %v1206 = vunpack.c.l.b16 %v801
    %v1207 = vunpack.c.h.b16 %v801
    %v1208 = vunpack.c.l.b16 %v802
    %v1209 = vunpack.c.h.b16 %v802
    %v1210 = vpack.c.b16 %v958, %v954
    %v1211 = vpack.c.b16 %v959, %v955
    %v1212 = vpack.c.b16 %v960, %v956
    %v1213 = vpack.c.b16 %v961, %v957
    %v1214 = vpack.c.b16 %v966, %v962
    %v1215 = vpack.c.b16 %v967, %v963
    %v1216 = vpack.c.b16 %v968, %v964
    %v1217 = vpack.c.b16 %v969, %v965
    %v1218 = vpack.c.b16 %v974, %v970
    %v1219 = vpack.c.b16 %v975, %v971
    %v1220 = vpack.c.b16 %v976, %v972
    %v1221 = vpack.c.b16 %v977, %v973
    %v1222 = vpack.c.b16 %v982, %v978
    %v1223 = vpack.c.b16 %v983, %v979
    %v1224 = vpack.c.b16 %v984, %v980
    %v1225 = vpack.c.b16 %v985, %v981
    %v1226 = vpack.c.b16 %v990, %v986
    %v1227 = vpack.c.b16 %v991, %v987
    %v1228 = vpack.c.b16 %v992, %v988
    %v1229 = vpack.c.b16 %v993, %v989
    %v1230 = vpack.c.b16 %v998, %v994
    %v1231 = vpack.c.b16 %v999, %v995
    %v1232 = vpack.c.b16 %v1000, %v996
    %v1233 = vpack.c.b16 %v1001, %v997
    %v1234 = vpack.c.b16 %v1006, %v1002
    %v1235 = vpack.c.b16 %v1007, %v1003
    %v1236 = vpack.c.b16 %v1008, %v1004
    %v1237 = vpack.c.b16 %v1009, %v1005
    %v1238 = vpack.c.b16 %v1014, %v1010
    %v1239 = vpack.c.b16 %v1015, %v1011
    %v1240 = vpack.c.b16 %v1016, %v1012
    %v1241 = vpack.c.b16 %v1017, %v1013
    %v1242 = vpack.c.b16 %v1022, %v1018
    %v1243 = vpack.c.b16 %v1023, %v1019
    %v1244 = vpack.c.b16 %v1024, %v1020
    %v1245 = vpack.c.b16 %v1025, %v1021
    %v1246 = vpack.c.b16 %v1030, %v1026
    %v1247 = vpack.c.b16 %v1031, %v1027
    %v1248 = vpack.c.b16 %v1032, %v1028
    %v1249 = vpack.c.b16 %v1033, %v1029
    %v1250 = vpack.c.b16 %v1038, %v1034
    %v1251 = vpack.c.b16 %v1039, %v1035
    %v1252 = vpack.c.b16 %v1040, %v1036
    %v1253 = vpack.c.b16 %v1041, %v1037
    %v1254 = vpack.c.b16 %v1046, %v1042
    %v1255 = vpack.c.b16 %v1047, %v1043
    %v1256 = vpack.c.b16 %v1048, %v1044
    %v1257 = vpack.c.b16 %v1049, %v1045
    %v1258 = vpack.c.b16 %v1054, %v1050
    %v1259 = vpack.c.b16 %v1055, %v1051
    %v1260 = vpack.c.b16 %v1056, %v1052
    %v1261 = vpack.c.b16 %v1057, %v1053
    %v1262 = vpack.c.b16 %v1062, %v1058
    %v1263 = vpack.c.b16 %v1063, %v1059
    %v1264 = vpack.c.b16 %v1064, %v1060
    %v1265 = vpack.c.b16 %v1065, %v1061
    %v1266 = vpack.c.b16 %v1070, %v1066
    %v1267 = vpack.c.b16 %v1071, %v1067
    %v1268 = vpack.c.b16 %v1072, %v1068
    %v1269 = vpack.c.b16 %v1073, %v1069
    %v1270 = vpack.c.b16 %v1078, %v1074
    %v1271 = vpack.c.b16 %v1079, %v1075
    %v1272 = vpack.c.b16 %v1080, %v1076
    %v1273 = vpack.c.b16 %v1081, %v1077
    %v1274 = vpack.c.b16 %v1086, %v1082
    %v1275 = vpack.c.b16 %v1087, %v1083
    %v1276 = vpack.c.b16 %v1088, %v1084
    %v1277 = vpack.c.b16 %v1089, %v1085
    %v1278 = vpack.c.b16 %v1094, %v1090
    %v1279 = vpack.c.b16 %v1095, %v1091
    %v1280 = vpack.c.b16 %v1096, %v1092
    %v1281 = vpack.c.b16 %v1097, %v1093
    %v1282 = vpack.c.b16 %v1102, %v1098
    %v1283 = vpack.c.b16 %v1103, %v1099
    %v1284 = vpack.c.b16 %v1104, %v1100
    %v1285 = vpack.c.b16 %v1105, %v1101
    %v1286 = vpack.c.b16 %v1110, %v1106
    %v1287 = vpack.c.b16 %v1111, %v1107
    %v1288 = vpack.c.b16 %v1112, %v1108
    %v1289 = vpack.c.b16 %v1113, %v1109
    %v1290 = vpack.c.b16 %v1118, %v1114
    %v1291 = vpack.c.b16 %v1119, %v1115
    %v1292 = vpack.c.b16 %v1120, %v1116
    %v1293 = vpack.c.b16 %v1121, %v1117
    %v1294 = vpack.c.b16 %v1126, %v1122
    %v1295 = vpack.c.b16 %v1127, %v1123
    %v1296 = vpack.c.b16 %v1128, %v1124
    %v1297 = vpack.c.b16 %v1129, %v1125
    %v1298 = vpack.c.b16 %v1134, %v1130
    %v1299 = vpack.c.b16 %v1135, %v1131
    %v1300 = vpack.c.b16 %v1136, %v1132
    %v1301 = vpack.c.b16 %v1137, %v1133
    %v1302 = vpack.c.b16 %v1142, %v1138
    %v1303 = vpack.c.b16 %v1143, %v1139
    %v1304 = vpack.c.b16 %v1144, %v1140
    %v1305 = vpack.c.b16 %v1145, %v1141
    %v1306 = vpack.c.b16 %v1150, %v1146
    %v1307 = vpack.c.b16 %v1151, %v1147
    %v1308 = vpack.c.b16 %v1152, %v1148
    %v1309 = vpack.c.b16 %v1153, %v1149
    %v1310 = vpack.c.b16 %v1158, %v1154
    %v1311 = vpack.c.b16 %v1159, %v1155
    %v1312 = vpack.c.b16 %v1160, %v1156
    %v1313 = vpack.c.b16 %v1161, %v1157
    %v1314 = vpack.c.b16 %v1166, %v1162
    %v1315 = vpack.c.b16 %v1167, %v1163
    %v1316 = vpack.c.b16 %v1168, %v1164
    %v1317 = vpack.c.b16 %v1169, %v1165
    %v1318 = vpack.c.b16 %v1174, %v1170
    %v1319 = vpack.c.b16 %v1175, %v1171
    %v1320 = vpack.c.b16 %v1176, %v1172
    %v1321 = vpack.c.b16 %v1177, %v1173
    %v1322 = vpack.c.b16 %v1182, %v1178
    %v1323 = vpack.c.b16 %v1183, %v1179
    %v1324 = vpack.c.b16 %v1184, %v1180
    %v1325 = vpack.c.b16 %v1185, %v1181
    %v1326 = vpack.c.b16 %v1190, %v1186
    %v1327 = vpack.c.b16 %v1191, %v1187
    %v1328 = vpack.c.b16 %v1192, %v1188
    %v1329 = vpack.c.b16 %v1193, %v1189
    %v1330 = vpack.c.b16 %v1198, %v1194
    %v1331 = vpack.c.b16 %v1199, %v1195
    %v1332 = vpack.c.b16 %v1200, %v1196
    %v1333 = vpack.c.b16 %v1201, %v1197
    %v1334 = vpack.c.b16 %v1206, %v1202
    %v1335 = vpack.c.b16 %v1207, %v1203
    %v1336 = vpack.c.b16 %v1208, %v1204
    %v1337 = vpack.c.b16 %v1209, %v1205
    %1466 = vmatprep.subr.bf16.mxu0 %v1211
    %1467 = vmatpush1.bf16.msra.mxu0 %v1210
    %1468 = vmatprep.subr.bf16.mxu0 %v1215
    %1469 = vmatpush1.bf16.msra.mxu0 %v1214
    %1470 = vmatprep.subr.bf16.mxu0 %v1219
    %1471 = vmatpush1.bf16.msra.mxu0 %v1218
    %1472 = vmatprep.subr.bf16.mxu0 %v1223
    %1473 = vmatpush1.bf16.msra.mxu0 %v1222
    %1474 = vmatprep.subr.bf16.mxu0 %v1227
    %1475 = vmatpush1.bf16.msra.mxu0 %v1226
    %1476 = vmatprep.subr.bf16.mxu0 %v1231
    %1477 = vmatpush1.bf16.msra.mxu0 %v1230
    %1478 = vmatprep.subr.bf16.mxu0 %v1235
    %1479 = vmatpush1.bf16.msra.mxu0 %v1234
    %1480 = vmatprep.subr.bf16.mxu0 %v1239
    %1481 = vmatpush1.bf16.msra.mxu0 %v1238
    %1482 = vmatprep.subr.bf16.mxu0 %v1243
    %1483 = vmatpush1.bf16.msra.mxu0 %v1242
    %1484 = vmatprep.subr.bf16.mxu0 %v1247
    %1485 = vmatpush1.bf16.msra.mxu0 %v1246
    %1486 = vmatprep.subr.bf16.mxu0 %v1251
    %1487 = vmatpush1.bf16.msra.mxu0 %v1250
    %1488 = vmatprep.subr.bf16.mxu0 %v1255
    %1489 = vmatpush1.bf16.msra.mxu0 %v1254
    %1490 = vmatprep.subr.bf16.mxu0 %v1259
    %1491 = vmatpush1.bf16.msra.mxu0 %v1258
    %1492 = vmatprep.subr.bf16.mxu0 %v1263
    %1493 = vmatpush1.bf16.msra.mxu0 %v1262
    %1494 = vmatprep.subr.bf16.mxu0 %v1267
    %1495 = vmatpush1.bf16.msra.mxu0 %v1266
    %1496 = vmatprep.subr.bf16.mxu0 %v1271
    %1497 = vmatpush1.bf16.msra.mxu0 %v1270
    %1498 = vmatprep.mubr.bf16.mxu0 %v672
    %1499 = vmatmul.mubr.bf16.gmra.mrb[0].mxu0 %v671
    %v1500 = vpop.f32.mrb[0].mxu0
    %v1501 = vadd.f32 %v809, %v1500
    %v1502 = vpop.f32.mrb[0].mxu0
    %v1503 = vadd.f32 %v813, %v1502
    %v1504 = vpop.f32.mrb[0].mxu0
    %v1505 = vpop.f32.mrb[0].mxu0
    %1506 = vdwg.mxu0
    %1507 = vmatprep.subr.bf16.mxu0 %v1275
    %1508 = vmatpush1.bf16.msra.mxu0 %v1274
    %1509 = vmatprep.subr.bf16.mxu0 %v1279
    %1510 = vmatpush1.bf16.msra.mxu0 %v1278
    %1511 = vmatprep.subr.bf16.mxu0 %v1283
    %1512 = vmatpush1.bf16.msra.mxu0 %v1282
    %1513 = vmatprep.subr.bf16.mxu0 %v1287
    %1514 = vmatpush1.bf16.msra.mxu0 %v1286
    %1515 = vmatprep.subr.bf16.mxu0 %v1291
    %1516 = vmatpush1.bf16.msra.mxu0 %v1290
    %1517 = vmatprep.subr.bf16.mxu0 %v1295
    %1518 = vmatpush1.bf16.msra.mxu0 %v1294
    %1519 = vmatprep.subr.bf16.mxu0 %v1299
    %1520 = vmatpush1.bf16.msra.mxu0 %v1298
    %1521 = vmatprep.subr.bf16.mxu0 %v1303
    %1522 = vmatpush1.bf16.msra.mxu0 %v1302
    %1523 = vmatprep.subr.bf16.mxu0 %v1307
    %1524 = vmatpush1.bf16.msra.mxu0 %v1306
    %1525 = vmatprep.subr.bf16.mxu0 %v1311
    %1526 = vmatpush1.bf16.msra.mxu0 %v1310
    %1527 = vmatprep.subr.bf16.mxu0 %v1315
    %1528 = vmatpush1.bf16.msra.mxu0 %v1314
    %1529 = vmatprep.subr.bf16.mxu0 %v1319
    %1530 = vmatpush1.bf16.msra.mxu0 %v1318
    %1531 = vmatprep.subr.bf16.mxu0 %v1323
    %1532 = vmatpush1.bf16.msra.mxu0 %v1322
    %1533 = vmatprep.subr.bf16.mxu0 %v1327
    %1534 = vmatpush1.bf16.msra.mxu0 %v1326
    %1535 = vmatprep.subr.bf16.mxu0 %v1331
    %1536 = vmatpush1.bf16.msra.mxu0 %v1330
    %1537 = vmatprep.subr.bf16.mxu0 %v1335
    %1538 = vmatpush1.bf16.msra.mxu0 %v1334
    %1539 = vmatprep.mubr.bf16.mxu0 %v674
    %1540 = vmatmul.mubr.bf16.gmra.mrb[0].mxu0 %v673
    %v1541 = vpop.f32.mrb[0].mxu0
    %v1542 = vadd.f32 %v1501, %v1541
    %v1543 = vpop.f32.mrb[0].mxu0
    %v1544 = vadd.f32 %v1503, %v1543
    %v1545 = vpop.f32.mrb[0].mxu0
    %v1546 = vpop.f32.mrb[0].mxu0
    %1547 = vdwg.mxu0
    %1548 = vmatprep.subr.bf16.mxu0 %v1213
    %1549 = vmatpush1.bf16.msra.mxu0 %v1212
    %1550 = vmatprep.subr.bf16.mxu0 %v1217
    %1551 = vmatpush1.bf16.msra.mxu0 %v1216
    %1552 = vmatprep.subr.bf16.mxu0 %v1221
    %1553 = vmatpush1.bf16.msra.mxu0 %v1220
    %1554 = vmatprep.subr.bf16.mxu0 %v1225
    %1555 = vmatpush1.bf16.msra.mxu0 %v1224
    %1556 = vmatprep.subr.bf16.mxu0 %v1229
    %1557 = vmatpush1.bf16.msra.mxu0 %v1228
    %1558 = vmatprep.subr.bf16.mxu0 %v1233
    %1559 = vmatpush1.bf16.msra.mxu0 %v1232
    %1560 = vmatprep.subr.bf16.mxu0 %v1237
    %1561 = vmatpush1.bf16.msra.mxu0 %v1236
    %1562 = vmatprep.subr.bf16.mxu0 %v1241
    %1563 = vmatpush1.bf16.msra.mxu0 %v1240
    %1564 = vmatprep.subr.bf16.mxu0 %v1245
    %1565 = vmatpush1.bf16.msra.mxu0 %v1244
    %1566 = vmatprep.subr.bf16.mxu0 %v1249
    %1567 = vmatpush1.bf16.msra.mxu0 %v1248
    %1568 = vmatprep.subr.bf16.mxu0 %v1253
    %1569 = vmatpush1.bf16.msra.mxu0 %v1252
    %1570 = vmatprep.subr.bf16.mxu0 %v1257
    %1571 = vmatpush1.bf16.msra.mxu0 %v1256
    %1572 = vmatprep.subr.bf16.mxu0 %v1261
    %1573 = vmatpush1.bf16.msra.mxu0 %v1260
    %1574 = vmatprep.subr.bf16.mxu0 %v1265
    %1575 = vmatpush1.bf16.msra.mxu0 %v1264
    %1576 = vmatprep.subr.bf16.mxu0 %v1269
    %1577 = vmatpush1.bf16.msra.mxu0 %v1268
    %1578 = vmatprep.subr.bf16.mxu0 %v1273
    %1579 = vmatpush1.bf16.msra.mxu0 %v1272
    %1580 = vmatprep.mubr.bf16.mxu0 %v672
    %1581 = vmatmul.mubr.bf16.gmra.mrb[0].mxu0 %v671
    %v1582 = vpop.f32.mrb[0].mxu0
    %v1583 = vadd.f32 %v817, %v1582
    %v1584 = vpop.f32.mrb[0].mxu0
    %v1585 = vadd.f32 %v821, %v1584
    %v1586 = vpop.f32.mrb[0].mxu0
    %v1587 = vpop.f32.mrb[0].mxu0
    %1588 = vdwg.mxu0
    %1589 = vmatprep.subr.bf16.mxu0 %v1277
    %1590 = vmatpush1.bf16.msra.mxu0 %v1276
    %1591 = vmatprep.subr.bf16.mxu0 %v1281
    %1592 = vmatpush1.bf16.msra.mxu0 %v1280
    %1593 = vmatprep.subr.bf16.mxu0 %v1285
    %1594 = vmatpush1.bf16.msra.mxu0 %v1284
    %1595 = vmatprep.subr.bf16.mxu0 %v1289
    %1596 = vmatpush1.bf16.msra.mxu0 %v1288
    %1597 = vmatprep.subr.bf16.mxu0 %v1293
    %1598 = vmatpush1.bf16.msra.mxu0 %v1292
    %1599 = vmatprep.subr.bf16.mxu0 %v1297
    %1600 = vmatpush1.bf16.msra.mxu0 %v1296
    %1601 = vmatprep.subr.bf16.mxu0 %v1301
    %1602 = vmatpush1.bf16.msra.mxu0 %v1300
    %1603 = vmatprep.subr.bf16.mxu0 %v1305
    %1604 = vmatpush1.bf16.msra.mxu0 %v1304
    %1605 = vmatprep.subr.bf16.mxu0 %v1309
    %1606 = vmatpush1.bf16.msra.mxu0 %v1308
    %1607 = vmatprep.subr.bf16.mxu0 %v1313
    %1608 = vmatpush1.bf16.msra.mxu0 %v1312
    %1609 = vmatprep.subr.bf16.mxu0 %v1317
    %1610 = vmatpush1.bf16.msra.mxu0 %v1316
    %1611 = vmatprep.subr.bf16.mxu0 %v1321
    %1612 = vmatpush1.bf16.msra.mxu0 %v1320
    %1613 = vmatprep.subr.bf16.mxu0 %v1325
    %1614 = vmatpush1.bf16.msra.mxu0 %v1324
    %1615 = vmatprep.subr.bf16.mxu0 %v1329
    %1616 = vmatpush1.bf16.msra.mxu0 %v1328
    %1617 = vmatprep.subr.bf16.mxu0 %v1333
    %1618 = vmatpush1.bf16.msra.mxu0 %v1332
    %1619 = vmatprep.subr.bf16.mxu0 %v1337
    %1620 = vmatpush1.bf16.msra.mxu0 %v1336
    %1621 = vmatprep.mubr.bf16.mxu0 %v674
    %1622 = vmatmul.mubr.bf16.gmra.mrb[0].mxu0 %v673
    %v1623 = vpop.f32.mrb[0].mxu0
    %v1624 = vadd.f32 %v1583, %v1623
    %v1625 = vpop.f32.mrb[0].mxu0
    %v1626 = vadd.f32 %v1585, %v1625
    %v1627 = vpop.f32.mrb[0].mxu0
    %v1628 = vpop.f32.mrb[0].mxu0
    %1629 = vdwg.mxu0
    %v1630 = vmax.f32 %v1542, 0.0
    %v1631 = vmax.f32 %v1544, 0.0
    %v1632 = vmax.f32 %v1624, 0.0
    %v1633 = vmax.f32 %v1626, 0.0
    %v1634 = vadd.f32 %v1630, %v620
    %v1635 = vadd.f32 %v1631, %v622
    %v1636 = vadd.f32 %v1632, %v661
    %v1637 = vadd.f32 %v1633, %v663
    %v1638 = vmax.f32 %v1634, 0.0
    %v1639 = vmax.f32 %v1635, 0.0
    %v1640 = vmax.f32 %v1636, 0.0
    %v1641 = vmax.f32 %v1637, 0.0
    %v1642 = vld [vmem:[#allocation7 + $0x400] sm:$0xff]
    %v1643 = vld [vmem:[#allocation7 + $0x408] sm:$0xff]
    %v1644 = vld [vmem:[#allocation7 + $0x410] sm:$0xff]
    %v1645 = vld [vmem:[#allocation7 + $0x418] sm:$0xff]
    %v1646 = vld [vmem:[#allocation7 + $0x420] sm:$0xff]
    %v1647 = vld [vmem:[#allocation7 + $0x428] sm:$0xff]
    %v1648 = vld [vmem:[#allocation7 + $0x430] sm:$0xff]
    %v1649 = vld [vmem:[#allocation7 + $0x438] sm:$0xff]
    %v1650 = vld [vmem:[#allocation7 + $0x440] sm:$0xff]
    %v1651 = vld [vmem:[#allocation7 + $0x448] sm:$0xff]
    %v1652 = vld [vmem:[#allocation7 + $0x450] sm:$0xff]
    %v1653 = vld [vmem:[#allocation7 + $0x458] sm:$0xff]
    %v1654 = vld [vmem:[#allocation7 + $0x460] sm:$0xff]
    %v1655 = vld [vmem:[#allocation7 + $0x468] sm:$0xff]
    %v1656 = vld [vmem:[#allocation7 + $0x470] sm:$0xff]
    %v1657 = vld [vmem:[#allocation7 + $0x478] sm:$0xff]
    %v1658 = vld [vmem:[#allocation7 + $0x480] sm:$0xff]
    %v1659 = vld [vmem:[#allocation7 + $0x488] sm:$0xff]
    %v1660 = vld [vmem:[#allocation7 + $0x490] sm:$0xff]
    %v1661 = vld [vmem:[#allocation7 + $0x498] sm:$0xff]
    %v1662 = vld [vmem:[#allocation7 + $0x4a0] sm:$0xff]
    %v1663 = vld [vmem:[#allocation7 + $0x4a8] sm:$0xff]
    %v1664 = vld [vmem:[#allocation7 + $0x4b0] sm:$0xff]
    %v1665 = vld [vmem:[#allocation7 + $0x4b8] sm:$0xff]
    %v1666 = vld [vmem:[#allocation7 + $0x4c0] sm:$0xff]
    %v1667 = vld [vmem:[#allocation7 + $0x4c8] sm:$0xff]
    %v1668 = vld [vmem:[#allocation7 + $0x4d0] sm:$0xff]
    %v1669 = vld [vmem:[#allocation7 + $0x4d8] sm:$0xff]
    %v1670 = vld [vmem:[#allocation7 + $0x4e0] sm:$0xff]
    %v1671 = vld [vmem:[#allocation7 + $0x4e8] sm:$0xff]
    %v1672 = vld [vmem:[#allocation7 + $0x4f0] sm:$0xff]
    %v1673 = vld [vmem:[#allocation7 + $0x4f8] sm:$0xff]
    %v1674 = vld [vmem:[#allocation7 + $0x500] sm:$0xff]
    %v1675 = vld [vmem:[#allocation7 + $0x508] sm:$0xff]
    %v1676 = vld [vmem:[#allocation7 + $0x510] sm:$0xff]
    %v1677 = vld [vmem:[#allocation7 + $0x518] sm:$0xff]
    %v1678 = vld [vmem:[#allocation7 + $0x520] sm:$0xff]
    %v1679 = vld [vmem:[#allocation7 + $0x528] sm:$0xff]
    %v1680 = vld [vmem:[#allocation7 + $0x530] sm:$0xff]
    %v1681 = vld [vmem:[#allocation7 + $0x538] sm:$0xff]
    %v1682 = vld [vmem:[#allocation7 + $0x540] sm:$0xff]
    %v1683 = vld [vmem:[#allocation7 + $0x548] sm:$0xff]
    %v1684 = vld [vmem:[#allocation7 + $0x550] sm:$0xff]
    %v1685 = vld [vmem:[#allocation7 + $0x558] sm:$0xff]
    %v1686 = vld [vmem:[#allocation7 + $0x560] sm:$0xff]
    %v1687 = vld [vmem:[#allocation7 + $0x568] sm:$0xff]
    %v1688 = vld [vmem:[#allocation7 + $0x570] sm:$0xff]
    %v1689 = vld [vmem:[#allocation7 + $0x578] sm:$0xff]
    %v1690 = vld [vmem:[#allocation7 + $0x580] sm:$0xff]
    %v1691 = vld [vmem:[#allocation7 + $0x588] sm:$0xff]
    %v1692 = vld [vmem:[#allocation7 + $0x590] sm:$0xff]
    %v1693 = vld [vmem:[#allocation7 + $0x598] sm:$0xff]
    %v1694 = vld [vmem:[#allocation7 + $0x5a0] sm:$0xff]
    %v1695 = vld [vmem:[#allocation7 + $0x5a8] sm:$0xff]
    %v1696 = vld [vmem:[#allocation7 + $0x5b0] sm:$0xff]
    %v1697 = vld [vmem:[#allocation7 + $0x5b8] sm:$0xff]
    %v1698 = vld [vmem:[#allocation7 + $0x5c0] sm:$0xff]
    %v1699 = vld [vmem:[#allocation7 + $0x5c8] sm:$0xff]
    %v1700 = vld [vmem:[#allocation7 + $0x5d0] sm:$0xff]
    %v1701 = vld [vmem:[#allocation7 + $0x5d8] sm:$0xff]
    %v1702 = vld [vmem:[#allocation7 + $0x5e0] sm:$0xff]
    %v1703 = vld [vmem:[#allocation7 + $0x5e8] sm:$0xff]
    %v1704 = vld [vmem:[#allocation7 + $0x5f0] sm:$0xff]
    %v1705 = vld [vmem:[#allocation7 + $0x5f8] sm:$0xff]
    %v1706 = vld [vmem:[#allocation7 + $0x600] sm:$0xff]
    %v1707 = vld [vmem:[#allocation7 + $0x608] sm:$0xff]
    %v1708 = vld [vmem:[#allocation7 + $0x610] sm:$0xff]
    %v1709 = vld [vmem:[#allocation7 + $0x618] sm:$0xff]
    %v1710 = vld [vmem:[#allocation7 + $0x620] sm:$0xff]
    %v1711 = vld [vmem:[#allocation7 + $0x628] sm:$0xff]
    %v1712 = vld [vmem:[#allocation7 + $0x630] sm:$0xff]
    %v1713 = vld [vmem:[#allocation7 + $0x638] sm:$0xff]
    %v1714 = vld [vmem:[#allocation7 + $0x640] sm:$0xff]
    %v1715 = vld [vmem:[#allocation7 + $0x648] sm:$0xff]
    %v1716 = vld [vmem:[#allocation7 + $0x650] sm:$0xff]
    %v1717 = vld [vmem:[#allocation7 + $0x658] sm:$0xff]
    %v1718 = vld [vmem:[#allocation7 + $0x660] sm:$0xff]
    %v1719 = vld [vmem:[#allocation7 + $0x668] sm:$0xff]
    %v1720 = vld [vmem:[#allocation7 + $0x670] sm:$0xff]
    %v1721 = vld [vmem:[#allocation7 + $0x678] sm:$0xff]
    %v1722 = vld [vmem:[#allocation7 + $0x680] sm:$0xff]
    %v1723 = vld [vmem:[#allocation7 + $0x688] sm:$0xff]
    %v1724 = vld [vmem:[#allocation7 + $0x690] sm:$0xff]
    %v1725 = vld [vmem:[#allocation7 + $0x698] sm:$0xff]
    %v1726 = vld [vmem:[#allocation7 + $0x6a0] sm:$0xff]
    %v1727 = vld [vmem:[#allocation7 + $0x6a8] sm:$0xff]
    %v1728 = vld [vmem:[#allocation7 + $0x6b0] sm:$0xff]
    %v1729 = vld [vmem:[#allocation7 + $0x6b8] sm:$0xff]
    %v1730 = vld [vmem:[#allocation7 + $0x6c0] sm:$0xff]
    %v1731 = vld [vmem:[#allocation7 + $0x6c8] sm:$0xff]
    %v1732 = vld [vmem:[#allocation7 + $0x6d0] sm:$0xff]
    %v1733 = vld [vmem:[#allocation7 + $0x6d8] sm:$0xff]
    %v1734 = vld [vmem:[#allocation7 + $0x6e0] sm:$0xff]
    %v1735 = vld [vmem:[#allocation7 + $0x6e8] sm:$0xff]
    %v1736 = vld [vmem:[#allocation7 + $0x6f0] sm:$0xff]
    %v1737 = vld [vmem:[#allocation7 + $0x6f8] sm:$0xff]
    %v1738 = vld [vmem:[#allocation7 + $0x700] sm:$0xff]
    %v1739 = vld [vmem:[#allocation7 + $0x708] sm:$0xff]
    %v1740 = vld [vmem:[#allocation7 + $0x710] sm:$0xff]
    %v1741 = vld [vmem:[#allocation7 + $0x718] sm:$0xff]
    %v1742 = vld [vmem:[#allocation7 + $0x720] sm:$0xff]
    %v1743 = vld [vmem:[#allocation7 + $0x728] sm:$0xff]
    %v1744 = vld [vmem:[#allocation7 + $0x730] sm:$0xff]
    %v1745 = vld [vmem:[#allocation7 + $0x738] sm:$0xff]
    %v1746 = vld [vmem:[#allocation7 + $0x740] sm:$0xff]
    %v1747 = vld [vmem:[#allocation7 + $0x748] sm:$0xff]
    %v1748 = vld [vmem:[#allocation7 + $0x750] sm:$0xff]
    %v1749 = vld [vmem:[#allocation7 + $0x758] sm:$0xff]
    %v1750 = vld [vmem:[#allocation7 + $0x760] sm:$0xff]
    %v1751 = vld [vmem:[#allocation7 + $0x768] sm:$0xff]
    %v1752 = vld [vmem:[#allocation7 + $0x770] sm:$0xff]
    %v1753 = vld [vmem:[#allocation7 + $0x778] sm:$0xff]
    %v1754 = vld [vmem:[#allocation7 + $0x780] sm:$0xff]
    %v1755 = vld [vmem:[#allocation7 + $0x788] sm:$0xff]
    %v1756 = vld [vmem:[#allocation7 + $0x790] sm:$0xff]
    %v1757 = vld [vmem:[#allocation7 + $0x798] sm:$0xff]
    %v1758 = vld [vmem:[#allocation7 + $0x7a0] sm:$0xff]
    %v1759 = vld [vmem:[#allocation7 + $0x7a8] sm:$0xff]
    %v1760 = vld [vmem:[#allocation7 + $0x7b0] sm:$0xff]
    %v1761 = vld [vmem:[#allocation7 + $0x7b8] sm:$0xff]
    %v1762 = vld [vmem:[#allocation7 + $0x7c0] sm:$0xff]
    %v1763 = vld [vmem:[#allocation7 + $0x7c8] sm:$0xff]
    %v1764 = vld [vmem:[#allocation7 + $0x7d0] sm:$0xff]
    %v1765 = vld [vmem:[#allocation7 + $0x7d8] sm:$0xff]
    %v1766 = vld [vmem:[#allocation7 + $0x7e0] sm:$0xff]
    %v1767 = vld [vmem:[#allocation7 + $0x7e8] sm:$0xff]
    %v1768 = vld [vmem:[#allocation7 + $0x7f0] sm:$0xff]
    %v1769 = vld [vmem:[#allocation7 + $0x7f8] sm:$0xff]
    %v1770 = vld [vmem:[#allocation7 + $0x800] sm:$0xff]
    %v1771 = vld [vmem:[#allocation7 + $0x808] sm:$0xff]
    %v1772 = vld [vmem:[#allocation7 + $0x810] sm:$0xff]
    %v1773 = vld [vmem:[#allocation7 + $0x818] sm:$0xff]
    %v1774 = vld [vmem:[#allocation7 + $0x820] sm:$0xff]
    %v1775 = vld [vmem:[#allocation7 + $0x828] sm:$0xff]
    %v1776 = vld [vmem:[#allocation7 + $0x830] sm:$0xff]
    %v1777 = vld [vmem:[#allocation7 + $0x838] sm:$0xff]
    %v1778 = vld [vmem:[#allocation7 + $0x840] sm:$0xff]
    %v1779 = vld [vmem:[#allocation7 + $0x848] sm:$0xff]
    %v1780 = vld [vmem:[#allocation7 + $0x850] sm:$0xff]
    %v1781 = vld [vmem:[#allocation7 + $0x858] sm:$0xff]
    %v1782 = vld [vmem:[#allocation7 + $0x860] sm:$0xff]
    %v1783 = vld [vmem:[#allocation7 + $0x868] sm:$0xff]
    %v1784 = vld [vmem:[#allocation7 + $0x870] sm:$0xff]
    %v1785 = vld [vmem:[#allocation7 + $0x878] sm:$0xff]
    %v1786 = vld [vmem:[#allocation7 + $0x880] sm:$0xff]
    %v1787 = vld [vmem:[#allocation7 + $0x888] sm:$0xff]
    %v1788 = vld [vmem:[#allocation7 + $0x890] sm:$0xff]
    %v1789 = vld [vmem:[#allocation7 + $0x898] sm:$0xff]
    %v1790 = vld [vmem:[#allocation7 + $0x8a0] sm:$0xff]
    %v1791 = vld [vmem:[#allocation7 + $0x8a8] sm:$0xff]
    %v1792 = vld [vmem:[#allocation7 + $0x8b0] sm:$0xff]
    %v1793 = vld [vmem:[#allocation7 + $0x8b8] sm:$0xff]
    %v1794 = vld [vmem:[#allocation7 + $0x8c0] sm:$0xff]
    %v1795 = vld [vmem:[#allocation7 + $0x8c8] sm:$0xff]
    %v1796 = vld [vmem:[#allocation7 + $0x8d0] sm:$0xff]
    %v1797 = vld [vmem:[#allocation7 + $0x8d8] sm:$0xff]
    %v1798 = vld [vmem:[#allocation7 + $0x8e0] sm:$0xff]
    %v1799 = vld [vmem:[#allocation7 + $0x8e8] sm:$0xff]
    %v1800 = vld [vmem:[#allocation7 + $0x8f0] sm:$0xff]
    %v1801 = vld [vmem:[#allocation7 + $0x8f8] sm:$0xff]
    %v1802 = vld [vmem:[#allocation7 + $0x900] sm:$0xff]
    %v1803 = vld [vmem:[#allocation7 + $0x908] sm:$0xff]
    %v1804 = vld [vmem:[#allocation7 + $0x910] sm:$0xff]
    %v1805 = vld [vmem:[#allocation7 + $0x918] sm:$0xff]
    %v1806 = vld [vmem:[#allocation7 + $0x920] sm:$0xff]
    %v1807 = vld [vmem:[#allocation7 + $0x928] sm:$0xff]
    %v1808 = vld [vmem:[#allocation7 + $0x930] sm:$0xff]
    %v1809 = vld [vmem:[#allocation7 + $0x938] sm:$0xff]
    %v1810 = vld [vmem:[#allocation7 + $0x940] sm:$0xff]
    %v1811 = vld [vmem:[#allocation7 + $0x948] sm:$0xff]
    %v1812 = vld [vmem:[#allocation7 + $0x950] sm:$0xff]
    %v1813 = vld [vmem:[#allocation7 + $0x958] sm:$0xff]
    %v1814 = vld [vmem:[#allocation7 + $0x960] sm:$0xff]
    %v1815 = vld [vmem:[#allocation7 + $0x968] sm:$0xff]
    %v1816 = vld [vmem:[#allocation7 + $0x970] sm:$0xff]
    %v1817 = vld [vmem:[#allocation7 + $0x978] sm:$0xff]
    %v1818 = vld [vmem:[#allocation7 + $0x980] sm:$0xff]
    %v1819 = vld [vmem:[#allocation7 + $0x988] sm:$0xff]
    %v1820 = vld [vmem:[#allocation7 + $0x990] sm:$0xff]
    %v1821 = vld [vmem:[#allocation7 + $0x998] sm:$0xff]
    %v1822 = vld [vmem:[#allocation7 + $0x9a0] sm:$0xff]
    %v1823 = vld [vmem:[#allocation7 + $0x9a8] sm:$0xff]
    %v1824 = vld [vmem:[#allocation7 + $0x9b0] sm:$0xff]
    %v1825 = vld [vmem:[#allocation7 + $0x9b8] sm:$0xff]
    %v1826 = vld [vmem:[#allocation7 + $0x9c0] sm:$0xff]
    %v1827 = vld [vmem:[#allocation7 + $0x9c8] sm:$0xff]
    %v1828 = vld [vmem:[#allocation7 + $0x9d0] sm:$0xff]
    %v1829 = vld [vmem:[#allocation7 + $0x9d8] sm:$0xff]
    %v1830 = vld [vmem:[#allocation7 + $0x9e0] sm:$0xff]
    %v1831 = vld [vmem:[#allocation7 + $0x9e8] sm:$0xff]
    %v1832 = vld [vmem:[#allocation7 + $0x9f0] sm:$0xff]
    %v1833 = vld [vmem:[#allocation7 + $0x9f8] sm:$0xff]
    %v1834 = vld [vmem:[#allocation7 + $0xa00] sm:$0xff]
    %v1835 = vld [vmem:[#allocation7 + $0xa08] sm:$0xff]
    %v1836 = vld [vmem:[#allocation7 + $0xa10] sm:$0xff]
    %v1837 = vld [vmem:[#allocation7 + $0xa18] sm:$0xff]
    %v1838 = vld [vmem:[#allocation7 + $0xa20] sm:$0xff]
    %v1839 = vld [vmem:[#allocation7 + $0xa28] sm:$0xff]
    %v1840 = vld [vmem:[#allocation7 + $0xa30] sm:$0xff]
    %v1841 = vld [vmem:[#allocation7 + $0xa38] sm:$0xff]
    %v1842 = vld [vmem:[#allocation7 + $0xa40] sm:$0xff]
    %v1843 = vld [vmem:[#allocation7 + $0xa48] sm:$0xff]
    %v1844 = vld [vmem:[#allocation7 + $0xa50] sm:$0xff]
    %v1845 = vld [vmem:[#allocation7 + $0xa58] sm:$0xff]
    %v1846 = vld [vmem:[#allocation7 + $0xa60] sm:$0xff]
    %v1847 = vld [vmem:[#allocation7 + $0xa68] sm:$0xff]
    %v1848 = vld [vmem:[#allocation7 + $0xa70] sm:$0xff]
    %v1849 = vld [vmem:[#allocation7 + $0xa78] sm:$0xff]
    %v1850 = vld [vmem:[#allocation7 + $0xa80] sm:$0xff]
    %v1851 = vld [vmem:[#allocation7 + $0xa88] sm:$0xff]
    %v1852 = vld [vmem:[#allocation7 + $0xa90] sm:$0xff]
    %v1853 = vld [vmem:[#allocation7 + $0xa98] sm:$0xff]
    %v1854 = vld [vmem:[#allocation7 + $0xaa0] sm:$0xff]
    %v1855 = vld [vmem:[#allocation7 + $0xaa8] sm:$0xff]
    %v1856 = vld [vmem:[#allocation7 + $0xab0] sm:$0xff]
    %v1857 = vld [vmem:[#allocation7 + $0xab8] sm:$0xff]
    %v1858 = vld [vmem:[#allocation7 + $0xac0] sm:$0xff]
    %v1859 = vld [vmem:[#allocation7 + $0xac8] sm:$0xff]
    %v1860 = vld [vmem:[#allocation7 + $0xad0] sm:$0xff]
    %v1861 = vld [vmem:[#allocation7 + $0xad8] sm:$0xff]
    %v1862 = vld [vmem:[#allocation7 + $0xae0] sm:$0xff]
    %v1863 = vld [vmem:[#allocation7 + $0xae8] sm:$0xff]
    %v1864 = vld [vmem:[#allocation7 + $0xaf0] sm:$0xff]
    %v1865 = vld [vmem:[#allocation7 + $0xaf8] sm:$0xff]
    %v1866 = vld [vmem:[#allocation7 + $0xb00] sm:$0xff]
    %v1867 = vld [vmem:[#allocation7 + $0xb08] sm:$0xff]
    %v1868 = vld [vmem:[#allocation7 + $0xb10] sm:$0xff]
    %v1869 = vld [vmem:[#allocation7 + $0xb18] sm:$0xff]
    %v1870 = vld [vmem:[#allocation7 + $0xb20] sm:$0xff]
    %v1871 = vld [vmem:[#allocation7 + $0xb28] sm:$0xff]
    %v1872 = vld [vmem:[#allocation7 + $0xb30] sm:$0xff]
    %v1873 = vld [vmem:[#allocation7 + $0xb38] sm:$0xff]
    %v1874 = vld [vmem:[#allocation7 + $0xb40] sm:$0xff]
    %v1875 = vld [vmem:[#allocation7 + $0xb48] sm:$0xff]
    %v1876 = vld [vmem:[#allocation7 + $0xb50] sm:$0xff]
    %v1877 = vld [vmem:[#allocation7 + $0xb58] sm:$0xff]
    %v1878 = vld [vmem:[#allocation7 + $0xb60] sm:$0xff]
    %v1879 = vld [vmem:[#allocation7 + $0xb68] sm:$0xff]
    %v1880 = vld [vmem:[#allocation7 + $0xb70] sm:$0xff]
    %v1881 = vld [vmem:[#allocation7 + $0xb78] sm:$0xff]
    %v1882 = vld [vmem:[#allocation7 + $0xb80] sm:$0xff]
    %v1883 = vld [vmem:[#allocation7 + $0xb88] sm:$0xff]
    %v1884 = vld [vmem:[#allocation7 + $0xb90] sm:$0xff]
    %v1885 = vld [vmem:[#allocation7 + $0xb98] sm:$0xff]
    %v1886 = vld [vmem:[#allocation7 + $0xba0] sm:$0xff]
    %v1887 = vld [vmem:[#allocation7 + $0xba8] sm:$0xff]
    %v1888 = vld [vmem:[#allocation7 + $0xbb0] sm:$0xff]
    %v1889 = vld [vmem:[#allocation7 + $0xbb8] sm:$0xff]
    %v1890 = vld [vmem:[#allocation7 + $0xbc0] sm:$0xff]
    %v1891 = vld [vmem:[#allocation7 + $0xbc8] sm:$0xff]
    %v1892 = vld [vmem:[#allocation7 + $0xbd0] sm:$0xff]
    %v1893 = vld [vmem:[#allocation7 + $0xbd8] sm:$0xff]
    %v1894 = vld [vmem:[#allocation7 + $0xbe0] sm:$0xff]
    %v1895 = vld [vmem:[#allocation7 + $0xbe8] sm:$0xff]
    %v1896 = vld [vmem:[#allocation7 + $0xbf0] sm:$0xff]
    %v1897 = vld [vmem:[#allocation7 + $0xbf8] sm:$0xff]
    %v1898 = vpack.c.bf16 %v1638, %v1638
    %v1899 = vpack.c.bf16 %v1639, %v1639
    %v1900 = vpack.c.bf16 %v1640, %v1640
    %v1901 = vpack.c.bf16 %v1641, %v1641
    %s1902 = scalar_lea.vmem [#allocation8], 2
    %v1903 = vld [vmem:[%s1902] ss:$8 sm:$0xf]
    %v1905 = vlaneseq
    %v1906 = vshrl.u32 %v1905, 7
    %v1907 = vsub.s32 0, %v1906
    %v1908 = vrot.slane %v1903, %v1907
    %v1909 = vlaneseq
    %v1910 = vshrl.u32 %v1909, 7
    %v1911 = vsub.s32 1, %v1910
    %v1912 = vrot.slane %v1903, %v1911
    %v1913 = vlaneseq
    %v1914 = vshrl.u32 %v1913, 7
    %v1915 = vsub.s32 2, %v1914
    %v1916 = vrot.slane %v1903, %v1915
    %v1917 = vlaneseq
    %v1918 = vshrl.u32 %v1917, 7
    %v1919 = vsub.s32 3, %v1918
    %v1920 = vrot.slane %v1903, %v1919
    %v2053 = vunpack.c.l.b16 %v1642
    %v2054 = vunpack.c.h.b16 %v1642
    %v2055 = vunpack.c.l.b16 %v1643
    %v2056 = vunpack.c.h.b16 %v1643
    %v2057 = vunpack.c.l.b16 %v1644
    %v2058 = vunpack.c.h.b16 %v1644
    %v2059 = vunpack.c.l.b16 %v1645
    %v2060 = vunpack.c.h.b16 %v1645
    %v2061 = vunpack.c.l.b16 %v1646
    %v2062 = vunpack.c.h.b16 %v1646
    %v2063 = vunpack.c.l.b16 %v1647
    %v2064 = vunpack.c.h.b16 %v1647
    %v2065 = vunpack.c.l.b16 %v1648
    %v2066 = vunpack.c.h.b16 %v1648
    %v2067 = vunpack.c.l.b16 %v1649
    %v2068 = vunpack.c.h.b16 %v1649
    %v2069 = vunpack.c.l.b16 %v1650
    %v2070 = vunpack.c.h.b16 %v1650
    %v2071 = vunpack.c.l.b16 %v1651
    %v2072 = vunpack.c.h.b16 %v1651
    %v2073 = vunpack.c.l.b16 %v1652
    %v2074 = vunpack.c.h.b16 %v1652
    %v2075 = vunpack.c.l.b16 %v1653
    %v2076 = vunpack.c.h.b16 %v1653
    %v2077 = vunpack.c.l.b16 %v1654
    %v2078 = vunpack.c.h.b16 %v1654
    %v2079 = vunpack.c.l.b16 %v1655
    %v2080 = vunpack.c.h.b16 %v1655
    %v2081 = vunpack.c.l.b16 %v1656
    %v2082 = vunpack.c.h.b16 %v1656
    %v2083 = vunpack.c.l.b16 %v1657
    %v2084 = vunpack.c.h.b16 %v1657
    %v2085 = vunpack.c.l.b16 %v1658
    %v2086 = vunpack.c.h.b16 %v1658
    %v2087 = vunpack.c.l.b16 %v1659
    %v2088 = vunpack.c.h.b16 %v1659
    %v2089 = vunpack.c.l.b16 %v1660
    %v2090 = vunpack.c.h.b16 %v1660
    %v2091 = vunpack.c.l.b16 %v1661
    %v2092 = vunpack.c.h.b16 %v1661
    %v2093 = vunpack.c.l.b16 %v1662
    %v2094 = vunpack.c.h.b16 %v1662
    %v2095 = vunpack.c.l.b16 %v1663
    %v2096 = vunpack.c.h.b16 %v1663
    %v2097 = vunpack.c.l.b16 %v1664
    %v2098 = vunpack.c.h.b16 %v1664
    %v2099 = vunpack.c.l.b16 %v1665
    %v2100 = vunpack.c.h.b16 %v1665
    %v2101 = vunpack.c.l.b16 %v1666
    %v2102 = vunpack.c.h.b16 %v1666
    %v2103 = vunpack.c.l.b16 %v1667
    %v2104 = vunpack.c.h.b16 %v1667
    %v2105 = vunpack.c.l.b16 %v1668
    %v2106 = vunpack.c.h.b16 %v1668
    %v2107 = vunpack.c.l.b16 %v1669
    %v2108 = vunpack.c.h.b16 %v1669
    %v2109 = vunpack.c.l.b16 %v1670
    %v2110 = vunpack.c.h.b16 %v1670
    %v2111 = vunpack.c.l.b16 %v1671
    %v2112 = vunpack.c.h.b16 %v1671
    %v2113 = vunpack.c.l.b16 %v1672
    %v2114 = vunpack.c.h.b16 %v1672
    %v2115 = vunpack.c.l.b16 %v1673
    %v2116 = vunpack.c.h.b16 %v1673
    %v2117 = vunpack.c.l.b16 %v1674
    %v2118 = vunpack.c.h.b16 %v1674
    %v2119 = vunpack.c.l.b16 %v1675
    %v2120 = vunpack.c.h.b16 %v1675
    %v2121 = vunpack.c.l.b16 %v1676
    %v2122 = vunpack.c.h.b16 %v1676
    %v2123 = vunpack.c.l.b16 %v1677
    %v2124 = vunpack.c.h.b16 %v1677
    %v2125 = vunpack.c.l.b16 %v1678
    %v2126 = vunpack.c.h.b16 %v1678
    %v2127 = vunpack.c.l.b16 %v1679
    %v2128 = vunpack.c.h.b16 %v1679
    %v2129 = vunpack.c.l.b16 %v1680
    %v2130 = vunpack.c.h.b16 %v1680
    %v2131 = vunpack.c.l.b16 %v1681
    %v2132 = vunpack.c.h.b16 %v1681
    %v2133 = vunpack.c.l.b16 %v1682
    %v2134 = vunpack.c.h.b16 %v1682
    %v2135 = vunpack.c.l.b16 %v1683
    %v2136 = vunpack.c.h.b16 %v1683
    %v2137 = vunpack.c.l.b16 %v1684
    %v2138 = vunpack.c.h.b16 %v1684
    %v2139 = vunpack.c.l.b16 %v1685
    %v2140 = vunpack.c.h.b16 %v1685
    %v2141 = vunpack.c.l.b16 %v1686
    %v2142 = vunpack.c.h.b16 %v1686
    %v2143 = vunpack.c.l.b16 %v1687
    %v2144 = vunpack.c.h.b16 %v1687
    %v2145 = vunpack.c.l.b16 %v1688
    %v2146 = vunpack.c.h.b16 %v1688
    %v2147 = vunpack.c.l.b16 %v1689
    %v2148 = vunpack.c.h.b16 %v1689
    %v2149 = vunpack.c.l.b16 %v1690
    %v2150 = vunpack.c.h.b16 %v1690
    %v2151 = vunpack.c.l.b16 %v1691
    %v2152 = vunpack.c.h.b16 %v1691
    %v2153 = vunpack.c.l.b16 %v1692
    %v2154 = vunpack.c.h.b16 %v1692
    %v2155 = vunpack.c.l.b16 %v1693
    %v2156 = vunpack.c.h.b16 %v1693
    %v2157 = vunpack.c.l.b16 %v1694
    %v2158 = vunpack.c.h.b16 %v1694
    %v2159 = vunpack.c.l.b16 %v1695
    %v2160 = vunpack.c.h.b16 %v1695
    %v2161 = vunpack.c.l.b16 %v1696
    %v2162 = vunpack.c.h.b16 %v1696
    %v2163 = vunpack.c.l.b16 %v1697
    %v2164 = vunpack.c.h.b16 %v1697
    %v2165 = vunpack.c.l.b16 %v1698
    %v2166 = vunpack.c.h.b16 %v1698
    %v2167 = vunpack.c.l.b16 %v1699
    %v2168 = vunpack.c.h.b16 %v1699
    %v2169 = vunpack.c.l.b16 %v1700
    %v2170 = vunpack.c.h.b16 %v1700
    %v2171 = vunpack.c.l.b16 %v1701
    %v2172 = vunpack.c.h.b16 %v1701
    %v2173 = vunpack.c.l.b16 %v1702
    %v2174 = vunpack.c.h.b16 %v1702
    %v2175 = vunpack.c.l.b16 %v1703
    %v2176 = vunpack.c.h.b16 %v1703
    %v2177 = vunpack.c.l.b16 %v1704
    %v2178 = vunpack.c.h.b16 %v1704
    %v2179 = vunpack.c.l.b16 %v1705
    %v2180 = vunpack.c.h.b16 %v1705
    %v2181 = vunpack.c.l.b16 %v1706
    %v2182 = vunpack.c.h.b16 %v1706
    %v2183 = vunpack.c.l.b16 %v1707
    %v2184 = vunpack.c.h.b16 %v1707
    %v2185 = vunpack.c.l.b16 %v1708
    %v2186 = vunpack.c.h.b16 %v1708
    %v2187 = vunpack.c.l.b16 %v1709
    %v2188 = vunpack.c.h.b16 %v1709
    %v2189 = vunpack.c.l.b16 %v1710
    %v2190 = vunpack.c.h.b16 %v1710
    %v2191 = vunpack.c.l.b16 %v1711
    %v2192 = vunpack.c.h.b16 %v1711
    %v2193 = vunpack.c.l.b16 %v1712
    %v2194 = vunpack.c.h.b16 %v1712
    %v2195 = vunpack.c.l.b16 %v1713
    %v2196 = vunpack.c.h.b16 %v1713
    %v2197 = vunpack.c.l.b16 %v1714
    %v2198 = vunpack.c.h.b16 %v1714
    %v2199 = vunpack.c.l.b16 %v1715
    %v2200 = vunpack.c.h.b16 %v1715
    %v2201 = vunpack.c.l.b16 %v1716
    %v2202 = vunpack.c.h.b16 %v1716
    %v2203 = vunpack.c.l.b16 %v1717
    %v2204 = vunpack.c.h.b16 %v1717
    %v2205 = vunpack.c.l.b16 %v1718
    %v2206 = vunpack.c.h.b16 %v1718
    %v2207 = vunpack.c.l.b16 %v1719
    %v2208 = vunpack.c.h.b16 %v1719
    %v2209 = vunpack.c.l.b16 %v1720
    %v2210 = vunpack.c.h.b16 %v1720
    %v2211 = vunpack.c.l.b16 %v1721
    %v2212 = vunpack.c.h.b16 %v1721
    %v2213 = vunpack.c.l.b16 %v1722
    %v2214 = vunpack.c.h.b16 %v1722
    %v2215 = vunpack.c.l.b16 %v1723
    %v2216 = vunpack.c.h.b16 %v1723
    %v2217 = vunpack.c.l.b16 %v1724
    %v2218 = vunpack.c.h.b16 %v1724
    %v2219 = vunpack.c.l.b16 %v1725
    %v2220 = vunpack.c.h.b16 %v1725
    %v2221 = vunpack.c.l.b16 %v1726
    %v2222 = vunpack.c.h.b16 %v1726
    %v2223 = vunpack.c.l.b16 %v1727
    %v2224 = vunpack.c.h.b16 %v1727
    %v2225 = vunpack.c.l.b16 %v1728
    %v2226 = vunpack.c.h.b16 %v1728
    %v2227 = vunpack.c.l.b16 %v1729
    %v2228 = vunpack.c.h.b16 %v1729
    %v2229 = vunpack.c.l.b16 %v1730
    %v2230 = vunpack.c.h.b16 %v1730
    %v2231 = vunpack.c.l.b16 %v1731
    %v2232 = vunpack.c.h.b16 %v1731
    %v2233 = vunpack.c.l.b16 %v1732
    %v2234 = vunpack.c.h.b16 %v1732
    %v2235 = vunpack.c.l.b16 %v1733
    %v2236 = vunpack.c.h.b16 %v1733
    %v2237 = vunpack.c.l.b16 %v1734
    %v2238 = vunpack.c.h.b16 %v1734
    %v2239 = vunpack.c.l.b16 %v1735
    %v2240 = vunpack.c.h.b16 %v1735
    %v2241 = vunpack.c.l.b16 %v1736
    %v2242 = vunpack.c.h.b16 %v1736
    %v2243 = vunpack.c.l.b16 %v1737
    %v2244 = vunpack.c.h.b16 %v1737
    %v2245 = vunpack.c.l.b16 %v1738
    %v2246 = vunpack.c.h.b16 %v1738
    %v2247 = vunpack.c.l.b16 %v1739
    %v2248 = vunpack.c.h.b16 %v1739
    %v2249 = vunpack.c.l.b16 %v1740
    %v2250 = vunpack.c.h.b16 %v1740
    %v2251 = vunpack.c.l.b16 %v1741
    %v2252 = vunpack.c.h.b16 %v1741
    %v2253 = vunpack.c.l.b16 %v1742
    %v2254 = vunpack.c.h.b16 %v1742
    %v2255 = vunpack.c.l.b16 %v1743
    %v2256 = vunpack.c.h.b16 %v1743
    %v2257 = vunpack.c.l.b16 %v1744
    %v2258 = vunpack.c.h.b16 %v1744
    %v2259 = vunpack.c.l.b16 %v1745
    %v2260 = vunpack.c.h.b16 %v1745
    %v2261 = vunpack.c.l.b16 %v1746
    %v2262 = vunpack.c.h.b16 %v1746
    %v2263 = vunpack.c.l.b16 %v1747
    %v2264 = vunpack.c.h.b16 %v1747
    %v2265 = vunpack.c.l.b16 %v1748
    %v2266 = vunpack.c.h.b16 %v1748
    %v2267 = vunpack.c.l.b16 %v1749
    %v2268 = vunpack.c.h.b16 %v1749
    %v2269 = vunpack.c.l.b16 %v1750
    %v2270 = vunpack.c.h.b16 %v1750
    %v2271 = vunpack.c.l.b16 %v1751
    %v2272 = vunpack.c.h.b16 %v1751
    %v2273 = vunpack.c.l.b16 %v1752
    %v2274 = vunpack.c.h.b16 %v1752
    %v2275 = vunpack.c.l.b16 %v1753
    %v2276 = vunpack.c.h.b16 %v1753
    %v2277 = vunpack.c.l.b16 %v1754
    %v2278 = vunpack.c.h.b16 %v1754
    %v2279 = vunpack.c.l.b16 %v1755
    %v2280 = vunpack.c.h.b16 %v1755
    %v2281 = vunpack.c.l.b16 %v1756
    %v2282 = vunpack.c.h.b16 %v1756
    %v2283 = vunpack.c.l.b16 %v1757
    %v2284 = vunpack.c.h.b16 %v1757
    %v2285 = vunpack.c.l.b16 %v1758
    %v2286 = vunpack.c.h.b16 %v1758
    %v2287 = vunpack.c.l.b16 %v1759
    %v2288 = vunpack.c.h.b16 %v1759
    %v2289 = vunpack.c.l.b16 %v1760
    %v2290 = vunpack.c.h.b16 %v1760
    %v2291 = vunpack.c.l.b16 %v1761
    %v2292 = vunpack.c.h.b16 %v1761
    %v2293 = vunpack.c.l.b16 %v1762
    %v2294 = vunpack.c.h.b16 %v1762
    %v2295 = vunpack.c.l.b16 %v1763
    %v2296 = vunpack.c.h.b16 %v1763
    %v2297 = vunpack.c.l.b16 %v1764
    %v2298 = vunpack.c.h.b16 %v1764
    %v2299 = vunpack.c.l.b16 %v1765
    %v2300 = vunpack.c.h.b16 %v1765
    %v2301 = vunpack.c.l.b16 %v1766
    %v2302 = vunpack.c.h.b16 %v1766
    %v2303 = vunpack.c.l.b16 %v1767
    %v2304 = vunpack.c.h.b16 %v1767
    %v2305 = vunpack.c.l.b16 %v1768
    %v2306 = vunpack.c.h.b16 %v1768
    %v2307 = vunpack.c.l.b16 %v1769
    %v2308 = vunpack.c.h.b16 %v1769
    %v2309 = vpack.c.b16 %v2057, %v2053
    %v2310 = vpack.c.b16 %v2058, %v2054
    %v2311 = vpack.c.b16 %v2059, %v2055
    %v2312 = vpack.c.b16 %v2060, %v2056
    %v2313 = vpack.c.b16 %v2065, %v2061
    %v2314 = vpack.c.b16 %v2066, %v2062
    %v2315 = vpack.c.b16 %v2067, %v2063
    %v2316 = vpack.c.b16 %v2068, %v2064
    %v2317 = vpack.c.b16 %v2073, %v2069
    %v2318 = vpack.c.b16 %v2074, %v2070
    %v2319 = vpack.c.b16 %v2075, %v2071
    %v2320 = vpack.c.b16 %v2076, %v2072
    %v2321 = vpack.c.b16 %v2081, %v2077
    %v2322 = vpack.c.b16 %v2082, %v2078
    %v2323 = vpack.c.b16 %v2083, %v2079
    %v2324 = vpack.c.b16 %v2084, %v2080
    %v2325 = vpack.c.b16 %v2089, %v2085
    %v2326 = vpack.c.b16 %v2090, %v2086
    %v2327 = vpack.c.b16 %v2091, %v2087
    %v2328 = vpack.c.b16 %v2092, %v2088
    %v2329 = vpack.c.b16 %v2097, %v2093
    %v2330 = vpack.c.b16 %v2098, %v2094
    %v2331 = vpack.c.b16 %v2099, %v2095
    %v2332 = vpack.c.b16 %v2100, %v2096
    %v2333 = vpack.c.b16 %v2105, %v2101
    %v2334 = vpack.c.b16 %v2106, %v2102
    %v2335 = vpack.c.b16 %v2107, %v2103
    %v2336 = vpack.c.b16 %v2108, %v2104
    %v2337 = vpack.c.b16 %v2113, %v2109
    %v2338 = vpack.c.b16 %v2114, %v2110
    %v2339 = vpack.c.b16 %v2115, %v2111
    %v2340 = vpack.c.b16 %v2116, %v2112
    %v2341 = vpack.c.b16 %v2121, %v2117
    %v2342 = vpack.c.b16 %v2122, %v2118
    %v2343 = vpack.c.b16 %v2123, %v2119
    %v2344 = vpack.c.b16 %v2124, %v2120
    %v2345 = vpack.c.b16 %v2129, %v2125
    %v2346 = vpack.c.b16 %v2130, %v2126
    %v2347 = vpack.c.b16 %v2131, %v2127
    %v2348 = vpack.c.b16 %v2132, %v2128
    %v2349 = vpack.c.b16 %v2137, %v2133
    %v2350 = vpack.c.b16 %v2138, %v2134
    %v2351 = vpack.c.b16 %v2139, %v2135
    %v2352 = vpack.c.b16 %v2140, %v2136
    %v2353 = vpack.c.b16 %v2145, %v2141
    %v2354 = vpack.c.b16 %v2146, %v2142
    %v2355 = vpack.c.b16 %v2147, %v2143
    %v2356 = vpack.c.b16 %v2148, %v2144
    %v2357 = vpack.c.b16 %v2153, %v2149
    %v2358 = vpack.c.b16 %v2154, %v2150
    %v2359 = vpack.c.b16 %v2155, %v2151
    %v2360 = vpack.c.b16 %v2156, %v2152
    %v2361 = vpack.c.b16 %v2161, %v2157
    %v2362 = vpack.c.b16 %v2162, %v2158
    %v2363 = vpack.c.b16 %v2163, %v2159
    %v2364 = vpack.c.b16 %v2164, %v2160
    %v2365 = vpack.c.b16 %v2169, %v2165
    %v2366 = vpack.c.b16 %v2170, %v2166
    %v2367 = vpack.c.b16 %v2171, %v2167
    %v2368 = vpack.c.b16 %v2172, %v2168
    %v2369 = vpack.c.b16 %v2177, %v2173
    %v2370 = vpack.c.b16 %v2178, %v2174
    %v2371 = vpack.c.b16 %v2179, %v2175
    %v2372 = vpack.c.b16 %v2180, %v2176
    %v2373 = vpack.c.b16 %v2185, %v2181
    %v2374 = vpack.c.b16 %v2186, %v2182
    %v2375 = vpack.c.b16 %v2187, %v2183
    %v2376 = vpack.c.b16 %v2188, %v2184
    %v2377 = vpack.c.b16 %v2193, %v2189
    %v2378 = vpack.c.b16 %v2194, %v2190
    %v2379 = vpack.c.b16 %v2195, %v2191
    %v2380 = vpack.c.b16 %v2196, %v2192
    %v2381 = vpack.c.b16 %v2201, %v2197
    %v2382 = vpack.c.b16 %v2202, %v2198
    %v2383 = vpack.c.b16 %v2203, %v2199
    %v2384 = vpack.c.b16 %v2204, %v2200
    %v2385 = vpack.c.b16 %v2209, %v2205
    %v2386 = vpack.c.b16 %v2210, %v2206
    %v2387 = vpack.c.b16 %v2211, %v2207
    %v2388 = vpack.c.b16 %v2212, %v2208
    %v2389 = vpack.c.b16 %v2217, %v2213
    %v2390 = vpack.c.b16 %v2218, %v2214
    %v2391 = vpack.c.b16 %v2219, %v2215
    %v2392 = vpack.c.b16 %v2220, %v2216
    %v2393 = vpack.c.b16 %v2225, %v2221
    %v2394 = vpack.c.b16 %v2226, %v2222
    %v2395 = vpack.c.b16 %v2227, %v2223
    %v2396 = vpack.c.b16 %v2228, %v2224
    %v2397 = vpack.c.b16 %v2233, %v2229
    %v2398 = vpack.c.b16 %v2234, %v2230
    %v2399 = vpack.c.b16 %v2235, %v2231
    %v2400 = vpack.c.b16 %v2236, %v2232
    %v2401 = vpack.c.b16 %v2241, %v2237
    %v2402 = vpack.c.b16 %v2242, %v2238
    %v2403 = vpack.c.b16 %v2243, %v2239
    %v2404 = vpack.c.b16 %v2244, %v2240
    %v2405 = vpack.c.b16 %v2249, %v2245
    %v2406 = vpack.c.b16 %v2250, %v2246
    %v2407 = vpack.c.b16 %v2251, %v2247
    %v2408 = vpack.c.b16 %v2252, %v2248
    %v2409 = vpack.c.b16 %v2257, %v2253
    %v2410 = vpack.c.b16 %v2258, %v2254
    %v2411 = vpack.c.b16 %v2259, %v2255
    %v2412 = vpack.c.b16 %v2260, %v2256
    %v2413 = vpack.c.b16 %v2265, %v2261
    %v2414 = vpack.c.b16 %v2266, %v2262
    %v2415 = vpack.c.b16 %v2267, %v2263
    %v2416 = vpack.c.b16 %v2268, %v2264
    %v2417 = vpack.c.b16 %v2273, %v2269
    %v2418 = vpack.c.b16 %v2274, %v2270
    %v2419 = vpack.c.b16 %v2275, %v2271
    %v2420 = vpack.c.b16 %v2276, %v2272
    %v2421 = vpack.c.b16 %v2281, %v2277
    %v2422 = vpack.c.b16 %v2282, %v2278
    %v2423 = vpack.c.b16 %v2283, %v2279
    %v2424 = vpack.c.b16 %v2284, %v2280
    %v2425 = vpack.c.b16 %v2289, %v2285
    %v2426 = vpack.c.b16 %v2290, %v2286
    %v2427 = vpack.c.b16 %v2291, %v2287
    %v2428 = vpack.c.b16 %v2292, %v2288
    %v2429 = vpack.c.b16 %v2297, %v2293
    %v2430 = vpack.c.b16 %v2298, %v2294
    %v2431 = vpack.c.b16 %v2299, %v2295
    %v2432 = vpack.c.b16 %v2300, %v2296
    %v2433 = vpack.c.b16 %v2305, %v2301
    %v2434 = vpack.c.b16 %v2306, %v2302
    %v2435 = vpack.c.b16 %v2307, %v2303
    %v2436 = vpack.c.b16 %v2308, %v2304
    %2565 = vmatprep.subr.bf16.mxu0 %v2310
    %2566 = vmatpush1.bf16.msra.mxu0 %v2309
    %2567 = vmatprep.subr.bf16.mxu0 %v2314
    %2568 = vmatpush1.bf16.msra.mxu0 %v2313
    %2569 = vmatprep.subr.bf16.mxu0 %v2318
    %2570 = vmatpush1.bf16.msra.mxu0 %v2317
    %2571 = vmatprep.subr.bf16.mxu0 %v2322
    %2572 = vmatpush1.bf16.msra.mxu0 %v2321
    %2573 = vmatprep.subr.bf16.mxu0 %v2326
    %2574 = vmatpush1.bf16.msra.mxu0 %v2325
    %2575 = vmatprep.subr.bf16.mxu0 %v2330
    %2576 = vmatpush1.bf16.msra.mxu0 %v2329
    %2577 = vmatprep.subr.bf16.mxu0 %v2334
    %2578 = vmatpush1.bf16.msra.mxu0 %v2333
    %2579 = vmatprep.subr.bf16.mxu0 %v2338
    %2580 = vmatpush1.bf16.msra.mxu0 %v2337
    %2581 = vmatprep.subr.bf16.mxu0 %v2342
    %2582 = vmatpush1.bf16.msra.mxu0 %v2341
    %2583 = vmatprep.subr.bf16.mxu0 %v2346
    %2584 = vmatpush1.bf16.msra.mxu0 %v2345
    %2585 = vmatprep.subr.bf16.mxu0 %v2350
    %2586 = vmatpush1.bf16.msra.mxu0 %v2349
    %2587 = vmatprep.subr.bf16.mxu0 %v2354
    %2588 = vmatpush1.bf16.msra.mxu0 %v2353
    %2589 = vmatprep.subr.bf16.mxu0 %v2358
    %2590 = vmatpush1.bf16.msra.mxu0 %v2357
    %2591 = vmatprep.subr.bf16.mxu0 %v2362
    %2592 = vmatpush1.bf16.msra.mxu0 %v2361
    %2593 = vmatprep.subr.bf16.mxu0 %v2366
    %2594 = vmatpush1.bf16.msra.mxu0 %v2365
    %2595 = vmatprep.subr.bf16.mxu0 %v2370
    %2596 = vmatpush1.bf16.msra.mxu0 %v2369
    %2597 = vmatprep.mubr.bf16.mxu0 %v1899
    %2598 = vmatmul.mubr.bf16.gmra.mrb[0].mxu0 %v1898
    %v2599 = vpop.f32.mrb[0].mxu0
    %v2600 = vadd.f32 %v1908, %v2599
    %v2601 = vpop.f32.mrb[0].mxu0
    %v2602 = vadd.f32 %v1912, %v2601
    %v2603 = vpop.f32.mrb[0].mxu0
    %v2604 = vpop.f32.mrb[0].mxu0
    %2605 = vdwg.mxu0
    %2606 = vmatprep.subr.bf16.mxu0 %v2374
    %2607 = vmatpush1.bf16.msra.mxu0 %v2373
    %2608 = vmatprep.subr.bf16.mxu0 %v2378
    %2609 = vmatpush1.bf16.msra.mxu0 %v2377
    %2610 = vmatprep.subr.bf16.mxu0 %v2382
    %2611 = vmatpush1.bf16.msra.mxu0 %v2381
    %2612 = vmatprep.subr.bf16.mxu0 %v2386
    %2613 = vmatpush1.bf16.msra.mxu0 %v2385
    %2614 = vmatprep.subr.bf16.mxu0 %v2390
    %2615 = vmatpush1.bf16.msra.mxu0 %v2389
    %2616 = vmatprep.subr.bf16.mxu0 %v2394
    %2617 = vmatpush1.bf16.msra.mxu0 %v2393
    %2618 = vmatprep.subr.bf16.mxu0 %v2398
    %2619 = vmatpush1.bf16.msra.mxu0 %v2397
    %2620 = vmatprep.subr.bf16.mxu0 %v2402
    %2621 = vmatpush1.bf16.msra.mxu0 %v2401
    %2622 = vmatprep.subr.bf16.mxu0 %v2406
    %2623 = vmatpush1.bf16.msra.mxu0 %v2405
    %2624 = vmatprep.subr.bf16.mxu0 %v2410
    %2625 = vmatpush1.bf16.msra.mxu0 %v2409
    %2626 = vmatprep.subr.bf16.mxu0 %v2414
    %2627 = vmatpush1.bf16.msra.mxu0 %v2413
    %2628 = vmatprep.subr.bf16.mxu0 %v2418
    %2629 = vmatpush1.bf16.msra.mxu0 %v2417
    %2630 = vmatprep.subr.bf16.mxu0 %v2422
    %2631 = vmatpush1.bf16.msra.mxu0 %v2421
    %2632 = vmatprep.subr.bf16.mxu0 %v2426
    %2633 = vmatpush1.bf16.msra.mxu0 %v2425
    %2634 = vmatprep.subr.bf16.mxu0 %v2430
    %2635 = vmatpush1.bf16.msra.mxu0 %v2429
    %2636 = vmatprep.subr.bf16.mxu0 %v2434
    %2637 = vmatpush1.bf16.msra.mxu0 %v2433
    %2638 = vmatprep.mubr.bf16.mxu0 %v1901
    %2639 = vmatmul.mubr.bf16.gmra.mrb[0].mxu0 %v1900
    %v2640 = vpop.f32.mrb[0].mxu0
    %v2641 = vadd.f32 %v2600, %v2640
    %v2642 = vpop.f32.mrb[0].mxu0
    %v2643 = vadd.f32 %v2602, %v2642
    %v2644 = vpop.f32.mrb[0].mxu0
    %v2645 = vpop.f32.mrb[0].mxu0
    %2646 = vdwg.mxu0
    %2647 = vmatprep.subr.bf16.mxu0 %v2312
    %2648 = vmatpush1.bf16.msra.mxu0 %v2311
    %2649 = vmatprep.subr.bf16.mxu0 %v2316
    %2650 = vmatpush1.bf16.msra.mxu0 %v2315
    %2651 = vmatprep.subr.bf16.mxu0 %v2320
    %2652 = vmatpush1.bf16.msra.mxu0 %v2319
    %2653 = vmatprep.subr.bf16.mxu0 %v2324
    %2654 = vmatpush1.bf16.msra.mxu0 %v2323
    %2655 = vmatprep.subr.bf16.mxu0 %v2328
    %2656 = vmatpush1.bf16.msra.mxu0 %v2327
    %2657 = vmatprep.subr.bf16.mxu0 %v2332
    %2658 = vmatpush1.bf16.msra.mxu0 %v2331
    %2659 = vmatprep.subr.bf16.mxu0 %v2336
    %2660 = vmatpush1.bf16.msra.mxu0 %v2335
    %2661 = vmatprep.subr.bf16.mxu0 %v2340
    %2662 = vmatpush1.bf16.msra.mxu0 %v2339
    %2663 = vmatprep.subr.bf16.mxu0 %v2344
    %2664 = vmatpush1.bf16.msra.mxu0 %v2343
    %2665 = vmatprep.subr.bf16.mxu0 %v2348
    %2666 = vmatpush1.bf16.msra.mxu0 %v2347
    %2667 = vmatprep.subr.bf16.mxu0 %v2352
    %2668 = vmatpush1.bf16.msra.mxu0 %v2351
    %2669 = vmatprep.subr.bf16.mxu0 %v2356
    %2670 = vmatpush1.bf16.msra.mxu0 %v2355
    %2671 = vmatprep.subr.bf16.mxu0 %v2360
    %2672 = vmatpush1.bf16.msra.mxu0 %v2359
    %2673 = vmatprep.subr.bf16.mxu0 %v2364
    %2674 = vmatpush1.bf16.msra.mxu0 %v2363
    %2675 = vmatprep.subr.bf16.mxu0 %v2368
    %2676 = vmatpush1.bf16.msra.mxu0 %v2367
    %2677 = vmatprep.subr.bf16.mxu0 %v2372
    %2678 = vmatpush1.bf16.msra.mxu0 %v2371
    %2679 = vmatprep.mubr.bf16.mxu0 %v1899
    %2680 = vmatmul.mubr.bf16.gmra.mrb[0].mxu0 %v1898
    %v2681 = vpop.f32.mrb[0].mxu0
    %v2682 = vadd.f32 %v1916, %v2681
    %v2683 = vpop.f32.mrb[0].mxu0
    %v2684 = vadd.f32 %v1920, %v2683
    %v2685 = vpop.f32.mrb[0].mxu0
    %v2686 = vpop.f32.mrb[0].mxu0
    %2687 = vdwg.mxu0
    %2688 = vmatprep.subr.bf16.mxu0 %v2376
    %2689 = vmatpush1.bf16.msra.mxu0 %v2375
    %2690 = vmatprep.subr.bf16.mxu0 %v2380
    %2691 = vmatpush1.bf16.msra.mxu0 %v2379
    %2692 = vmatprep.subr.bf16.mxu0 %v2384
    %2693 = vmatpush1.bf16.msra.mxu0 %v2383
    %2694 = vmatprep.subr.bf16.mxu0 %v2388
    %2695 = vmatpush1.bf16.msra.mxu0 %v2387
    %2696 = vmatprep.subr.bf16.mxu0 %v2392
    %2697 = vmatpush1.bf16.msra.mxu0 %v2391
    %2698 = vmatprep.subr.bf16.mxu0 %v2396
    %2699 = vmatpush1.bf16.msra.mxu0 %v2395
    %2700 = vmatprep.subr.bf16.mxu0 %v2400
    %2701 = vmatpush1.bf16.msra.mxu0 %v2399
    %2702 = vmatprep.subr.bf16.mxu0 %v2404
    %2703 = vmatpush1.bf16.msra.mxu0 %v2403
    %2704 = vmatprep.subr.bf16.mxu0 %v2408
    %2705 = vmatpush1.bf16.msra.mxu0 %v2407
    %2706 = vmatprep.subr.bf16.mxu0 %v2412
    %2707 = vmatpush1.bf16.msra.mxu0 %v2411
    %2708 = vmatprep.subr.bf16.mxu0 %v2416
    %2709 = vmatpush1.bf16.msra.mxu0 %v2415
    %2710 = vmatprep.subr.bf16.mxu0 %v2420
    %2711 = vmatpush1.bf16.msra.mxu0 %v2419
    %2712 = vmatprep.subr.bf16.mxu0 %v2424
    %2713 = vmatpush1.bf16.msra.mxu0 %v2423
    %2714 = vmatprep.subr.bf16.mxu0 %v2428
    %2715 = vmatpush1.bf16.msra.mxu0 %v2427
    %2716 = vmatprep.subr.bf16.mxu0 %v2432
    %2717 = vmatpush1.bf16.msra.mxu0 %v2431
    %2718 = vmatprep.subr.bf16.mxu0 %v2436
    %2719 = vmatpush1.bf16.msra.mxu0 %v2435
    %2720 = vmatprep.mubr.bf16.mxu0 %v1901
    %2721 = vmatmul.mubr.bf16.gmra.mrb[0].mxu0 %v1900
    %v2722 = vpop.f32.mrb[0].mxu0
    %v2723 = vadd.f32 %v2682, %v2722
    %v2724 = vpop.f32.mrb[0].mxu0
    %v2725 = vadd.f32 %v2684, %v2724
    %v2726 = vpop.f32.mrb[0].mxu0
    %v2727 = vpop.f32.mrb[0].mxu0
    %2728 = vdwg.mxu0
    %v2729 = vmax.f32 %v2641, 0.0
    %v2730 = vmax.f32 %v2643, 0.0
    %v2731 = vmax.f32 %v2723, 0.0
    %v2732 = vmax.f32 %v2725, 0.0
    %v2733 = vpack.c.bf16 %v2729, %v2729
    %v2734 = vpack.c.bf16 %v2730, %v2730
    %v2735 = vpack.c.bf16 %v2731, %v2731
    %v2736 = vpack.c.bf16 %v2732, %v2732
    %s2737 = scalar_lea.vmem [#allocation8], 3
    %v2738 = vld [vmem:[%s2737] ss:$8 sm:$0xf]
    %v2740 = vlaneseq
    %v2741 = vshrl.u32 %v2740, 7
    %v2742 = vsub.s32 0, %v2741
    %v2743 = vrot.slane %v2738, %v2742
    %v2744 = vlaneseq
    %v2745 = vshrl.u32 %v2744, 7
    %v2746 = vsub.s32 1, %v2745
    %v2747 = vrot.slane %v2738, %v2746
    %v2748 = vlaneseq
    %v2749 = vshrl.u32 %v2748, 7
    %v2750 = vsub.s32 2, %v2749
    %v2751 = vrot.slane %v2738, %v2750
    %v2752 = vlaneseq
    %v2753 = vshrl.u32 %v2752, 7
    %v2754 = vsub.s32 3, %v2753
    %v2755 = vrot.slane %v2738, %v2754
    %v2888 = vunpack.c.l.b16 %v1770
    %v2889 = vunpack.c.h.b16 %v1770
    %v2890 = vunpack.c.l.b16 %v1771
    %v2891 = vunpack.c.h.b16 %v1771
    %v2892 = vunpack.c.l.b16 %v1772
    %v2893 = vunpack.c.h.b16 %v1772
    %v2894 = vunpack.c.l.b16 %v1773
    %v2895 = vunpack.c.h.b16 %v1773
    %v2896 = vunpack.c.l.b16 %v1774
    %v2897 = vunpack.c.h.b16 %v1774
    %v2898 = vunpack.c.l.b16 %v1775
    %v2899 = vunpack.c.h.b16 %v1775
    %v2900 = vunpack.c.l.b16 %v1776
    %v2901 = vunpack.c.h.b16 %v1776
    %v2902 = vunpack.c.l.b16 %v1777
    %v2903 = vunpack.c.h.b16 %v1777
    %v2904 = vunpack.c.l.b16 %v1778
    %v2905 = vunpack.c.h.b16 %v1778
    %v2906 = vunpack.c.l.b16 %v1779
    %v2907 = vunpack.c.h.b16 %v1779
    %v2908 = vunpack.c.l.b16 %v1780
    %v2909 = vunpack.c.h.b16 %v1780
    %v2910 = vunpack.c.l.b16 %v1781
    %v2911 = vunpack.c.h.b16 %v1781
    %v2912 = vunpack.c.l.b16 %v1782
    %v2913 = vunpack.c.h.b16 %v1782
    %v2914 = vunpack.c.l.b16 %v1783
    %v2915 = vunpack.c.h.b16 %v1783
    %v2916 = vunpack.c.l.b16 %v1784
    %v2917 = vunpack.c.h.b16 %v1784
    %v2918 = vunpack.c.l.b16 %v1785
    %v2919 = vunpack.c.h.b16 %v1785
    %v2920 = vunpack.c.l.b16 %v1786
    %v2921 = vunpack.c.h.b16 %v1786
    %v2922 = vunpack.c.l.b16 %v1787
    %v2923 = vunpack.c.h.b16 %v1787
    %v2924 = vunpack.c.l.b16 %v1788
    %v2925 = vunpack.c.h.b16 %v1788
    %v2926 = vunpack.c.l.b16 %v1789
    %v2927 = vunpack.c.h.b16 %v1789
    %v2928 = vunpack.c.l.b16 %v1790
    %v2929 = vunpack.c.h.b16 %v1790
    %v2930 = vunpack.c.l.b16 %v1791
    %v2931 = vunpack.c.h.b16 %v1791
    %v2932 = vunpack.c.l.b16 %v1792
    %v2933 = vunpack.c.h.b16 %v1792
    %v2934 = vunpack.c.l.b16 %v1793
    %v2935 = vunpack.c.h.b16 %v1793
    %v2936 = vunpack.c.l.b16 %v1794
    %v2937 = vunpack.c.h.b16 %v1794
    %v2938 = vunpack.c.l.b16 %v1795
    %v2939 = vunpack.c.h.b16 %v1795
    %v2940 = vunpack.c.l.b16 %v1796
    %v2941 = vunpack.c.h.b16 %v1796
    %v2942 = vunpack.c.l.b16 %v1797
    %v2943 = vunpack.c.h.b16 %v1797
    %v2944 = vunpack.c.l.b16 %v1798
    %v2945 = vunpack.c.h.b16 %v1798
    %v2946 = vunpack.c.l.b16 %v1799
    %v2947 = vunpack.c.h.b16 %v1799
    %v2948 = vunpack.c.l.b16 %v1800
    %v2949 = vunpack.c.h.b16 %v1800
    %v2950 = vunpack.c.l.b16 %v1801
    %v2951 = vunpack.c.h.b16 %v1801
    %v2952 = vunpack.c.l.b16 %v1802
    %v2953 = vunpack.c.h.b16 %v1802
    %v2954 = vunpack.c.l.b16 %v1803
    %v2955 = vunpack.c.h.b16 %v1803
    %v2956 = vunpack.c.l.b16 %v1804
    %v2957 = vunpack.c.h.b16 %v1804
    %v2958 = vunpack.c.l.b16 %v1805
    %v2959 = vunpack.c.h.b16 %v1805
    %v2960 = vunpack.c.l.b16 %v1806
    %v2961 = vunpack.c.h.b16 %v1806
    %v2962 = vunpack.c.l.b16 %v1807
    %v2963 = vunpack.c.h.b16 %v1807
    %v2964 = vunpack.c.l.b16 %v1808
    %v2965 = vunpack.c.h.b16 %v1808
    %v2966 = vunpack.c.l.b16 %v1809
    %v2967 = vunpack.c.h.b16 %v1809
    %v2968 = vunpack.c.l.b16 %v1810
    %v2969 = vunpack.c.h.b16 %v1810
    %v2970 = vunpack.c.l.b16 %v1811
    %v2971 = vunpack.c.h.b16 %v1811
    %v2972 = vunpack.c.l.b16 %v1812
    %v2973 = vunpack.c.h.b16 %v1812
    %v2974 = vunpack.c.l.b16 %v1813
    %v2975 = vunpack.c.h.b16 %v1813
    %v2976 = vunpack.c.l.b16 %v1814
    %v2977 = vunpack.c.h.b16 %v1814
    %v2978 = vunpack.c.l.b16 %v1815
    %v2979 = vunpack.c.h.b16 %v1815
    %v2980 = vunpack.c.l.b16 %v1816
    %v2981 = vunpack.c.h.b16 %v1816
    %v2982 = vunpack.c.l.b16 %v1817
    %v2983 = vunpack.c.h.b16 %v1817
    %v2984 = vunpack.c.l.b16 %v1818
    %v2985 = vunpack.c.h.b16 %v1818
    %v2986 = vunpack.c.l.b16 %v1819
    %v2987 = vunpack.c.h.b16 %v1819
    %v2988 = vunpack.c.l.b16 %v1820
    %v2989 = vunpack.c.h.b16 %v1820
    %v2990 = vunpack.c.l.b16 %v1821
    %v2991 = vunpack.c.h.b16 %v1821
    %v2992 = vunpack.c.l.b16 %v1822
    %v2993 = vunpack.c.h.b16 %v1822
    %v2994 = vunpack.c.l.b16 %v1823
    %v2995 = vunpack.c.h.b16 %v1823
    %v2996 = vunpack.c.l.b16 %v1824
    %v2997 = vunpack.c.h.b16 %v1824
    %v2998 = vunpack.c.l.b16 %v1825
    %v2999 = vunpack.c.h.b16 %v1825
    %v3000 = vunpack.c.l.b16 %v1826
    %v3001 = vunpack.c.h.b16 %v1826
    %v3002 = vunpack.c.l.b16 %v1827
    %v3003 = vunpack.c.h.b16 %v1827
    %v3004 = vunpack.c.l.b16 %v1828
    %v3005 = vunpack.c.h.b16 %v1828
    %v3006 = vunpack.c.l.b16 %v1829
    %v3007 = vunpack.c.h.b16 %v1829
    %v3008 = vunpack.c.l.b16 %v1830
    %v3009 = vunpack.c.h.b16 %v1830
    %v3010 = vunpack.c.l.b16 %v1831
    %v3011 = vunpack.c.h.b16 %v1831
    %v3012 = vunpack.c.l.b16 %v1832
    %v3013 = vunpack.c.h.b16 %v1832
    %v3014 = vunpack.c.l.b16 %v1833
    %v3015 = vunpack.c.h.b16 %v1833
    %v3016 = vunpack.c.l.b16 %v1834
    %v3017 = vunpack.c.h.b16 %v1834
    %v3018 = vunpack.c.l.b16 %v1835
    %v3019 = vunpack.c.h.b16 %v1835
    %v3020 = vunpack.c.l.b16 %v1836
    %v3021 = vunpack.c.h.b16 %v1836
    %v3022 = vunpack.c.l.b16 %v1837
    %v3023 = vunpack.c.h.b16 %v1837
    %v3024 = vunpack.c.l.b16 %v1838
    %v3025 = vunpack.c.h.b16 %v1838
    %v3026 = vunpack.c.l.b16 %v1839
    %v3027 = vunpack.c.h.b16 %v1839
    %v3028 = vunpack.c.l.b16 %v1840
    %v3029 = vunpack.c.h.b16 %v1840
    %v3030 = vunpack.c.l.b16 %v1841
    %v3031 = vunpack.c.h.b16 %v1841
    %v3032 = vunpack.c.l.b16 %v1842
    %v3033 = vunpack.c.h.b16 %v1842
    %v3034 = vunpack.c.l.b16 %v1843
    %v3035 = vunpack.c.h.b16 %v1843
    %v3036 = vunpack.c.l.b16 %v1844
    %v3037 = vunpack.c.h.b16 %v1844
    %v3038 = vunpack.c.l.b16 %v1845
    %v3039 = vunpack.c.h.b16 %v1845
    %v3040 = vunpack.c.l.b16 %v1846
    %v3041 = vunpack.c.h.b16 %v1846
    %v3042 = vunpack.c.l.b16 %v1847
    %v3043 = vunpack.c.h.b16 %v1847
    %v3044 = vunpack.c.l.b16 %v1848
    %v3045 = vunpack.c.h.b16 %v1848
    %v3046 = vunpack.c.l.b16 %v1849
    %v3047 = vunpack.c.h.b16 %v1849
    %v3048 = vunpack.c.l.b16 %v1850
    %v3049 = vunpack.c.h.b16 %v1850
    %v3050 = vunpack.c.l.b16 %v1851
    %v3051 = vunpack.c.h.b16 %v1851
    %v3052 = vunpack.c.l.b16 %v1852
    %v3053 = vunpack.c.h.b16 %v1852
    %v3054 = vunpack.c.l.b16 %v1853
    %v3055 = vunpack.c.h.b16 %v1853
    %v3056 = vunpack.c.l.b16 %v1854
    %v3057 = vunpack.c.h.b16 %v1854
    %v3058 = vunpack.c.l.b16 %v1855
    %v3059 = vunpack.c.h.b16 %v1855
    %v3060 = vunpack.c.l.b16 %v1856
    %v3061 = vunpack.c.h.b16 %v1856
    %v3062 = vunpack.c.l.b16 %v1857
    %v3063 = vunpack.c.h.b16 %v1857
    %v3064 = vunpack.c.l.b16 %v1858
    %v3065 = vunpack.c.h.b16 %v1858
    %v3066 = vunpack.c.l.b16 %v1859
    %v3067 = vunpack.c.h.b16 %v1859
    %v3068 = vunpack.c.l.b16 %v1860
    %v3069 = vunpack.c.h.b16 %v1860
    %v3070 = vunpack.c.l.b16 %v1861
    %v3071 = vunpack.c.h.b16 %v1861
    %v3072 = vunpack.c.l.b16 %v1862
    %v3073 = vunpack.c.h.b16 %v1862
    %v3074 = vunpack.c.l.b16 %v1863
    %v3075 = vunpack.c.h.b16 %v1863
    %v3076 = vunpack.c.l.b16 %v1864
    %v3077 = vunpack.c.h.b16 %v1864
    %v3078 = vunpack.c.l.b16 %v1865
    %v3079 = vunpack.c.h.b16 %v1865
    %v3080 = vunpack.c.l.b16 %v1866
    %v3081 = vunpack.c.h.b16 %v1866
    %v3082 = vunpack.c.l.b16 %v1867
    %v3083 = vunpack.c.h.b16 %v1867
    %v3084 = vunpack.c.l.b16 %v1868
    %v3085 = vunpack.c.h.b16 %v1868
    %v3086 = vunpack.c.l.b16 %v1869
    %v3087 = vunpack.c.h.b16 %v1869
    %v3088 = vunpack.c.l.b16 %v1870
    %v3089 = vunpack.c.h.b16 %v1870
    %v3090 = vunpack.c.l.b16 %v1871
    %v3091 = vunpack.c.h.b16 %v1871
    %v3092 = vunpack.c.l.b16 %v1872
    %v3093 = vunpack.c.h.b16 %v1872
    %v3094 = vunpack.c.l.b16 %v1873
    %v3095 = vunpack.c.h.b16 %v1873
    %v3096 = vunpack.c.l.b16 %v1874
    %v3097 = vunpack.c.h.b16 %v1874
    %v3098 = vunpack.c.l.b16 %v1875
    %v3099 = vunpack.c.h.b16 %v1875
    %v3100 = vunpack.c.l.b16 %v1876
    %v3101 = vunpack.c.h.b16 %v1876
    %v3102 = vunpack.c.l.b16 %v1877
    %v3103 = vunpack.c.h.b16 %v1877
    %v3104 = vunpack.c.l.b16 %v1878
    %v3105 = vunpack.c.h.b16 %v1878
    %v3106 = vunpack.c.l.b16 %v1879
    %v3107 = vunpack.c.h.b16 %v1879
    %v3108 = vunpack.c.l.b16 %v1880
    %v3109 = vunpack.c.h.b16 %v1880
    %v3110 = vunpack.c.l.b16 %v1881
    %v3111 = vunpack.c.h.b16 %v1881
    %v3112 = vunpack.c.l.b16 %v1882
    %v3113 = vunpack.c.h.b16 %v1882
    %v3114 = vunpack.c.l.b16 %v1883
    %v3115 = vunpack.c.h.b16 %v1883
    %v3116 = vunpack.c.l.b16 %v1884
    %v3117 = vunpack.c.h.b16 %v1884
    %v3118 = vunpack.c.l.b16 %v1885
    %v3119 = vunpack.c.h.b16 %v1885
    %v3120 = vunpack.c.l.b16 %v1886
    %v3121 = vunpack.c.h.b16 %v1886
    %v3122 = vunpack.c.l.b16 %v1887
    %v3123 = vunpack.c.h.b16 %v1887
    %v3124 = vunpack.c.l.b16 %v1888
    %v3125 = vunpack.c.h.b16 %v1888
    %v3126 = vunpack.c.l.b16 %v1889
    %v3127 = vunpack.c.h.b16 %v1889
    %v3128 = vunpack.c.l.b16 %v1890
    %v3129 = vunpack.c.h.b16 %v1890
    %v3130 = vunpack.c.l.b16 %v1891
    %v3131 = vunpack.c.h.b16 %v1891
    %v3132 = vunpack.c.l.b16 %v1892
    %v3133 = vunpack.c.h.b16 %v1892
    %v3134 = vunpack.c.l.b16 %v1893
    %v3135 = vunpack.c.h.b16 %v1893
    %v3136 = vunpack.c.l.b16 %v1894
    %v3137 = vunpack.c.h.b16 %v1894
    %v3138 = vunpack.c.l.b16 %v1895
    %v3139 = vunpack.c.h.b16 %v1895
    %v3140 = vunpack.c.l.b16 %v1896
    %v3141 = vunpack.c.h.b16 %v1896
    %v3142 = vunpack.c.l.b16 %v1897
    %v3143 = vunpack.c.h.b16 %v1897
    %v3144 = vpack.c.b16 %v2892, %v2888
    %v3145 = vpack.c.b16 %v2893, %v2889
    %v3146 = vpack.c.b16 %v2894, %v2890
    %v3147 = vpack.c.b16 %v2895, %v2891
    %v3148 = vpack.c.b16 %v2900, %v2896
    %v3149 = vpack.c.b16 %v2901, %v2897
    %v3150 = vpack.c.b16 %v2902, %v2898
    %v3151 = vpack.c.b16 %v2903, %v2899
    %v3152 = vpack.c.b16 %v2908, %v2904
    %v3153 = vpack.c.b16 %v2909, %v2905
    %v3154 = vpack.c.b16 %v2910, %v2906
    %v3155 = vpack.c.b16 %v2911, %v2907
    %v3156 = vpack.c.b16 %v2916, %v2912
    %v3157 = vpack.c.b16 %v2917, %v2913
    %v3158 = vpack.c.b16 %v2918, %v2914
    %v3159 = vpack.c.b16 %v2919, %v2915
    %v3160 = vpack.c.b16 %v2924, %v2920
    %v3161 = vpack.c.b16 %v2925, %v2921
    %v3162 = vpack.c.b16 %v2926, %v2922
    %v3163 = vpack.c.b16 %v2927, %v2923
    %v3164 = vpack.c.b16 %v2932, %v2928
    %v3165 = vpack.c.b16 %v2933, %v2929
    %v3166 = vpack.c.b16 %v2934, %v2930
    %v3167 = vpack.c.b16 %v2935, %v2931
    %v3168 = vpack.c.b16 %v2940, %v2936
    %v3169 = vpack.c.b16 %v2941, %v2937
    %v3170 = vpack.c.b16 %v2942, %v2938
    %v3171 = vpack.c.b16 %v2943, %v2939
    %v3172 = vpack.c.b16 %v2948, %v2944
    %v3173 = vpack.c.b16 %v2949, %v2945
    %v3174 = vpack.c.b16 %v2950, %v2946
    %v3175 = vpack.c.b16 %v2951, %v2947
    %v3176 = vpack.c.b16 %v2956, %v2952
    %v3177 = vpack.c.b16 %v2957, %v2953
    %v3178 = vpack.c.b16 %v2958, %v2954
    %v3179 = vpack.c.b16 %v2959, %v2955
    %v3180 = vpack.c.b16 %v2964, %v2960
    %v3181 = vpack.c.b16 %v2965, %v2961
    %v3182 = vpack.c.b16 %v2966, %v2962
    %v3183 = vpack.c.b16 %v2967, %v2963
    %v3184 = vpack.c.b16 %v2972, %v2968
    %v3185 = vpack.c.b16 %v2973, %v2969
    %v3186 = vpack.c.b16 %v2974, %v2970
    %v3187 = vpack.c.b16 %v2975, %v2971
    %v3188 = vpack.c.b16 %v2980, %v2976
    %v3189 = vpack.c.b16 %v2981, %v2977
    %v3190 = vpack.c.b16 %v2982, %v2978
    %v3191 = vpack.c.b16 %v2983, %v2979
    %v3192 = vpack.c.b16 %v2988, %v2984
    %v3193 = vpack.c.b16 %v2989, %v2985
    %v3194 = vpack.c.b16 %v2990, %v2986
    %v3195 = vpack.c.b16 %v2991, %v2987
    %v3196 = vpack.c.b16 %v2996, %v2992
    %v3197 = vpack.c.b16 %v2997, %v2993
    %v3198 = vpack.c.b16 %v2998, %v2994
    %v3199 = vpack.c.b16 %v2999, %v2995
    %v3200 = vpack.c.b16 %v3004, %v3000
    %v3201 = vpack.c.b16 %v3005, %v3001
    %v3202 = vpack.c.b16 %v3006, %v3002
    %v3203 = vpack.c.b16 %v3007, %v3003
    %v3204 = vpack.c.b16 %v3012, %v3008
    %v3205 = vpack.c.b16 %v3013, %v3009
    %v3206 = vpack.c.b16 %v3014, %v3010
    %v3207 = vpack.c.b16 %v3015, %v3011
    %v3208 = vpack.c.b16 %v3020, %v3016
    %v3209 = vpack.c.b16 %v3021, %v3017
    %v3210 = vpack.c.b16 %v3022, %v3018
    %v3211 = vpack.c.b16 %v3023, %v3019
    %v3212 = vpack.c.b16 %v3028, %v3024
    %v3213 = vpack.c.b16 %v3029, %v3025
    %v3214 = vpack.c.b16 %v3030, %v3026
    %v3215 = vpack.c.b16 %v3031, %v3027
    %v3216 = vpack.c.b16 %v3036, %v3032
    %v3217 = vpack.c.b16 %v3037, %v3033
    %v3218 = vpack.c.b16 %v3038, %v3034
    %v3219 = vpack.c.b16 %v3039, %v3035
    %v3220 = vpack.c.b16 %v3044, %v3040
    %v3221 = vpack.c.b16 %v3045, %v3041
    %v3222 = vpack.c.b16 %v3046, %v3042
    %v3223 = vpack.c.b16 %v3047, %v3043
    %v3224 = vpack.c.b16 %v3052, %v3048
    %v3225 = vpack.c.b16 %v3053, %v3049
    %v3226 = vpack.c.b16 %v3054, %v3050
    %v3227 = vpack.c.b16 %v3055, %v3051
    %v3228 = vpack.c.b16 %v3060, %v3056
    %v3229 = vpack.c.b16 %v3061, %v3057
    %v3230 = vpack.c.b16 %v3062, %v3058
    %v3231 = vpack.c.b16 %v3063, %v3059
    %v3232 = vpack.c.b16 %v3068, %v3064
    %v3233 = vpack.c.b16 %v3069, %v3065
    %v3234 = vpack.c.b16 %v3070, %v3066
    %v3235 = vpack.c.b16 %v3071, %v3067
    %v3236 = vpack.c.b16 %v3076, %v3072
    %v3237 = vpack.c.b16 %v3077, %v3073
    %v3238 = vpack.c.b16 %v3078, %v3074
    %v3239 = vpack.c.b16 %v3079, %v3075
    %v3240 = vpack.c.b16 %v3084, %v3080
    %v3241 = vpack.c.b16 %v3085, %v3081
    %v3242 = vpack.c.b16 %v3086, %v3082
    %v3243 = vpack.c.b16 %v3087, %v3083
    %v3244 = vpack.c.b16 %v3092, %v3088
    %v3245 = vpack.c.b16 %v3093, %v3089
    %v3246 = vpack.c.b16 %v3094, %v3090
    %v3247 = vpack.c.b16 %v3095, %v3091
    %v3248 = vpack.c.b16 %v3100, %v3096
    %v3249 = vpack.c.b16 %v3101, %v3097
    %v3250 = vpack.c.b16 %v3102, %v3098
    %v3251 = vpack.c.b16 %v3103, %v3099
    %v3252 = vpack.c.b16 %v3108, %v3104
    %v3253 = vpack.c.b16 %v3109, %v3105
    %v3254 = vpack.c.b16 %v3110, %v3106
    %v3255 = vpack.c.b16 %v3111, %v3107
    %v3256 = vpack.c.b16 %v3116, %v3112
    %v3257 = vpack.c.b16 %v3117, %v3113
    %v3258 = vpack.c.b16 %v3118, %v3114
    %v3259 = vpack.c.b16 %v3119, %v3115
    %v3260 = vpack.c.b16 %v3124, %v3120
    %v3261 = vpack.c.b16 %v3125, %v3121
    %v3262 = vpack.c.b16 %v3126, %v3122
    %v3263 = vpack.c.b16 %v3127, %v3123
    %v3264 = vpack.c.b16 %v3132, %v3128
    %v3265 = vpack.c.b16 %v3133, %v3129
    %v3266 = vpack.c.b16 %v3134, %v3130
    %v3267 = vpack.c.b16 %v3135, %v3131
    %v3268 = vpack.c.b16 %v3140, %v3136
    %v3269 = vpack.c.b16 %v3141, %v3137
    %v3270 = vpack.c.b16 %v3142, %v3138
    %v3271 = vpack.c.b16 %v3143, %v3139
    %3400 = vmatprep.subr.bf16.mxu0 %v3145
    %3401 = vmatpush1.bf16.msra.mxu0 %v3144
    %3402 = vmatprep.subr.bf16.mxu0 %v3149
    %3403 = vmatpush1.bf16.msra.mxu0 %v3148
    %3404 = vmatprep.subr.bf16.mxu0 %v3153
    %3405 = vmatpush1.bf16.msra.mxu0 %v3152
    %3406 = vmatprep.subr.bf16.mxu0 %v3157
    %3407 = vmatpush1.bf16.msra.mxu0 %v3156
    %3408 = vmatprep.subr.bf16.mxu0 %v3161
    %3409 = vmatpush1.bf16.msra.mxu0 %v3160
    %3410 = vmatprep.subr.bf16.mxu0 %v3165
    %3411 = vmatpush1.bf16.msra.mxu0 %v3164
    %3412 = vmatprep.subr.bf16.mxu0 %v3169
    %3413 = vmatpush1.bf16.msra.mxu0 %v3168
    %3414 = vmatprep.subr.bf16.mxu0 %v3173
    %3415 = vmatpush1.bf16.msra.mxu0 %v3172
    %3416 = vmatprep.subr.bf16.mxu0 %v3177
    %3417 = vmatpush1.bf16.msra.mxu0 %v3176
    %3418 = vmatprep.subr.bf16.mxu0 %v3181
    %3419 = vmatpush1.bf16.msra.mxu0 %v3180
    %3420 = vmatprep.subr.bf16.mxu0 %v3185
    %3421 = vmatpush1.bf16.msra.mxu0 %v3184
    %3422 = vmatprep.subr.bf16.mxu0 %v3189
    %3423 = vmatpush1.bf16.msra.mxu0 %v3188
    %3424 = vmatprep.subr.bf16.mxu0 %v3193
    %3425 = vmatpush1.bf16.msra.mxu0 %v3192
    %3426 = vmatprep.subr.bf16.mxu0 %v3197
    %3427 = vmatpush1.bf16.msra.mxu0 %v3196
    %3428 = vmatprep.subr.bf16.mxu0 %v3201
    %3429 = vmatpush1.bf16.msra.mxu0 %v3200
    %3430 = vmatprep.subr.bf16.mxu0 %v3205
    %3431 = vmatpush1.bf16.msra.mxu0 %v3204
    %3432 = vmatprep.mubr.bf16.mxu0 %v2734
    %3433 = vmatmul.mubr.bf16.gmra.mrb[0].mxu0 %v2733
    %v3434 = vpop.f32.mrb[0].mxu0
    %v3435 = vadd.f32 %v2743, %v3434
    %v3436 = vpop.f32.mrb[0].mxu0
    %v3437 = vadd.f32 %v2747, %v3436
    %v3438 = vpop.f32.mrb[0].mxu0
    %v3439 = vpop.f32.mrb[0].mxu0
    %3440 = vdwg.mxu0
    %3441 = vmatprep.subr.bf16.mxu0 %v3209
    %3442 = vmatpush1.bf16.msra.mxu0 %v3208
    %3443 = vmatprep.subr.bf16.mxu0 %v3213
    %3444 = vmatpush1.bf16.msra.mxu0 %v3212
    %3445 = vmatprep.subr.bf16.mxu0 %v3217
    %3446 = vmatpush1.bf16.msra.mxu0 %v3216
    %3447 = vmatprep.subr.bf16.mxu0 %v3221
    %3448 = vmatpush1.bf16.msra.mxu0 %v3220
    %3449 = vmatprep.subr.bf16.mxu0 %v3225
    %3450 = vmatpush1.bf16.msra.mxu0 %v3224
    %3451 = vmatprep.subr.bf16.mxu0 %v3229
    %3452 = vmatpush1.bf16.msra.mxu0 %v3228
    %3453 = vmatprep.subr.bf16.mxu0 %v3233
    %3454 = vmatpush1.bf16.msra.mxu0 %v3232
    %3455 = vmatprep.subr.bf16.mxu0 %v3237
    %3456 = vmatpush1.bf16.msra.mxu0 %v3236
    %3457 = vmatprep.subr.bf16.mxu0 %v3241
    %3458 = vmatpush1.bf16.msra.mxu0 %v3240
    %3459 = vmatprep.subr.bf16.mxu0 %v3245
    %3460 = vmatpush1.bf16.msra.mxu0 %v3244
    %3461 = vmatprep.subr.bf16.mxu0 %v3249
    %3462 = vmatpush1.bf16.msra.mxu0 %v3248
    %3463 = vmatprep.subr.bf16.mxu0 %v3253
    %3464 = vmatpush1.bf16.msra.mxu0 %v3252
    %3465 = vmatprep.subr.bf16.mxu0 %v3257
    %3466 = vmatpush1.bf16.msra.mxu0 %v3256
    %3467 = vmatprep.subr.bf16.mxu0 %v3261
    %3468 = vmatpush1.bf16.msra.mxu0 %v3260
    %3469 = vmatprep.subr.bf16.mxu0 %v3265
    %3470 = vmatpush1.bf16.msra.mxu0 %v3264
    %3471 = vmatprep.subr.bf16.mxu0 %v3269
    %3472 = vmatpush1.bf16.msra.mxu0 %v3268
    %3473 = vmatprep.mubr.bf16.mxu0 %v2736
    %3474 = vmatmul.mubr.bf16.gmra.mrb[0].mxu0 %v2735
    %v3475 = vpop.f32.mrb[0].mxu0
    %v3476 = vadd.f32 %v3435, %v3475
    %v3477 = vpop.f32.mrb[0].mxu0
    %v3478 = vadd.f32 %v3437, %v3477
    %v3479 = vpop.f32.mrb[0].mxu0
    %v3480 = vpop.f32.mrb[0].mxu0
    %3481 = vdwg.mxu0
    %3482 = vmatprep.subr.bf16.mxu0 %v3147
    %3483 = vmatpush1.bf16.msra.mxu0 %v3146
    %3484 = vmatprep.subr.bf16.mxu0 %v3151
    %3485 = vmatpush1.bf16.msra.mxu0 %v3150
    %3486 = vmatprep.subr.bf16.mxu0 %v3155
    %3487 = vmatpush1.bf16.msra.mxu0 %v3154
    %3488 = vmatprep.subr.bf16.mxu0 %v3159
    %3489 = vmatpush1.bf16.msra.mxu0 %v3158
    %3490 = vmatprep.subr.bf16.mxu0 %v3163
    %3491 = vmatpush1.bf16.msra.mxu0 %v3162
    %3492 = vmatprep.subr.bf16.mxu0 %v3167
    %3493 = vmatpush1.bf16.msra.mxu0 %v3166
    %3494 = vmatprep.subr.bf16.mxu0 %v3171
    %3495 = vmatpush1.bf16.msra.mxu0 %v3170
    %3496 = vmatprep.subr.bf16.mxu0 %v3175
    %3497 = vmatpush1.bf16.msra.mxu0 %v3174
    %3498 = vmatprep.subr.bf16.mxu0 %v3179
    %3499 = vmatpush1.bf16.msra.mxu0 %v3178
    %3500 = vmatprep.subr.bf16.mxu0 %v3183
    %3501 = vmatpush1.bf16.msra.mxu0 %v3182
    %3502 = vmatprep.subr.bf16.mxu0 %v3187
    %3503 = vmatpush1.bf16.msra.mxu0 %v3186
    %3504 = vmatprep.subr.bf16.mxu0 %v3191
    %3505 = vmatpush1.bf16.msra.mxu0 %v3190
    %3506 = vmatprep.subr.bf16.mxu0 %v3195
    %3507 = vmatpush1.bf16.msra.mxu0 %v3194
    %3508 = vmatprep.subr.bf16.mxu0 %v3199
    %3509 = vmatpush1.bf16.msra.mxu0 %v3198
    %3510 = vmatprep.subr.bf16.mxu0 %v3203
    %3511 = vmatpush1.bf16.msra.mxu0 %v3202
    %3512 = vmatprep.subr.bf16.mxu0 %v3207
    %3513 = vmatpush1.bf16.msra.mxu0 %v3206
    %3514 = vmatprep.mubr.bf16.mxu0 %v2734
    %3515 = vmatmul.mubr.bf16.gmra.mrb[0].mxu0 %v2733
    %v3516 = vpop.f32.mrb[0].mxu0
    %v3517 = vadd.f32 %v2751, %v3516
    %v3518 = vpop.f32.mrb[0].mxu0
    %v3519 = vadd.f32 %v2755, %v3518
    %v3520 = vpop.f32.mrb[0].mxu0
    %v3521 = vpop.f32.mrb[0].mxu0
    %3522 = vdwg.mxu0
    %3523 = vmatprep.subr.bf16.mxu0 %v3211
    %3524 = vmatpush1.bf16.msra.mxu0 %v3210
    %3525 = vmatprep.subr.bf16.mxu0 %v3215
    %3526 = vmatpush1.bf16.msra.mxu0 %v3214
    %3527 = vmatprep.subr.bf16.mxu0 %v3219
    %3528 = vmatpush1.bf16.msra.mxu0 %v3218
    %3529 = vmatprep.subr.bf16.mxu0 %v3223
    %3530 = vmatpush1.bf16.msra.mxu0 %v3222
    %3531 = vmatprep.subr.bf16.mxu0 %v3227
    %3532 = vmatpush1.bf16.msra.mxu0 %v3226
    %3533 = vmatprep.subr.bf16.mxu0 %v3231
    %3534 = vmatpush1.bf16.msra.mxu0 %v3230
    %3535 = vmatprep.subr.bf16.mxu0 %v3235
    %3536 = vmatpush1.bf16.msra.mxu0 %v3234
    %3537 = vmatprep.subr.bf16.mxu0 %v3239
    %3538 = vmatpush1.bf16.msra.mxu0 %v3238
    %3539 = vmatprep.subr.bf16.mxu0 %v3243
    %3540 = vmatpush1.bf16.msra.mxu0 %v3242
    %3541 = vmatprep.subr.bf16.mxu0 %v3247
    %3542 = vmatpush1.bf16.msra.mxu0 %v3246
    %3543 = vmatprep.subr.bf16.mxu0 %v3251
    %3544 = vmatpush1.bf16.msra.mxu0 %v3250
    %3545 = vmatprep.subr.bf16.mxu0 %v3255
    %3546 = vmatpush1.bf16.msra.mxu0 %v3254
    %3547 = vmatprep.subr.bf16.mxu0 %v3259
    %3548 = vmatpush1.bf16.msra.mxu0 %v3258
    %3549 = vmatprep.subr.bf16.mxu0 %v3263
    %3550 = vmatpush1.bf16.msra.mxu0 %v3262
    %3551 = vmatprep.subr.bf16.mxu0 %v3267
    %3552 = vmatpush1.bf16.msra.mxu0 %v3266
    %3553 = vmatprep.subr.bf16.mxu0 %v3271
    %3554 = vmatpush1.bf16.msra.mxu0 %v3270
    %3555 = vmatprep.mubr.bf16.mxu0 %v2736
    %3556 = vmatmul.mubr.bf16.gmra.mrb[0].mxu0 %v2735
    %v3557 = vpop.f32.mrb[0].mxu0
    %v3558 = vadd.f32 %v3517, %v3557
    %v3559 = vpop.f32.mrb[0].mxu0
    %v3560 = vadd.f32 %v3519, %v3559
    %v3561 = vpop.f32.mrb[0].mxu0
    %v3562 = vpop.f32.mrb[0].mxu0
    %3563 = vdwg.mxu0
    %v3564 = vmax.f32 %v3476, 0.0
    %v3565 = vmax.f32 %v3478, 0.0
    %v3566 = vmax.f32 %v3558, 0.0
    %v3567 = vmax.f32 %v3560, 0.0
    %v3568 = vadd.f32 %v3564, %v1638
    %v3569 = vadd.f32 %v3565, %v1639
    %v3570 = vadd.f32 %v3566, %v1640
    %v3571 = vadd.f32 %v3567, %v1641
    %v3572 = vmax.f32 %v3568, 0.0
    %v3573 = vmax.f32 %v3569, 0.0
    %v3574 = vmax.f32 %v3570, 0.0
    %v3575 = vmax.f32 %v3571, 0.0
    %v3576 = vld [vmem:[#allocation7 + $0xc00] sm:$0xff]
    %v3577 = vld [vmem:[#allocation7 + $0xc08] sm:$0xff]
    %v3578 = vld [vmem:[#allocation7 + $0xc10] sm:$0xff]
    %v3579 = vld [vmem:[#allocation7 + $0xc18] sm:$0xff]
    %v3580 = vld [vmem:[#allocation7 + $0xc20] sm:$0xff]
    %v3581 = vld [vmem:[#allocation7 + $0xc28] sm:$0xff]
    %v3582 = vld [vmem:[#allocation7 + $0xc30] sm:$0xff]
    %v3583 = vld [vmem:[#allocation7 + $0xc38] sm:$0xff]
    %v3584 = vld [vmem:[#allocation7 + $0xc40] sm:$0xff]
    %v3585 = vld [vmem:[#allocation7 + $0xc48] sm:$0xff]
    %v3586 = vld [vmem:[#allocation7 + $0xc50] sm:$0xff]
    %v3587 = vld [vmem:[#allocation7 + $0xc58] sm:$0xff]
    %v3588 = vld [vmem:[#allocation7 + $0xc60] sm:$0xff]
    %v3589 = vld [vmem:[#allocation7 + $0xc68] sm:$0xff]
    %v3590 = vld [vmem:[#allocation7 + $0xc70] sm:$0xff]
    %v3591 = vld [vmem:[#allocation7 + $0xc78] sm:$0xff]
    %v3592 = vld [vmem:[#allocation7 + $0xc80] sm:$0xff]
    %v3593 = vld [vmem:[#allocation7 + $0xc88] sm:$0xff]
    %v3594 = vld [vmem:[#allocation7 + $0xc90] sm:$0xff]
    %v3595 = vld [vmem:[#allocation7 + $0xc98] sm:$0xff]
    %v3596 = vld [vmem:[#allocation7 + $0xca0] sm:$0xff]
    %v3597 = vld [vmem:[#allocation7 + $0xca8] sm:$0xff]
    %v3598 = vld [vmem:[#allocation7 + $0xcb0] sm:$0xff]
    %v3599 = vld [vmem:[#allocation7 + $0xcb8] sm:$0xff]
    %v3600 = vld [vmem:[#allocation7 + $0xcc0] sm:$0xff]
    %v3601 = vld [vmem:[#allocation7 + $0xcc8] sm:$0xff]
    %v3602 = vld [vmem:[#allocation7 + $0xcd0] sm:$0xff]
    %v3603 = vld [vmem:[#allocation7 + $0xcd8] sm:$0xff]
    %v3604 = vld [vmem:[#allocation7 + $0xce0] sm:$0xff]
    %v3605 = vld [vmem:[#allocation7 + $0xce8] sm:$0xff]
    %v3606 = vld [vmem:[#allocation7 + $0xcf0] sm:$0xff]
    %v3607 = vld [vmem:[#allocation7 + $0xcf8] sm:$0xff]
    %v3608 = vld [vmem:[#allocation7 + $0xd00] sm:$0xff]
    %v3609 = vld [vmem:[#allocation7 + $0xd08] sm:$0xff]
    %v3610 = vld [vmem:[#allocation7 + $0xd10] sm:$0xff]
    %v3611 = vld [vmem:[#allocation7 + $0xd18] sm:$0xff]
    %v3612 = vld [vmem:[#allocation7 + $0xd20] sm:$0xff]
    %v3613 = vld [vmem:[#allocation7 + $0xd28] sm:$0xff]
    %v3614 = vld [vmem:[#allocation7 + $0xd30] sm:$0xff]
    %v3615 = vld [vmem:[#allocation7 + $0xd38] sm:$0xff]
    %v3616 = vld [vmem:[#allocation7 + $0xd40] sm:$0xff]
    %v3617 = vld [vmem:[#allocation7 + $0xd48] sm:$0xff]
    %v3618 = vld [vmem:[#allocation7 + $0xd50] sm:$0xff]
    %v3619 = vld [vmem:[#allocation7 + $0xd58] sm:$0xff]
    %v3620 = vld [vmem:[#allocation7 + $0xd60] sm:$0xff]
    %v3621 = vld [vmem:[#allocation7 + $0xd68] sm:$0xff]
    %v3622 = vld [vmem:[#allocation7 + $0xd70] sm:$0xff]
    %v3623 = vld [vmem:[#allocation7 + $0xd78] sm:$0xff]
    %v3624 = vld [vmem:[#allocation7 + $0xd80] sm:$0xff]
    %v3625 = vld [vmem:[#allocation7 + $0xd88] sm:$0xff]
    %v3626 = vld [vmem:[#allocation7 + $0xd90] sm:$0xff]
    %v3627 = vld [vmem:[#allocation7 + $0xd98] sm:$0xff]
    %v3628 = vld [vmem:[#allocation7 + $0xda0] sm:$0xff]
    %v3629 = vld [vmem:[#allocation7 + $0xda8] sm:$0xff]
    %v3630 = vld [vmem:[#allocation7 + $0xdb0] sm:$0xff]
    %v3631 = vld [vmem:[#allocation7 + $0xdb8] sm:$0xff]
    %v3632 = vld [vmem:[#allocation7 + $0xdc0] sm:$0xff]
    %v3633 = vld [vmem:[#allocation7 + $0xdc8] sm:$0xff]
    %v3634 = vld [vmem:[#allocation7 + $0xdd0] sm:$0xff]
    %v3635 = vld [vmem:[#allocation7 + $0xdd8] sm:$0xff]
    %v3636 = vld [vmem:[#allocation7 + $0xde0] sm:$0xff]
    %v3637 = vld [vmem:[#allocation7 + $0xde8] sm:$0xff]
    %v3638 = vld [vmem:[#allocation7 + $0xdf0] sm:$0xff]
    %v3639 = vld [vmem:[#allocation7 + $0xdf8] sm:$0xff]
    %v3640 = vld [vmem:[#allocation7 + $0xe00] sm:$0xff]
    %v3641 = vld [vmem:[#allocation7 + $0xe08] sm:$0xff]
    %v3642 = vld [vmem:[#allocation7 + $0xe10] sm:$0xff]
    %v3643 = vld [vmem:[#allocation7 + $0xe18] sm:$0xff]
    %v3644 = vld [vmem:[#allocation7 + $0xe20] sm:$0xff]
    %v3645 = vld [vmem:[#allocation7 + $0xe28] sm:$0xff]
    %v3646 = vld [vmem:[#allocation7 + $0xe30] sm:$0xff]
    %v3647 = vld [vmem:[#allocation7 + $0xe38] sm:$0xff]
    %v3648 = vld [vmem:[#allocation7 + $0xe40] sm:$0xff]
    %v3649 = vld [vmem:[#allocation7 + $0xe48] sm:$0xff]
    %v3650 = vld [vmem:[#allocation7 + $0xe50] sm:$0xff]
    %v3651 = vld [vmem:[#allocation7 + $0xe58] sm:$0xff]
    %v3652 = vld [vmem:[#allocation7 + $0xe60] sm:$0xff]
    %v3653 = vld [vmem:[#allocation7 + $0xe68] sm:$0xff]
    %v3654 = vld [vmem:[#allocation7 + $0xe70] sm:$0xff]
    %v3655 = vld [vmem:[#allocation7 + $0xe78] sm:$0xff]
    %v3656 = vld [vmem:[#allocation7 + $0xe80] sm:$0xff]
    %v3657 = vld [vmem:[#allocation7 + $0xe88] sm:$0xff]
    %v3658 = vld [vmem:[#allocation7 + $0xe90] sm:$0xff]
    %v3659 = vld [vmem:[#allocation7 + $0xe98] sm:$0xff]
    %v3660 = vld [vmem:[#allocation7 + $0xea0] sm:$0xff]
    %v3661 = vld [vmem:[#allocation7 + $0xea8] sm:$0xff]
    %v3662 = vld [vmem:[#allocation7 + $0xeb0] sm:$0xff]
    %v3663 = vld [vmem:[#allocation7 + $0xeb8] sm:$0xff]
    %v3664 = vld [vmem:[#allocation7 + $0xec0] sm:$0xff]
    %v3665 = vld [vmem:[#allocation7 + $0xec8] sm:$0xff]
    %v3666 = vld [vmem:[#allocation7 + $0xed0] sm:$0xff]
    %v3667 = vld [vmem:[#allocation7 + $0xed8] sm:$0xff]
    %v3668 = vld [vmem:[#allocation7 + $0xee0] sm:$0xff]
    %v3669 = vld [vmem:[#allocation7 + $0xee8] sm:$0xff]
    %v3670 = vld [vmem:[#allocation7 + $0xef0] sm:$0xff]
    %v3671 = vld [vmem:[#allocation7 + $0xef8] sm:$0xff]
    %v3672 = vld [vmem:[#allocation7 + $0xf00] sm:$0xff]
    %v3673 = vld [vmem:[#allocation7 + $0xf08] sm:$0xff]
    %v3674 = vld [vmem:[#allocation7 + $0xf10] sm:$0xff]
    %v3675 = vld [vmem:[#allocation7 + $0xf18] sm:$0xff]
    %v3676 = vld [vmem:[#allocation7 + $0xf20] sm:$0xff]
    %v3677 = vld [vmem:[#allocation7 + $0xf28] sm:$0xff]
    %v3678 = vld [vmem:[#allocation7 + $0xf30] sm:$0xff]
    %v3679 = vld [vmem:[#allocation7 + $0xf38] sm:$0xff]
    %v3680 = vld [vmem:[#allocation7 + $0xf40] sm:$0xff]
    %v3681 = vld [vmem:[#allocation7 + $0xf48] sm:$0xff]
    %v3682 = vld [vmem:[#allocation7 + $0xf50] sm:$0xff]
    %v3683 = vld [vmem:[#allocation7 + $0xf58] sm:$0xff]
    %v3684 = vld [vmem:[#allocation7 + $0xf60] sm:$0xff]
    %v3685 = vld [vmem:[#allocation7 + $0xf68] sm:$0xff]
    %v3686 = vld [vmem:[#allocation7 + $0xf70] sm:$0xff]
    %v3687 = vld [vmem:[#allocation7 + $0xf78] sm:$0xff]
    %v3688 = vld [vmem:[#allocation7 + $0xf80] sm:$0xff]
    %v3689 = vld [vmem:[#allocation7 + $0xf88] sm:$0xff]
    %v3690 = vld [vmem:[#allocation7 + $0xf90] sm:$0xff]
    %v3691 = vld [vmem:[#allocation7 + $0xf98] sm:$0xff]
    %v3692 = vld [vmem:[#allocation7 + $0xfa0] sm:$0xff]
    %v3693 = vld [vmem:[#allocation7 + $0xfa8] sm:$0xff]
    %v3694 = vld [vmem:[#allocation7 + $0xfb0] sm:$0xff]
    %v3695 = vld [vmem:[#allocation7 + $0xfb8] sm:$0xff]
    %v3696 = vld [vmem:[#allocation7 + $0xfc0] sm:$0xff]
    %v3697 = vld [vmem:[#allocation7 + $0xfc8] sm:$0xff]
    %v3698 = vld [vmem:[#allocation7 + $0xfd0] sm:$0xff]
    %v3699 = vld [vmem:[#allocation7 + $0xfd8] sm:$0xff]
    %v3700 = vld [vmem:[#allocation7 + $0xfe0] sm:$0xff]
    %v3701 = vld [vmem:[#allocation7 + $0xfe8] sm:$0xff]
    %v3702 = vld [vmem:[#allocation7 + $0xff0] sm:$0xff]
    %v3703 = vld [vmem:[#allocation7 + $0xff8] sm:$0xff]
    %v3704 = vld [vmem:[#allocation7 + $0x1000] sm:$0xff]
    %v3705 = vld [vmem:[#allocation7 + $0x1008] sm:$0xff]
    %v3706 = vld [vmem:[#allocation7 + $0x1010] sm:$0xff]
    %v3707 = vld [vmem:[#allocation7 + $0x1018] sm:$0xff]
    %v3708 = vld [vmem:[#allocation7 + $0x1020] sm:$0xff]
    %v3709 = vld [vmem:[#allocation7 + $0x1028] sm:$0xff]
    %v3710 = vld [vmem:[#allocation7 + $0x1030] sm:$0xff]
    %v3711 = vld [vmem:[#allocation7 + $0x1038] sm:$0xff]
    %v3712 = vld [vmem:[#allocation7 + $0x1040] sm:$0xff]
    %v3713 = vld [vmem:[#allocation7 + $0x1048] sm:$0xff]
    %v3714 = vld [vmem:[#allocation7 + $0x1050] sm:$0xff]
    %v3715 = vld [vmem:[#allocation7 + $0x1058] sm:$0xff]
    %v3716 = vld [vmem:[#allocation7 + $0x1060] sm:$0xff]
    %v3717 = vld [vmem:[#allocation7 + $0x1068] sm:$0xff]
    %v3718 = vld [vmem:[#allocation7 + $0x1070] sm:$0xff]
    %v3719 = vld [vmem:[#allocation7 + $0x1078] sm:$0xff]
    %v3720 = vld [vmem:[#allocation7 + $0x1080] sm:$0xff]
    %v3721 = vld [vmem:[#allocation7 + $0x1088] sm:$0xff]
    %v3722 = vld [vmem:[#allocation7 + $0x1090] sm:$0xff]
    %v3723 = vld [vmem:[#allocation7 + $0x1098] sm:$0xff]
    %v3724 = vld [vmem:[#allocation7 + $0x10a0] sm:$0xff]
    %v3725 = vld [vmem:[#allocation7 + $0x10a8] sm:$0xff]
    %v3726 = vld [vmem:[#allocation7 + $0x10b0] sm:$0xff]
    %v3727 = vld [vmem:[#allocation7 + $0x10b8] sm:$0xff]
    %v3728 = vld [vmem:[#allocation7 + $0x10c0] sm:$0xff]
    %v3729 = vld [vmem:[#allocation7 + $0x10c8] sm:$0xff]
    %v3730 = vld [vmem:[#allocation7 + $0x10d0] sm:$0xff]
    %v3731 = vld [vmem:[#allocation7 + $0x10d8] sm:$0xff]
    %v3732 = vld [vmem:[#allocation7 + $0x10e0] sm:$0xff]
    %v3733 = vld [vmem:[#allocation7 + $0x10e8] sm:$0xff]
    %v3734 = vld [vmem:[#allocation7 + $0x10f0] sm:$0xff]
    %v3735 = vld [vmem:[#allocation7 + $0x10f8] sm:$0xff]
    %v3736 = vld [vmem:[#allocation7 + $0x1100] sm:$0xff]
    %v3737 = vld [vmem:[#allocation7 + $0x1108] sm:$0xff]
    %v3738 = vld [vmem:[#allocation7 + $0x1110] sm:$0xff]
    %v3739 = vld [vmem:[#allocation7 + $0x1118] sm:$0xff]
    %v3740 = vld [vmem:[#allocation7 + $0x1120] sm:$0xff]
    %v3741 = vld [vmem:[#allocation7 + $0x1128] sm:$0xff]
    %v3742 = vld [vmem:[#allocation7 + $0x1130] sm:$0xff]
    %v3743 = vld [vmem:[#allocation7 + $0x1138] sm:$0xff]
    %v3744 = vld [vmem:[#allocation7 + $0x1140] sm:$0xff]
    %v3745 = vld [vmem:[#allocation7 + $0x1148] sm:$0xff]
    %v3746 = vld [vmem:[#allocation7 + $0x1150] sm:$0xff]
    %v3747 = vld [vmem:[#allocation7 + $0x1158] sm:$0xff]
    %v3748 = vld [vmem:[#allocation7 + $0x1160] sm:$0xff]
    %v3749 = vld [vmem:[#allocation7 + $0x1168] sm:$0xff]
    %v3750 = vld [vmem:[#allocation7 + $0x1170] sm:$0xff]
    %v3751 = vld [vmem:[#allocation7 + $0x1178] sm:$0xff]
    %v3752 = vld [vmem:[#allocation7 + $0x1180] sm:$0xff]
    %v3753 = vld [vmem:[#allocation7 + $0x1188] sm:$0xff]
    %v3754 = vld [vmem:[#allocation7 + $0x1190] sm:$0xff]
    %v3755 = vld [vmem:[#allocation7 + $0x1198] sm:$0xff]
    %v3756 = vld [vmem:[#allocation7 + $0x11a0] sm:$0xff]
    %v3757 = vld [vmem:[#allocation7 + $0x11a8] sm:$0xff]
    %v3758 = vld [vmem:[#allocation7 + $0x11b0] sm:$0xff]
    %v3759 = vld [vmem:[#allocation7 + $0x11b8] sm:$0xff]
    %v3760 = vld [vmem:[#allocation7 + $0x11c0] sm:$0xff]
    %v3761 = vld [vmem:[#allocation7 + $0x11c8] sm:$0xff]
    %v3762 = vld [vmem:[#allocation7 + $0x11d0] sm:$0xff]
    %v3763 = vld [vmem:[#allocation7 + $0x11d8] sm:$0xff]
    %v3764 = vld [vmem:[#allocation7 + $0x11e0] sm:$0xff]
    %v3765 = vld [vmem:[#allocation7 + $0x11e8] sm:$0xff]
    %v3766 = vld [vmem:[#allocation7 + $0x11f0] sm:$0xff]
    %v3767 = vld [vmem:[#allocation7 + $0x11f8] sm:$0xff]
    %v3768 = vld [vmem:[#allocation7 + $0x1200] sm:$0xff]
    %v3769 = vld [vmem:[#allocation7 + $0x1208] sm:$0xff]
    %v3770 = vld [vmem:[#allocation7 + $0x1210] sm:$0xff]
    %v3771 = vld [vmem:[#allocation7 + $0x1218] sm:$0xff]
    %v3772 = vld [vmem:[#allocation7 + $0x1220] sm:$0xff]
    %v3773 = vld [vmem:[#allocation7 + $0x1228] sm:$0xff]
    %v3774 = vld [vmem:[#allocation7 + $0x1230] sm:$0xff]
    %v3775 = vld [vmem:[#allocation7 + $0x1238] sm:$0xff]
    %v3776 = vld [vmem:[#allocation7 + $0x1240] sm:$0xff]
    %v3777 = vld [vmem:[#allocation7 + $0x1248] sm:$0xff]
    %v3778 = vld [vmem:[#allocation7 + $0x1250] sm:$0xff]
    %v3779 = vld [vmem:[#allocation7 + $0x1258] sm:$0xff]
    %v3780 = vld [vmem:[#allocation7 + $0x1260] sm:$0xff]
    %v3781 = vld [vmem:[#allocation7 + $0x1268] sm:$0xff]
    %v3782 = vld [vmem:[#allocation7 + $0x1270] sm:$0xff]
    %v3783 = vld [vmem:[#allocation7 + $0x1278] sm:$0xff]
    %v3784 = vld [vmem:[#allocation7 + $0x1280] sm:$0xff]
    %v3785 = vld [vmem:[#allocation7 + $0x1288] sm:$0xff]
    %v3786 = vld [vmem:[#allocation7 + $0x1290] sm:$0xff]
    %v3787 = vld [vmem:[#allocation7 + $0x1298] sm:$0xff]
    %v3788 = vld [vmem:[#allocation7 + $0x12a0] sm:$0xff]
    %v3789 = vld [vmem:[#allocation7 + $0x12a8] sm:$0xff]
    %v3790 = vld [vmem:[#allocation7 + $0x12b0] sm:$0xff]
    %v3791 = vld [vmem:[#allocation7 + $0x12b8] sm:$0xff]
    %v3792 = vld [vmem:[#allocation7 + $0x12c0] sm:$0xff]
    %v3793 = vld [vmem:[#allocation7 + $0x12c8] sm:$0xff]
    %v3794 = vld [vmem:[#allocation7 + $0x12d0] sm:$0xff]
    %v3795 = vld [vmem:[#allocation7 + $0x12d8] sm:$0xff]
    %v3796 = vld [vmem:[#allocation7 + $0x12e0] sm:$0xff]
    %v3797 = vld [vmem:[#allocation7 + $0x12e8] sm:$0xff]
    %v3798 = vld [vmem:[#allocation7 + $0x12f0] sm:$0xff]
    %v3799 = vld [vmem:[#allocation7 + $0x12f8] sm:$0xff]
    %v3800 = vld [vmem:[#allocation7 + $0x1300] sm:$0xff]
    %v3801 = vld [vmem:[#allocation7 + $0x1308] sm:$0xff]
    %v3802 = vld [vmem:[#allocation7 + $0x1310] sm:$0xff]
    %v3803 = vld [vmem:[#allocation7 + $0x1318] sm:$0xff]
    %v3804 = vld [vmem:[#allocation7 + $0x1320] sm:$0xff]
    %v3805 = vld [vmem:[#allocation7 + $0x1328] sm:$0xff]
    %v3806 = vld [vmem:[#allocation7 + $0x1330] sm:$0xff]
    %v3807 = vld [vmem:[#allocation7 + $0x1338] sm:$0xff]
    %v3808 = vld [vmem:[#allocation7 + $0x1340] sm:$0xff]
    %v3809 = vld [vmem:[#allocation7 + $0x1348] sm:$0xff]
    %v3810 = vld [vmem:[#allocation7 + $0x1350] sm:$0xff]
    %v3811 = vld [vmem:[#allocation7 + $0x1358] sm:$0xff]
    %v3812 = vld [vmem:[#allocation7 + $0x1360] sm:$0xff]
    %v3813 = vld [vmem:[#allocation7 + $0x1368] sm:$0xff]
    %v3814 = vld [vmem:[#allocation7 + $0x1370] sm:$0xff]
    %v3815 = vld [vmem:[#allocation7 + $0x1378] sm:$0xff]
    %v3816 = vld [vmem:[#allocation7 + $0x1380] sm:$0xff]
    %v3817 = vld [vmem:[#allocation7 + $0x1388] sm:$0xff]
    %v3818 = vld [vmem:[#allocation7 + $0x1390] sm:$0xff]
    %v3819 = vld [vmem:[#allocation7 + $0x1398] sm:$0xff]
    %v3820 = vld [vmem:[#allocation7 + $0x13a0] sm:$0xff]
    %v3821 = vld [vmem:[#allocation7 + $0x13a8] sm:$0xff]
    %v3822 = vld [vmem:[#allocation7 + $0x13b0] sm:$0xff]
    %v3823 = vld [vmem:[#allocation7 + $0x13b8] sm:$0xff]
    %v3824 = vld [vmem:[#allocation7 + $0x13c0] sm:$0xff]
    %v3825 = vld [vmem:[#allocation7 + $0x13c8] sm:$0xff]
    %v3826 = vld [vmem:[#allocation7 + $0x13d0] sm:$0xff]
    %v3827 = vld [vmem:[#allocation7 + $0x13d8] sm:$0xff]
    %v3828 = vld [vmem:[#allocation7 + $0x13e0] sm:$0xff]
    %v3829 = vld [vmem:[#allocation7 + $0x13e8] sm:$0xff]
    %v3830 = vld [vmem:[#allocation7 + $0x13f0] sm:$0xff]
    %v3831 = vld [vmem:[#allocation7 + $0x13f8] sm:$0xff]
    %v3832 = vpack.c.bf16 %v3572, %v3572
    %v3833 = vpack.c.bf16 %v3573, %v3573
    %v3834 = vpack.c.bf16 %v3574, %v3574
    %v3835 = vpack.c.bf16 %v3575, %v3575
    %s3836 = scalar_lea.vmem [#allocation8], 4
    %v3837 = vld [vmem:[%s3836] ss:$8 sm:$0xf]
    %v3839 = vlaneseq
    %v3840 = vshrl.u32 %v3839, 7
    %v3841 = vsub.s32 0, %v3840
    %v3842 = vrot.slane %v3837, %v3841
    %v3843 = vlaneseq
    %v3844 = vshrl.u32 %v3843, 7
    %v3845 = vsub.s32 1, %v3844
    %v3846 = vrot.slane %v3837, %v3845
    %v3847 = vlaneseq
    %v3848 = vshrl.u32 %v3847, 7
    %v3849 = vsub.s32 2, %v3848
    %v3850 = vrot.slane %v3837, %v3849
    %v3851 = vlaneseq
    %v3852 = vshrl.u32 %v3851, 7
    %v3853 = vsub.s32 3, %v3852
    %v3854 = vrot.slane %v3837, %v3853
    %v3987 = vunpack.c.l.b16 %v3576
    %v3988 = vunpack.c.h.b16 %v3576
    %v3989 = vunpack.c.l.b16 %v3577
    %v3990 = vunpack.c.h.b16 %v3577
    %v3991 = vunpack.c.l.b16 %v3578
    %v3992 = vunpack.c.h.b16 %v3578
    %v3993 = vunpack.c.l.b16 %v3579
    %v3994 = vunpack.c.h.b16 %v3579
    %v3995 = vunpack.c.l.b16 %v3580
    %v3996 = vunpack.c.h.b16 %v3580
    %v3997 = vunpack.c.l.b16 %v3581
    %v3998 = vunpack.c.h.b16 %v3581
    %v3999 = vunpack.c.l.b16 %v3582
    %v4000 = vunpack.c.h.b16 %v3582
    %v4001 = vunpack.c.l.b16 %v3583
    %v4002 = vunpack.c.h.b16 %v3583
    %v4003 = vunpack.c.l.b16 %v3584
    %v4004 = vunpack.c.h.b16 %v3584
    %v4005 = vunpack.c.l.b16 %v3585
    %v4006 = vunpack.c.h.b16 %v3585
    %v4007 = vunpack.c.l.b16 %v3586
    %v4008 = vunpack.c.h.b16 %v3586
    %v4009 = vunpack.c.l.b16 %v3587
    %v4010 = vunpack.c.h.b16 %v3587
    %v4011 = vunpack.c.l.b16 %v3588
    %v4012 = vunpack.c.h.b16 %v3588
    %v4013 = vunpack.c.l.b16 %v3589
    %v4014 = vunpack.c.h.b16 %v3589
    %v4015 = vunpack.c.l.b16 %v3590
    %v4016 = vunpack.c.h.b16 %v3590
    %v4017 = vunpack.c.l.b16 %v3591
    %v4018 = vunpack.c.h.b16 %v3591
    %v4019 = vunpack.c.l.b16 %v3592
    %v4020 = vunpack.c.h.b16 %v3592
    %v4021 = vunpack.c.l.b16 %v3593
    %v4022 = vunpack.c.h.b16 %v3593
    %v4023 = vunpack.c.l.b16 %v3594
    %v4024 = vunpack.c.h.b16 %v3594
    %v4025 = vunpack.c.l.b16 %v3595
    %v4026 = vunpack.c.h.b16 %v3595
    %v4027 = vunpack.c.l.b16 %v3596
    %v4028 = vunpack.c.h.b16 %v3596
    %v4029 = vunpack.c.l.b16 %v3597
    %v4030 = vunpack.c.h.b16 %v3597
    %v4031 = vunpack.c.l.b16 %v3598
    %v4032 = vunpack.c.h.b16 %v3598
    %v4033 = vunpack.c.l.b16 %v3599
    %v4034 = vunpack.c.h.b16 %v3599
    %v4035 = vunpack.c.l.b16 %v3600
    %v4036 = vunpack.c.h.b16 %v3600
    %v4037 = vunpack.c.l.b16 %v3601
    %v4038 = vunpack.c.h.b16 %v3601
    %v4039 = vunpack.c.l.b16 %v3602
    %v4040 = vunpack.c.h.b16 %v3602
    %v4041 = vunpack.c.l.b16 %v3603
    %v4042 = vunpack.c.h.b16 %v3603
    %v4043 = vunpack.c.l.b16 %v3604
    %v4044 = vunpack.c.h.b16 %v3604
    %v4045 = vunpack.c.l.b16 %v3605
    %v4046 = vunpack.c.h.b16 %v3605
    %v4047 = vunpack.c.l.b16 %v3606
    %v4048 = vunpack.c.h.b16 %v3606
    %v4049 = vunpack.c.l.b16 %v3607
    %v4050 = vunpack.c.h.b16 %v3607
    %v4051 = vunpack.c.l.b16 %v3608
    %v4052 = vunpack.c.h.b16 %v3608
    %v4053 = vunpack.c.l.b16 %v3609
    %v4054 = vunpack.c.h.b16 %v3609
    %v4055 = vunpack.c.l.b16 %v3610
    %v4056 = vunpack.c.h.b16 %v3610
    %v4057 = vunpack.c.l.b16 %v3611
    %v4058 = vunpack.c.h.b16 %v3611
    %v4059 = vunpack.c.l.b16 %v3612
    %v4060 = vunpack.c.h.b16 %v3612
    %v4061 = vunpack.c.l.b16 %v3613
    %v4062 = vunpack.c.h.b16 %v3613
    %v4063 = vunpack.c.l.b16 %v3614
    %v4064 = vunpack.c.h.b16 %v3614
    %v4065 = vunpack.c.l.b16 %v3615
    %v4066 = vunpack.c.h.b16 %v3615
    %v4067 = vunpack.c.l.b16 %v3616
    %v4068 = vunpack.c.h.b16 %v3616
    %v4069 = vunpack.c.l.b16 %v3617
    %v4070 = vunpack.c.h.b16 %v3617
    %v4071 = vunpack.c.l.b16 %v3618
    %v4072 = vunpack.c.h.b16 %v3618
    %v4073 = vunpack.c.l.b16 %v3619
    %v4074 = vunpack.c.h.b16 %v3619
    %v4075 = vunpack.c.l.b16 %v3620
    %v4076 = vunpack.c.h.b16 %v3620
    %v4077 = vunpack.c.l.b16 %v3621
    %v4078 = vunpack.c.h.b16 %v3621
    %v4079 = vunpack.c.l.b16 %v3622
    %v4080 = vunpack.c.h.b16 %v3622
    %v4081 = vunpack.c.l.b16 %v3623
    %v4082 = vunpack.c.h.b16 %v3623
    %v4083 = vunpack.c.l.b16 %v3624
    %v4084 = vunpack.c.h.b16 %v3624
    %v4085 = vunpack.c.l.b16 %v3625
    %v4086 = vunpack.c.h.b16 %v3625
    %v4087 = vunpack.c.l.b16 %v3626
    %v4088 = vunpack.c.h.b16 %v3626
    %v4089 = vunpack.c.l.b16 %v3627
    %v4090 = vunpack.c.h.b16 %v3627
    %v4091 = vunpack.c.l.b16 %v3628
    %v4092 = vunpack.c.h.b16 %v3628
    %v4093 = vunpack.c.l.b16 %v3629
    %v4094 = vunpack.c.h.b16 %v3629
    %v4095 = vunpack.c.l.b16 %v3630
    %v4096 = vunpack.c.h.b16 %v3630
    %v4097 = vunpack.c.l.b16 %v3631
    %v4098 = vunpack.c.h.b16 %v3631
    %v4099 = vunpack.c.l.b16 %v3632
    %v4100 = vunpack.c.h.b16 %v3632
    %v4101 = vunpack.c.l.b16 %v3633
    %v4102 = vunpack.c.h.b16 %v3633
    %v4103 = vunpack.c.l.b16 %v3634
    %v4104 = vunpack.c.h.b16 %v3634
    %v4105 = vunpack.c.l.b16 %v3635
    %v4106 = vunpack.c.h.b16 %v3635
    %v4107 = vunpack.c.l.b16 %v3636
    %v4108 = vunpack.c.h.b16 %v3636
    %v4109 = vunpack.c.l.b16 %v3637
    %v4110 = vunpack.c.h.b16 %v3637
    %v4111 = vunpack.c.l.b16 %v3638
    %v4112 = vunpack.c.h.b16 %v3638
    %v4113 = vunpack.c.l.b16 %v3639
    %v4114 = vunpack.c.h.b16 %v3639
    %v4115 = vunpack.c.l.b16 %v3640
    %v4116 = vunpack.c.h.b16 %v3640
    %v4117 = vunpack.c.l.b16 %v3641
    %v4118 = vunpack.c.h.b16 %v3641
    %v4119 = vunpack.c.l.b16 %v3642
    %v4120 = vunpack.c.h.b16 %v3642
    %v4121 = vunpack.c.l.b16 %v3643
    %v4122 = vunpack.c.h.b16 %v3643
    %v4123 = vunpack.c.l.b16 %v3644
    %v4124 = vunpack.c.h.b16 %v3644
    %v4125 = vunpack.c.l.b16 %v3645
    %v4126 = vunpack.c.h.b16 %v3645
    %v4127 = vunpack.c.l.b16 %v3646
    %v4128 = vunpack.c.h.b16 %v3646
    %v4129 = vunpack.c.l.b16 %v3647
    %v4130 = vunpack.c.h.b16 %v3647
    %v4131 = vunpack.c.l.b16 %v3648
    %v4132 = vunpack.c.h.b16 %v3648
    %v4133 = vunpack.c.l.b16 %v3649
    %v4134 = vunpack.c.h.b16 %v3649
    %v4135 = vunpack.c.l.b16 %v3650
    %v4136 = vunpack.c.h.b16 %v3650
    %v4137 = vunpack.c.l.b16 %v3651
    %v4138 = vunpack.c.h.b16 %v3651
    %v4139 = vunpack.c.l.b16 %v3652
    %v4140 = vunpack.c.h.b16 %v3652
    %v4141 = vunpack.c.l.b16 %v3653
    %v4142 = vunpack.c.h.b16 %v3653
    %v4143 = vunpack.c.l.b16 %v3654
    %v4144 = vunpack.c.h.b16 %v3654
    %v4145 = vunpack.c.l.b16 %v3655
    %v4146 = vunpack.c.h.b16 %v3655
    %v4147 = vunpack.c.l.b16 %v3656
    %v4148 = vunpack.c.h.b16 %v3656
    %v4149 = vunpack.c.l.b16 %v3657
    %v4150 = vunpack.c.h.b16 %v3657
    %v4151 = vunpack.c.l.b16 %v3658
    %v4152 = vunpack.c.h.b16 %v3658
    %v4153 = vunpack.c.l.b16 %v3659
    %v4154 = vunpack.c.h.b16 %v3659
    %v4155 = vunpack.c.l.b16 %v3660
    %v4156 = vunpack.c.h.b16 %v3660
    %v4157 = vunpack.c.l.b16 %v3661
    %v4158 = vunpack.c.h.b16 %v3661
    %v4159 = vunpack.c.l.b16 %v3662
    %v4160 = vunpack.c.h.b16 %v3662
    %v4161 = vunpack.c.l.b16 %v3663
    %v4162 = vunpack.c.h.b16 %v3663
    %v4163 = vunpack.c.l.b16 %v3664
    %v4164 = vunpack.c.h.b16 %v3664
    %v4165 = vunpack.c.l.b16 %v3665
    %v4166 = vunpack.c.h.b16 %v3665
    %v4167 = vunpack.c.l.b16 %v3666
    %v4168 = vunpack.c.h.b16 %v3666
    %v4169 = vunpack.c.l.b16 %v3667
    %v4170 = vunpack.c.h.b16 %v3667
    %v4171 = vunpack.c.l.b16 %v3668
    %v4172 = vunpack.c.h.b16 %v3668
    %v4173 = vunpack.c.l.b16 %v3669
    %v4174 = vunpack.c.h.b16 %v3669
    %v4175 = vunpack.c.l.b16 %v3670
    %v4176 = vunpack.c.h.b16 %v3670
    %v4177 = vunpack.c.l.b16 %v3671
    %v4178 = vunpack.c.h.b16 %v3671
    %v4179 = vunpack.c.l.b16 %v3672
    %v4180 = vunpack.c.h.b16 %v3672
    %v4181 = vunpack.c.l.b16 %v3673
    %v4182 = vunpack.c.h.b16 %v3673
    %v4183 = vunpack.c.l.b16 %v3674
    %v4184 = vunpack.c.h.b16 %v3674
    %v4185 = vunpack.c.l.b16 %v3675
    %v4186 = vunpack.c.h.b16 %v3675
    %v4187 = vunpack.c.l.b16 %v3676
    %v4188 = vunpack.c.h.b16 %v3676
    %v4189 = vunpack.c.l.b16 %v3677
    %v4190 = vunpack.c.h.b16 %v3677
    %v4191 = vunpack.c.l.b16 %v3678
    %v4192 = vunpack.c.h.b16 %v3678
    %v4193 = vunpack.c.l.b16 %v3679
    %v4194 = vunpack.c.h.b16 %v3679
    %v4195 = vunpack.c.l.b16 %v3680
    %v4196 = vunpack.c.h.b16 %v3680
    %v4197 = vunpack.c.l.b16 %v3681
    %v4198 = vunpack.c.h.b16 %v3681
    %v4199 = vunpack.c.l.b16 %v3682
    %v4200 = vunpack.c.h.b16 %v3682
    %v4201 = vunpack.c.l.b16 %v3683
    %v4202 = vunpack.c.h.b16 %v3683
    %v4203 = vunpack.c.l.b16 %v3684
    %v4204 = vunpack.c.h.b16 %v3684
    %v4205 = vunpack.c.l.b16 %v3685
    %v4206 = vunpack.c.h.b16 %v3685
    %v4207 = vunpack.c.l.b16 %v3686
    %v4208 = vunpack.c.h.b16 %v3686
    %v4209 = vunpack.c.l.b16 %v3687
    %v4210 = vunpack.c.h.b16 %v3687
    %v4211 = vunpack.c.l.b16 %v3688
    %v4212 = vunpack.c.h.b16 %v3688
    %v4213 = vunpack.c.l.b16 %v3689
    %v4214 = vunpack.c.h.b16 %v3689
    %v4215 = vunpack.c.l.b16 %v3690
    %v4216 = vunpack.c.h.b16 %v3690
    %v4217 = vunpack.c.l.b16 %v3691
    %v4218 = vunpack.c.h.b16 %v3691
    %v4219 = vunpack.c.l.b16 %v3692
    %v4220 = vunpack.c.h.b16 %v3692
    %v4221 = vunpack.c.l.b16 %v3693
    %v4222 = vunpack.c.h.b16 %v3693
    %v4223 = vunpack.c.l.b16 %v3694
    %v4224 = vunpack.c.h.b16 %v3694
    %v4225 = vunpack.c.l.b16 %v3695
    %v4226 = vunpack.c.h.b16 %v3695
    %v4227 = vunpack.c.l.b16 %v3696
    %v4228 = vunpack.c.h.b16 %v3696
    %v4229 = vunpack.c.l.b16 %v3697
    %v4230 = vunpack.c.h.b16 %v3697
    %v4231 = vunpack.c.l.b16 %v3698
    %v4232 = vunpack.c.h.b16 %v3698
    %v4233 = vunpack.c.l.b16 %v3699
    %v4234 = vunpack.c.h.b16 %v3699
    %v4235 = vunpack.c.l.b16 %v3700
    %v4236 = vunpack.c.h.b16 %v3700
    %v4237 = vunpack.c.l.b16 %v3701
    %v4238 = vunpack.c.h.b16 %v3701
    %v4239 = vunpack.c.l.b16 %v3702
    %v4240 = vunpack.c.h.b16 %v3702
    %v4241 = vunpack.c.l.b16 %v3703
    %v4242 = vunpack.c.h.b16 %v3703
    %v4243 = vpack.c.b16 %v3991, %v3987
    %v4244 = vpack.c.b16 %v3992, %v3988
    %v4245 = vpack.c.b16 %v3993, %v3989
    %v4246 = vpack.c.b16 %v3994, %v3990
    %v4247 = vpack.c.b16 %v3999, %v3995
    %v4248 = vpack.c.b16 %v4000, %v3996
    %v4249 = vpack.c.b16 %v4001, %v3997
    %v4250 = vpack.c.b16 %v4002, %v3998
    %v4251 = vpack.c.b16 %v4007, %v4003
    %v4252 = vpack.c.b16 %v4008, %v4004
    %v4253 = vpack.c.b16 %v4009, %v4005
    %v4254 = vpack.c.b16 %v4010, %v4006
    %v4255 = vpack.c.b16 %v4015, %v4011
    %v4256 = vpack.c.b16 %v4016, %v4012
    %v4257 = vpack.c.b16 %v4017, %v4013
    %v4258 = vpack.c.b16 %v4018, %v4014
    %v4259 = vpack.c.b16 %v4023, %v4019
    %v4260 = vpack.c.b16 %v4024, %v4020
    %v4261 = vpack.c.b16 %v4025, %v4021
    %v4262 = vpack.c.b16 %v4026, %v4022
    %v4263 = vpack.c.b16 %v4031, %v4027
    %v4264 = vpack.c.b16 %v4032, %v4028
    %v4265 = vpack.c.b16 %v4033, %v4029
    %v4266 = vpack.c.b16 %v4034, %v4030
    %v4267 = vpack.c.b16 %v4039, %v4035
    %v4268 = vpack.c.b16 %v4040, %v4036
    %v4269 = vpack.c.b16 %v4041, %v4037
    %v4270 = vpack.c.b16 %v4042, %v4038
    %v4271 = vpack.c.b16 %v4047, %v4043
    %v4272 = vpack.c.b16 %v4048, %v4044
    %v4273 = vpack.c.b16 %v4049, %v4045
    %v4274 = vpack.c.b16 %v4050, %v4046
    %v4275 = vpack.c.b16 %v4055, %v4051
    %v4276 = vpack.c.b16 %v4056, %v4052
    %v4277 = vpack.c.b16 %v4057, %v4053
    %v4278 = vpack.c.b16 %v4058, %v4054
    %v4279 = vpack.c.b16 %v4063, %v4059
    %v4280 = vpack.c.b16 %v4064, %v4060
    %v4281 = vpack.c.b16 %v4065, %v4061
    %v4282 = vpack.c.b16 %v4066, %v4062
    %v4283 = vpack.c.b16 %v4071, %v4067
    %v4284 = vpack.c.b16 %v4072, %v4068
    %v4285 = vpack.c.b16 %v4073, %v4069
    %v4286 = vpack.c.b16 %v4074, %v4070
    %v4287 = vpack.c.b16 %v4079, %v4075
    %v4288 = vpack.c.b16 %v4080, %v4076
    %v4289 = vpack.c.b16 %v4081, %v4077
    %v4290 = vpack.c.b16 %v4082, %v4078
    %v4291 = vpack.c.b16 %v4087, %v4083
    %v4292 = vpack.c.b16 %v4088, %v4084
    %v4293 = vpack.c.b16 %v4089, %v4085
    %v4294 = vpack.c.b16 %v4090, %v4086
    %v4295 = vpack.c.b16 %v4095, %v4091
    %v4296 = vpack.c.b16 %v4096, %v4092
    %v4297 = vpack.c.b16 %v4097, %v4093
    %v4298 = vpack.c.b16 %v4098, %v4094
    %v4299 = vpack.c.b16 %v4103, %v4099
    %v4300 = vpack.c.b16 %v4104, %v4100
    %v4301 = vpack.c.b16 %v4105, %v4101
    %v4302 = vpack.c.b16 %v4106, %v4102
    %v4303 = vpack.c.b16 %v4111, %v4107
    %v4304 = vpack.c.b16 %v4112, %v4108
    %v4305 = vpack.c.b16 %v4113, %v4109
    %v4306 = vpack.c.b16 %v4114, %v4110
    %v4307 = vpack.c.b16 %v4119, %v4115
    %v4308 = vpack.c.b16 %v4120, %v4116
    %v4309 = vpack.c.b16 %v4121, %v4117
    %v4310 = vpack.c.b16 %v4122, %v4118
    %v4311 = vpack.c.b16 %v4127, %v4123
    %v4312 = vpack.c.b16 %v4128, %v4124
    %v4313 = vpack.c.b16 %v4129, %v4125
    %v4314 = vpack.c.b16 %v4130, %v4126
    %v4315 = vpack.c.b16 %v4135, %v4131
    %v4316 = vpack.c.b16 %v4136, %v4132
    %v4317 = vpack.c.b16 %v4137, %v4133
    %v4318 = vpack.c.b16 %v4138, %v4134
    %v4319 = vpack.c.b16 %v4143, %v4139
    %v4320 = vpack.c.b16 %v4144, %v4140
    %v4321 = vpack.c.b16 %v4145, %v4141
    %v4322 = vpack.c.b16 %v4146, %v4142
    %v4323 = vpack.c.b16 %v4151, %v4147
    %v4324 = vpack.c.b16 %v4152, %v4148
    %v4325 = vpack.c.b16 %v4153, %v4149
    %v4326 = vpack.c.b16 %v4154, %v4150
    %v4327 = vpack.c.b16 %v4159, %v4155
    %v4328 = vpack.c.b16 %v4160, %v4156
    %v4329 = vpack.c.b16 %v4161, %v4157
    %v4330 = vpack.c.b16 %v4162, %v4158
    %v4331 = vpack.c.b16 %v4167, %v4163
    %v4332 = vpack.c.b16 %v4168, %v4164
    %v4333 = vpack.c.b16 %v4169, %v4165
    %v4334 = vpack.c.b16 %v4170, %v4166
    %v4335 = vpack.c.b16 %v4175, %v4171
    %v4336 = vpack.c.b16 %v4176, %v4172
    %v4337 = vpack.c.b16 %v4177, %v4173
    %v4338 = vpack.c.b16 %v4178, %v4174
    %v4339 = vpack.c.b16 %v4183, %v4179
    %v4340 = vpack.c.b16 %v4184, %v4180
    %v4341 = vpack.c.b16 %v4185, %v4181
    %v4342 = vpack.c.b16 %v4186, %v4182
    %v4343 = vpack.c.b16 %v4191, %v4187
    %v4344 = vpack.c.b16 %v4192, %v4188
    %v4345 = vpack.c.b16 %v4193, %v4189
    %v4346 = vpack.c.b16 %v4194, %v4190
    %v4347 = vpack.c.b16 %v4199, %v4195
    %v4348 = vpack.c.b16 %v4200, %v4196
    %v4349 = vpack.c.b16 %v4201, %v4197
    %v4350 = vpack.c.b16 %v4202, %v4198
    %v4351 = vpack.c.b16 %v4207, %v4203
    %v4352 = vpack.c.b16 %v4208, %v4204
    %v4353 = vpack.c.b16 %v4209, %v4205
    %v4354 = vpack.c.b16 %v4210, %v4206
    %v4355 = vpack.c.b16 %v4215, %v4211
    %v4356 = vpack.c.b16 %v4216, %v4212
    %v4357 = vpack.c.b16 %v4217, %v4213
    %v4358 = vpack.c.b16 %v4218, %v4214
    %v4359 = vpack.c.b16 %v4223, %v4219
    %v4360 = vpack.c.b16 %v4224, %v4220
    %v4361 = vpack.c.b16 %v4225, %v4221
    %v4362 = vpack.c.b16 %v4226, %v4222
    %v4363 = vpack.c.b16 %v4231, %v4227
    %v4364 = vpack.c.b16 %v4232, %v4228
    %v4365 = vpack.c.b16 %v4233, %v4229
    %v4366 = vpack.c.b16 %v4234, %v4230
    %v4367 = vpack.c.b16 %v4239, %v4235
    %v4368 = vpack.c.b16 %v4240, %v4236
    %v4369 = vpack.c.b16 %v4241, %v4237
    %v4370 = vpack.c.b16 %v4242, %v4238
    %4499 = vmatprep.subr.bf16.mxu0 %v4244
    %4500 = vmatpush1.bf16.msra.mxu0 %v4243
    %4501 = vmatprep.subr.bf16.mxu0 %v4248
    %4502 = vmatpush1.bf16.msra.mxu0 %v4247
    %4503 = vmatprep.subr.bf16.mxu0 %v4252
    %4504 = vmatpush1.bf16.msra.mxu0 %v4251
    %4505 = vmatprep.subr.bf16.mxu0 %v4256
    %4506 = vmatpush1.bf16.msra.mxu0 %v4255
    %4507 = vmatprep.subr.bf16.mxu0 %v4260
    %4508 = vmatpush1.bf16.msra.mxu0 %v4259
    %4509 = vmatprep.subr.bf16.mxu0 %v4264
    %4510 = vmatpush1.bf16.msra.mxu0 %v4263
    %4511 = vmatprep.subr.bf16.mxu0 %v4268
    %4512 = vmatpush1.bf16.msra.mxu0 %v4267
    %4513 = vmatprep.subr.bf16.mxu0 %v4272
    %4514 = vmatpush1.bf16.msra.mxu0 %v4271
    %4515 = vmatprep.subr.bf16.mxu0 %v4276
    %4516 = vmatpush1.bf16.msra.mxu0 %v4275
    %4517 = vmatprep.subr.bf16.mxu0 %v4280
    %4518 = vmatpush1.bf16.msra.mxu0 %v4279
    %4519 = vmatprep.subr.bf16.mxu0 %v4284
    %4520 = vmatpush1.bf16.msra.mxu0 %v4283
    %4521 = vmatprep.subr.bf16.mxu0 %v4288
    %4522 = vmatpush1.bf16.msra.mxu0 %v4287
    %4523 = vmatprep.subr.bf16.mxu0 %v4292
    %4524 = vmatpush1.bf16.msra.mxu0 %v4291
    %4525 = vmatprep.subr.bf16.mxu0 %v4296
    %4526 = vmatpush1.bf16.msra.mxu0 %v4295
    %4527 = vmatprep.subr.bf16.mxu0 %v4300
    %4528 = vmatpush1.bf16.msra.mxu0 %v4299
    %4529 = vmatprep.subr.bf16.mxu0 %v4304
    %4530 = vmatpush1.bf16.msra.mxu0 %v4303
    %4531 = vmatprep.mubr.bf16.mxu0 %v3833
    %4532 = vmatmul.mubr.bf16.gmra.mrb[0].mxu0 %v3832
    %v4533 = vpop.f32.mrb[0].mxu0
    %v4534 = vadd.f32 %v3842, %v4533
    %v4535 = vpop.f32.mrb[0].mxu0
    %v4536 = vadd.f32 %v3846, %v4535
    %v4537 = vpop.f32.mrb[0].mxu0
    %v4538 = vpop.f32.mrb[0].mxu0
    %4539 = vdwg.mxu0
    %4540 = vmatprep.subr.bf16.mxu0 %v4308
    %4541 = vmatpush1.bf16.msra.mxu0 %v4307
    %4542 = vmatprep.subr.bf16.mxu0 %v4312
    %4543 = vmatpush1.bf16.msra.mxu0 %v4311
    %4544 = vmatprep.subr.bf16.mxu0 %v4316
    %4545 = vmatpush1.bf16.msra.mxu0 %v4315
    %4546 = vmatprep.subr.bf16.mxu0 %v4320
    %4547 = vmatpush1.bf16.msra.mxu0 %v4319
    %4548 = vmatprep.subr.bf16.mxu0 %v4324
    %4549 = vmatpush1.bf16.msra.mxu0 %v4323
    %4550 = vmatprep.subr.bf16.mxu0 %v4328
    %4551 = vmatpush1.bf16.msra.mxu0 %v4327
    %4552 = vmatprep.subr.bf16.mxu0 %v4332
    %4553 = vmatpush1.bf16.msra.mxu0 %v4331
    %4554 = vmatprep.subr.bf16.mxu0 %v4336
    %4555 = vmatpush1.bf16.msra.mxu0 %v4335
    %4556 = vmatprep.subr.bf16.mxu0 %v4340
    %4557 = vmatpush1.bf16.msra.mxu0 %v4339
    %4558 = vmatprep.subr.bf16.mxu0 %v4344
    %4559 = vmatpush1.bf16.msra.mxu0 %v4343
    %4560 = vmatprep.subr.bf16.mxu0 %v4348
    %4561 = vmatpush1.bf16.msra.mxu0 %v4347
    %4562 = vmatprep.subr.bf16.mxu0 %v4352
    %4563 = vmatpush1.bf16.msra.mxu0 %v4351
    %4564 = vmatprep.subr.bf16.mxu0 %v4356
    %4565 = vmatpush1.bf16.msra.mxu0 %v4355
    %4566 = vmatprep.subr.bf16.mxu0 %v4360
    %4567 = vmatpush1.bf16.msra.mxu0 %v4359
    %4568 = vmatprep.subr.bf16.mxu0 %v4364
    %4569 = vmatpush1.bf16.msra.mxu0 %v4363
    %4570 = vmatprep.subr.bf16.mxu0 %v4368
    %4571 = vmatpush1.bf16.msra.mxu0 %v4367
    %4572 = vmatprep.mubr.bf16.mxu0 %v3835
    %4573 = vmatmul.mubr.bf16.gmra.mrb[0].mxu0 %v3834
    %v4574 = vpop.f32.mrb[0].mxu0
    %v4575 = vadd.f32 %v4534, %v4574
    %v4576 = vpop.f32.mrb[0].mxu0
    %v4577 = vadd.f32 %v4536, %v4576
    %v4578 = vpop.f32.mrb[0].mxu0
    %v4579 = vpop.f32.mrb[0].mxu0
    %4580 = vdwg.mxu0
    %4581 = vmatprep.subr.bf16.mxu0 %v4246
    %4582 = vmatpush1.bf16.msra.mxu0 %v4245
    %4583 = vmatprep.subr.bf16.mxu0 %v4250
    %4584 = vmatpush1.bf16.msra.mxu0 %v4249
    %4585 = vmatprep.subr.bf16.mxu0 %v4254
    %4586 = vmatpush1.bf16.msra.mxu0 %v4253
    %4587 = vmatprep.subr.bf16.mxu0 %v4258
    %4588 = vmatpush1.bf16.msra.mxu0 %v4257
    %4589 = vmatprep.subr.bf16.mxu0 %v4262
    %4590 = vmatpush1.bf16.msra.mxu0 %v4261
    %4591 = vmatprep.subr.bf16.mxu0 %v4266
    %4592 = vmatpush1.bf16.msra.mxu0 %v4265
    %4593 = vmatprep.subr.bf16.mxu0 %v4270
    %4594 = vmatpush1.bf16.msra.mxu0 %v4269
    %4595 = vmatprep.subr.bf16.mxu0 %v4274
    %4596 = vmatpush1.bf16.msra.mxu0 %v4273
    %4597 = vmatprep.subr.bf16.mxu0 %v4278
    %4598 = vmatpush1.bf16.msra.mxu0 %v4277
    %4599 = vmatprep.subr.bf16.mxu0 %v4282
    %4600 = vmatpush1.bf16.msra.mxu0 %v4281
    %4601 = vmatprep.subr.bf16.mxu0 %v4286
    %4602 = vmatpush1.bf16.msra.mxu0 %v4285
    %4603 = vmatprep.subr.bf16.mxu0 %v4290
    %4604 = vmatpush1.bf16.msra.mxu0 %v4289
    %4605 = vmatprep.subr.bf16.mxu0 %v4294
    %4606 = vmatpush1.bf16.msra.mxu0 %v4293
    %4607 = vmatprep.subr.bf16.mxu0 %v4298
    %4608 = vmatpush1.bf16.msra.mxu0 %v4297
    %4609 = vmatprep.subr.bf16.mxu0 %v4302
    %4610 = vmatpush1.bf16.msra.mxu0 %v4301
    %4611 = vmatprep.subr.bf16.mxu0 %v4306
    %4612 = vmatpush1.bf16.msra.mxu0 %v4305
    %4613 = vmatprep.mubr.bf16.mxu0 %v3833
    %4614 = vmatmul.mubr.bf16.gmra.mrb[0].mxu0 %v3832
    %v4615 = vpop.f32.mrb[0].mxu0
    %v4616 = vadd.f32 %v3850, %v4615
    %v4617 = vpop.f32.mrb[0].mxu0
    %v4618 = vadd.f32 %v3854, %v4617
    %v4619 = vpop.f32.mrb[0].mxu0
    %v4620 = vpop.f32.mrb[0].mxu0
    %4621 = vdwg.mxu0
    %4622 = vmatprep.subr.bf16.mxu0 %v4310
    %4623 = vmatpush1.bf16.msra.mxu0 %v4309
    %4624 = vmatprep.subr.bf16.mxu0 %v4314
    %4625 = vmatpush1.bf16.msra.mxu0 %v4313
    %4626 = vmatprep.subr.bf16.mxu0 %v4318
    %4627 = vmatpush1.bf16.msra.mxu0 %v4317
    %4628 = vmatprep.subr.bf16.mxu0 %v4322
    %4629 = vmatpush1.bf16.msra.mxu0 %v4321
    %4630 = vmatprep.subr.bf16.mxu0 %v4326
    %4631 = vmatpush1.bf16.msra.mxu0 %v4325
    %4632 = vmatprep.subr.bf16.mxu0 %v4330
    %4633 = vmatpush1.bf16.msra.mxu0 %v4329
    %4634 = vmatprep.subr.bf16.mxu0 %v4334
    %4635 = vmatpush1.bf16.msra.mxu0 %v4333
    %4636 = vmatprep.subr.bf16.mxu0 %v4338
    %4637 = vmatpush1.bf16.msra.mxu0 %v4337
    %4638 = vmatprep.subr.bf16.mxu0 %v4342
    %4639 = vmatpush1.bf16.msra.mxu0 %v4341
    %4640 = vmatprep.subr.bf16.mxu0 %v4346
    %4641 = vmatpush1.bf16.msra.mxu0 %v4345
    %4642 = vmatprep.subr.bf16.mxu0 %v4350
    %4643 = vmatpush1.bf16.msra.mxu0 %v4349
    %4644 = vmatprep.subr.bf16.mxu0 %v4354
    %4645 = vmatpush1.bf16.msra.mxu0 %v4353
    %4646 = vmatprep.subr.bf16.mxu0 %v4358
    %4647 = vmatpush1.bf16.msra.mxu0 %v4357
    %4648 = vmatprep.subr.bf16.mxu0 %v4362
    %4649 = vmatpush1.bf16.msra.mxu0 %v4361
    %4650 = vmatprep.subr.bf16.mxu0 %v4366
    %4651 = vmatpush1.bf16.msra.mxu0 %v4365
    %4652 = vmatprep.subr.bf16.mxu0 %v4370
    %4653 = vmatpush1.bf16.msra.mxu0 %v4369
    %4654 = vmatprep.mubr.bf16.mxu0 %v3835
    %4655 = vmatmul.mubr.bf16.gmra.mrb[0].mxu0 %v3834
    %v4656 = vpop.f32.mrb[0].mxu0
    %v4657 = vadd.f32 %v4616, %v4656
    %v4658 = vpop.f32.mrb[0].mxu0
    %v4659 = vadd.f32 %v4618, %v4658
    %v4660 = vpop.f32.mrb[0].mxu0
    %v4661 = vpop.f32.mrb[0].mxu0
    %4662 = vdwg.mxu0
    %v4663 = vmax.f32 %v4575, 0.0
    %v4664 = vmax.f32 %v4577, 0.0
    %v4665 = vmax.f32 %v4657, 0.0
    %v4666 = vmax.f32 %v4659, 0.0
    %v4667 = vpack.c.bf16 %v4663, %v4663
    %v4668 = vpack.c.bf16 %v4664, %v4664
    %v4669 = vpack.c.bf16 %v4665, %v4665
    %v4670 = vpack.c.bf16 %v4666, %v4666
    %s4671 = scalar_lea.vmem [#allocation8], 5
    %v4672 = vld [vmem:[%s4671] ss:$8 sm:$0xf]
    %v4674 = vlaneseq
    %v4675 = vshrl.u32 %v4674, 7
    %v4676 = vsub.s32 0, %v4675
    %v4677 = vrot.slane %v4672, %v4676
    %v4678 = vlaneseq
    %v4679 = vshrl.u32 %v4678, 7
    %v4680 = vsub.s32 1, %v4679
    %v4681 = vrot.slane %v4672, %v4680
    %v4682 = vlaneseq
    %v4683 = vshrl.u32 %v4682, 7
    %v4684 = vsub.s32 2, %v4683
    %v4685 = vrot.slane %v4672, %v4684
    %v4686 = vlaneseq
    %v4687 = vshrl.u32 %v4686, 7
    %v4688 = vsub.s32 3, %v4687
    %v4689 = vrot.slane %v4672, %v4688
    %v4822 = vunpack.c.l.b16 %v3704
    %v4823 = vunpack.c.h.b16 %v3704
    %v4824 = vunpack.c.l.b16 %v3705
    %v4825 = vunpack.c.h.b16 %v3705
    %v4826 = vunpack.c.l.b16 %v3706
    %v4827 = vunpack.c.h.b16 %v3706
    %v4828 = vunpack.c.l.b16 %v3707
    %v4829 = vunpack.c.h.b16 %v3707
    %v4830 = vunpack.c.l.b16 %v3708
    %v4831 = vunpack.c.h.b16 %v3708
    %v4832 = vunpack.c.l.b16 %v3709
    %v4833 = vunpack.c.h.b16 %v3709
    %v4834 = vunpack.c.l.b16 %v3710
    %v4835 = vunpack.c.h.b16 %v3710
    %v4836 = vunpack.c.l.b16 %v3711
    %v4837 = vunpack.c.h.b16 %v3711
    %v4838 = vunpack.c.l.b16 %v3712
    %v4839 = vunpack.c.h.b16 %v3712
    %v4840 = vunpack.c.l.b16 %v3713
    %v4841 = vunpack.c.h.b16 %v3713
    %v4842 = vunpack.c.l.b16 %v3714
    %v4843 = vunpack.c.h.b16 %v3714
    %v4844 = vunpack.c.l.b16 %v3715
    %v4845 = vunpack.c.h.b16 %v3715
    %v4846 = vunpack.c.l.b16 %v3716
    %v4847 = vunpack.c.h.b16 %v3716
    %v4848 = vunpack.c.l.b16 %v3717
    %v4849 = vunpack.c.h.b16 %v3717
    %v4850 = vunpack.c.l.b16 %v3718
    %v4851 = vunpack.c.h.b16 %v3718
    %v4852 = vunpack.c.l.b16 %v3719
    %v4853 = vunpack.c.h.b16 %v3719
    %v4854 = vunpack.c.l.b16 %v3720
    %v4855 = vunpack.c.h.b16 %v3720
    %v4856 = vunpack.c.l.b16 %v3721
    %v4857 = vunpack.c.h.b16 %v3721
    %v4858 = vunpack.c.l.b16 %v3722
    %v4859 = vunpack.c.h.b16 %v3722
    %v4860 = vunpack.c.l.b16 %v3723
    %v4861 = vunpack.c.h.b16 %v3723
    %v4862 = vunpack.c.l.b16 %v3724
    %v4863 = vunpack.c.h.b16 %v3724
    %v4864 = vunpack.c.l.b16 %v3725
    %v4865 = vunpack.c.h.b16 %v3725
    %v4866 = vunpack.c.l.b16 %v3726
    %v4867 = vunpack.c.h.b16 %v3726
    %v4868 = vunpack.c.l.b16 %v3727
    %v4869 = vunpack.c.h.b16 %v3727
    %v4870 = vunpack.c.l.b16 %v3728
    %v4871 = vunpack.c.h.b16 %v3728
    %v4872 = vunpack.c.l.b16 %v3729
    %v4873 = vunpack.c.h.b16 %v3729
    %v4874 = vunpack.c.l.b16 %v3730
    %v4875 = vunpack.c.h.b16 %v3730
    %v4876 = vunpack.c.l.b16 %v3731
    %v4877 = vunpack.c.h.b16 %v3731
    %v4878 = vunpack.c.l.b16 %v3732
    %v4879 = vunpack.c.h.b16 %v3732
    %v4880 = vunpack.c.l.b16 %v3733
    %v4881 = vunpack.c.h.b16 %v3733
    %v4882 = vunpack.c.l.b16 %v3734
    %v4883 = vunpack.c.h.b16 %v3734
    %v4884 = vunpack.c.l.b16 %v3735
    %v4885 = vunpack.c.h.b16 %v3735
    %v4886 = vunpack.c.l.b16 %v3736
    %v4887 = vunpack.c.h.b16 %v3736
    %v4888 = vunpack.c.l.b16 %v3737
    %v4889 = vunpack.c.h.b16 %v3737
    %v4890 = vunpack.c.l.b16 %v3738
    %v4891 = vunpack.c.h.b16 %v3738
    %v4892 = vunpack.c.l.b16 %v3739
    %v4893 = vunpack.c.h.b16 %v3739
    %v4894 = vunpack.c.l.b16 %v3740
    %v4895 = vunpack.c.h.b16 %v3740
    %v4896 = vunpack.c.l.b16 %v3741
    %v4897 = vunpack.c.h.b16 %v3741
    %v4898 = vunpack.c.l.b16 %v3742
    %v4899 = vunpack.c.h.b16 %v3742
    %v4900 = vunpack.c.l.b16 %v3743
    %v4901 = vunpack.c.h.b16 %v3743
    %v4902 = vunpack.c.l.b16 %v3744
    %v4903 = vunpack.c.h.b16 %v3744
    %v4904 = vunpack.c.l.b16 %v3745
    %v4905 = vunpack.c.h.b16 %v3745
    %v4906 = vunpack.c.l.b16 %v3746
    %v4907 = vunpack.c.h.b16 %v3746
    %v4908 = vunpack.c.l.b16 %v3747
    %v4909 = vunpack.c.h.b16 %v3747
    %v4910 = vunpack.c.l.b16 %v3748
    %v4911 = vunpack.c.h.b16 %v3748
    %v4912 = vunpack.c.l.b16 %v3749
    %v4913 = vunpack.c.h.b16 %v3749
    %v4914 = vunpack.c.l.b16 %v3750
    %v4915 = vunpack.c.h.b16 %v3750
    %v4916 = vunpack.c.l.b16 %v3751
    %v4917 = vunpack.c.h.b16 %v3751
    %v4918 = vunpack.c.l.b16 %v3752
    %v4919 = vunpack.c.h.b16 %v3752
    %v4920 = vunpack.c.l.b16 %v3753
    %v4921 = vunpack.c.h.b16 %v3753
    %v4922 = vunpack.c.l.b16 %v3754
    %v4923 = vunpack.c.h.b16 %v3754
    %v4924 = vunpack.c.l.b16 %v3755
    %v4925 = vunpack.c.h.b16 %v3755
    %v4926 = vunpack.c.l.b16 %v3756
    %v4927 = vunpack.c.h.b16 %v3756
    %v4928 = vunpack.c.l.b16 %v3757
    %v4929 = vunpack.c.h.b16 %v3757
    %v4930 = vunpack.c.l.b16 %v3758
    %v4931 = vunpack.c.h.b16 %v3758
    %v4932 = vunpack.c.l.b16 %v3759
    %v4933 = vunpack.c.h.b16 %v3759
    %v4934 = vunpack.c.l.b16 %v3760
    %v4935 = vunpack.c.h.b16 %v3760
    %v4936 = vunpack.c.l.b16 %v3761
    %v4937 = vunpack.c.h.b16 %v3761
    %v4938 = vunpack.c.l.b16 %v3762
    %v4939 = vunpack.c.h.b16 %v3762
    %v4940 = vunpack.c.l.b16 %v3763
    %v4941 = vunpack.c.h.b16 %v3763
    %v4942 = vunpack.c.l.b16 %v3764
    %v4943 = vunpack.c.h.b16 %v3764
    %v4944 = vunpack.c.l.b16 %v3765
    %v4945 = vunpack.c.h.b16 %v3765
    %v4946 = vunpack.c.l.b16 %v3766
    %v4947 = vunpack.c.h.b16 %v3766
    %v4948 = vunpack.c.l.b16 %v3767
    %v4949 = vunpack.c.h.b16 %v3767
    %v4950 = vunpack.c.l.b16 %v3768
    %v4951 = vunpack.c.h.b16 %v3768
    %v4952 = vunpack.c.l.b16 %v3769
    %v4953 = vunpack.c.h.b16 %v3769
    %v4954 = vunpack.c.l.b16 %v3770
    %v4955 = vunpack.c.h.b16 %v3770
    %v4956 = vunpack.c.l.b16 %v3771
    %v4957 = vunpack.c.h.b16 %v3771
    %v4958 = vunpack.c.l.b16 %v3772
    %v4959 = vunpack.c.h.b16 %v3772
    %v4960 = vunpack.c.l.b16 %v3773
    %v4961 = vunpack.c.h.b16 %v3773
    %v4962 = vunpack.c.l.b16 %v3774
    %v4963 = vunpack.c.h.b16 %v3774
    %v4964 = vunpack.c.l.b16 %v3775
    %v4965 = vunpack.c.h.b16 %v3775
    %v4966 = vunpack.c.l.b16 %v3776
    %v4967 = vunpack.c.h.b16 %v3776
    %v4968 = vunpack.c.l.b16 %v3777
    %v4969 = vunpack.c.h.b16 %v3777
    %v4970 = vunpack.c.l.b16 %v3778
    %v4971 = vunpack.c.h.b16 %v3778
    %v4972 = vunpack.c.l.b16 %v3779
    %v4973 = vunpack.c.h.b16 %v3779
    %v4974 = vunpack.c.l.b16 %v3780
    %v4975 = vunpack.c.h.b16 %v3780
    %v4976 = vunpack.c.l.b16 %v3781
    %v4977 = vunpack.c.h.b16 %v3781
    %v4978 = vunpack.c.l.b16 %v3782
    %v4979 = vunpack.c.h.b16 %v3782
    %v4980 = vunpack.c.l.b16 %v3783
    %v4981 = vunpack.c.h.b16 %v3783
    %v4982 = vunpack.c.l.b16 %v3784
    %v4983 = vunpack.c.h.b16 %v3784
    %v4984 = vunpack.c.l.b16 %v3785
    %v4985 = vunpack.c.h.b16 %v3785
    %v4986 = vunpack.c.l.b16 %v3786
    %v4987 = vunpack.c.h.b16 %v3786
    %v4988 = vunpack.c.l.b16 %v3787
    %v4989 = vunpack.c.h.b16 %v3787
    %v4990 = vunpack.c.l.b16 %v3788
    %v4991 = vunpack.c.h.b16 %v3788
    %v4992 = vunpack.c.l.b16 %v3789
    %v4993 = vunpack.c.h.b16 %v3789
    %v4994 = vunpack.c.l.b16 %v3790
    %v4995 = vunpack.c.h.b16 %v3790
    %v4996 = vunpack.c.l.b16 %v3791
    %v4997 = vunpack.c.h.b16 %v3791
    %v4998 = vunpack.c.l.b16 %v3792
    %v4999 = vunpack.c.h.b16 %v3792
    %v5000 = vunpack.c.l.b16 %v3793
    %v5001 = vunpack.c.h.b16 %v3793
    %v5002 = vunpack.c.l.b16 %v3794
    %v5003 = vunpack.c.h.b16 %v3794
    %v5004 = vunpack.c.l.b16 %v3795
    %v5005 = vunpack.c.h.b16 %v3795
    %v5006 = vunpack.c.l.b16 %v3796
    %v5007 = vunpack.c.h.b16 %v3796
    %v5008 = vunpack.c.l.b16 %v3797
    %v5009 = vunpack.c.h.b16 %v3797
    %v5010 = vunpack.c.l.b16 %v3798
    %v5011 = vunpack.c.h.b16 %v3798
    %v5012 = vunpack.c.l.b16 %v3799
    %v5013 = vunpack.c.h.b16 %v3799
    %v5014 = vunpack.c.l.b16 %v3800
    %v5015 = vunpack.c.h.b16 %v3800
    %v5016 = vunpack.c.l.b16 %v3801
    %v5017 = vunpack.c.h.b16 %v3801
    %v5018 = vunpack.c.l.b16 %v3802
    %v5019 = vunpack.c.h.b16 %v3802
    %v5020 = vunpack.c.l.b16 %v3803
    %v5021 = vunpack.c.h.b16 %v3803
    %v5022 = vunpack.c.l.b16 %v3804
    %v5023 = vunpack.c.h.b16 %v3804
    %v5024 = vunpack.c.l.b16 %v3805
    %v5025 = vunpack.c.h.b16 %v3805
    %v5026 = vunpack.c.l.b16 %v3806
    %v5027 = vunpack.c.h.b16 %v3806
    %v5028 = vunpack.c.l.b16 %v3807
    %v5029 = vunpack.c.h.b16 %v3807
    %v5030 = vunpack.c.l.b16 %v3808
    %v5031 = vunpack.c.h.b16 %v3808
    %v5032 = vunpack.c.l.b16 %v3809
    %v5033 = vunpack.c.h.b16 %v3809
    %v5034 = vunpack.c.l.b16 %v3810
    %v5035 = vunpack.c.h.b16 %v3810
    %v5036 = vunpack.c.l.b16 %v3811
    %v5037 = vunpack.c.h.b16 %v3811
    %v5038 = vunpack.c.l.b16 %v3812
    %v5039 = vunpack.c.h.b16 %v3812
    %v5040 = vunpack.c.l.b16 %v3813
    %v5041 = vunpack.c.h.b16 %v3813
    %v5042 = vunpack.c.l.b16 %v3814
    %v5043 = vunpack.c.h.b16 %v3814
    %v5044 = vunpack.c.l.b16 %v3815
    %v5045 = vunpack.c.h.b16 %v3815
    %v5046 = vunpack.c.l.b16 %v3816
    %v5047 = vunpack.c.h.b16 %v3816
    %v5048 = vunpack.c.l.b16 %v3817
    %v5049 = vunpack.c.h.b16 %v3817
    %v5050 = vunpack.c.l.b16 %v3818
    %v5051 = vunpack.c.h.b16 %v3818
    %v5052 = vunpack.c.l.b16 %v3819
    %v5053 = vunpack.c.h.b16 %v3819
    %v5054 = vunpack.c.l.b16 %v3820
    %v5055 = vunpack.c.h.b16 %v3820
    %v5056 = vunpack.c.l.b16 %v3821
    %v5057 = vunpack.c.h.b16 %v3821
    %v5058 = vunpack.c.l.b16 %v3822
    %v5059 = vunpack.c.h.b16 %v3822
    %v5060 = vunpack.c.l.b16 %v3823
    %v5061 = vunpack.c.h.b16 %v3823
    %v5062 = vunpack.c.l.b16 %v3824
    %v5063 = vunpack.c.h.b16 %v3824
    %v5064 = vunpack.c.l.b16 %v3825
    %v5065 = vunpack.c.h.b16 %v3825
    %v5066 = vunpack.c.l.b16 %v3826
    %v5067 = vunpack.c.h.b16 %v3826
    %v5068 = vunpack.c.l.b16 %v3827
    %v5069 = vunpack.c.h.b16 %v3827
    %v5070 = vunpack.c.l.b16 %v3828
    %v5071 = vunpack.c.h.b16 %v3828
    %v5072 = vunpack.c.l.b16 %v3829
    %v5073 = vunpack.c.h.b16 %v3829
    %v5074 = vunpack.c.l.b16 %v3830
    %v5075 = vunpack.c.h.b16 %v3830
    %v5076 = vunpack.c.l.b16 %v3831
    %v5077 = vunpack.c.h.b16 %v3831
    %v5078 = vpack.c.b16 %v4826, %v4822
    %v5079 = vpack.c.b16 %v4827, %v4823
    %v5080 = vpack.c.b16 %v4828, %v4824
    %v5081 = vpack.c.b16 %v4829, %v4825
    %v5082 = vpack.c.b16 %v4834, %v4830
    %v5083 = vpack.c.b16 %v4835, %v4831
    %v5084 = vpack.c.b16 %v4836, %v4832
    %v5085 = vpack.c.b16 %v4837, %v4833
    %v5086 = vpack.c.b16 %v4842, %v4838
    %v5087 = vpack.c.b16 %v4843, %v4839
    %v5088 = vpack.c.b16 %v4844, %v4840
    %v5089 = vpack.c.b16 %v4845, %v4841
    %v5090 = vpack.c.b16 %v4850, %v4846
    %v5091 = vpack.c.b16 %v4851, %v4847
    %v5092 = vpack.c.b16 %v4852, %v4848
    %v5093 = vpack.c.b16 %v4853, %v4849
    %v5094 = vpack.c.b16 %v4858, %v4854
    %v5095 = vpack.c.b16 %v4859, %v4855
    %v5096 = vpack.c.b16 %v4860, %v4856
    %v5097 = vpack.c.b16 %v4861, %v4857
    %v5098 = vpack.c.b16 %v4866, %v4862
    %v5099 = vpack.c.b16 %v4867, %v4863
    %v5100 = vpack.c.b16 %v4868, %v4864
    %v5101 = vpack.c.b16 %v4869, %v4865
    %v5102 = vpack.c.b16 %v4874, %v4870
    %v5103 = vpack.c.b16 %v4875, %v4871
    %v5104 = vpack.c.b16 %v4876, %v4872
    %v5105 = vpack.c.b16 %v4877, %v4873
    %v5106 = vpack.c.b16 %v4882, %v4878
    %v5107 = vpack.c.b16 %v4883, %v4879
    %v5108 = vpack.c.b16 %v4884, %v4880
    %v5109 = vpack.c.b16 %v4885, %v4881
    %v5110 = vpack.c.b16 %v4890, %v4886
    %v5111 = vpack.c.b16 %v4891, %v4887
    %v5112 = vpack.c.b16 %v4892, %v4888
    %v5113 = vpack.c.b16 %v4893, %v4889
    %v5114 = vpack.c.b16 %v4898, %v4894
    %v5115 = vpack.c.b16 %v4899, %v4895
    %v5116 = vpack.c.b16 %v4900, %v4896
    %v5117 = vpack.c.b16 %v4901, %v4897
    %v5118 = vpack.c.b16 %v4906, %v4902
    %v5119 = vpack.c.b16 %v4907, %v4903
    %v5120 = vpack.c.b16 %v4908, %v4904
    %v5121 = vpack.c.b16 %v4909, %v4905
    %v5122 = vpack.c.b16 %v4914, %v4910
    %v5123 = vpack.c.b16 %v4915, %v4911
    %v5124 = vpack.c.b16 %v4916, %v4912
    %v5125 = vpack.c.b16 %v4917, %v4913
    %v5126 = vpack.c.b16 %v4922, %v4918
    %v5127 = vpack.c.b16 %v4923, %v4919
    %v5128 = vpack.c.b16 %v4924, %v4920
    %v5129 = vpack.c.b16 %v4925, %v4921
    %v5130 = vpack.c.b16 %v4930, %v4926
    %v5131 = vpack.c.b16 %v4931, %v4927
    %v5132 = vpack.c.b16 %v4932, %v4928
    %v5133 = vpack.c.b16 %v4933, %v4929
    %v5134 = vpack.c.b16 %v4938, %v4934
    %v5135 = vpack.c.b16 %v4939, %v4935
    %v5136 = vpack.c.b16 %v4940, %v4936
    %v5137 = vpack.c.b16 %v4941, %v4937
    %v5138 = vpack.c.b16 %v4946, %v4942
    %v5139 = vpack.c.b16 %v4947, %v4943
    %v5140 = vpack.c.b16 %v4948, %v4944
    %v5141 = vpack.c.b16 %v4949, %v4945
    %v5142 = vpack.c.b16 %v4954, %v4950
    %v5143 = vpack.c.b16 %v4955, %v4951
    %v5144 = vpack.c.b16 %v4956, %v4952
    %v5145 = vpack.c.b16 %v4957, %v4953
    %v5146 = vpack.c.b16 %v4962, %v4958
    %v5147 = vpack.c.b16 %v4963, %v4959
    %v5148 = vpack.c.b16 %v4964, %v4960
    %v5149 = vpack.c.b16 %v4965, %v4961
    %v5150 = vpack.c.b16 %v4970, %v4966
    %v5151 = vpack.c.b16 %v4971, %v4967
    %v5152 = vpack.c.b16 %v4972, %v4968
    %v5153 = vpack.c.b16 %v4973, %v4969
    %v5154 = vpack.c.b16 %v4978, %v4974
    %v5155 = vpack.c.b16 %v4979, %v4975
    %v5156 = vpack.c.b16 %v4980, %v4976
    %v5157 = vpack.c.b16 %v4981, %v4977
    %v5158 = vpack.c.b16 %v4986, %v4982
    %v5159 = vpack.c.b16 %v4987, %v4983
    %v5160 = vpack.c.b16 %v4988, %v4984
    %v5161 = vpack.c.b16 %v4989, %v4985
    %v5162 = vpack.c.b16 %v4994, %v4990
    %v5163 = vpack.c.b16 %v4995, %v4991
    %v5164 = vpack.c.b16 %v4996, %v4992
    %v5165 = vpack.c.b16 %v4997, %v4993
    %v5166 = vpack.c.b16 %v5002, %v4998
    %v5167 = vpack.c.b16 %v5003, %v4999
    %v5168 = vpack.c.b16 %v5004, %v5000
    %v5169 = vpack.c.b16 %v5005, %v5001
    %v5170 = vpack.c.b16 %v5010, %v5006
    %v5171 = vpack.c.b16 %v5011, %v5007
    %v5172 = vpack.c.b16 %v5012, %v5008
    %v5173 = vpack.c.b16 %v5013, %v5009
    %v5174 = vpack.c.b16 %v5018, %v5014
    %v5175 = vpack.c.b16 %v5019, %v5015
    %v5176 = vpack.c.b16 %v5020, %v5016
    %v5177 = vpack.c.b16 %v5021, %v5017
    %v5178 = vpack.c.b16 %v5026, %v5022
    %v5179 = vpack.c.b16 %v5027, %v5023
    %v5180 = vpack.c.b16 %v5028, %v5024
    %v5181 = vpack.c.b16 %v5029, %v5025
    %v5182 = vpack.c.b16 %v5034, %v5030
    %v5183 = vpack.c.b16 %v5035, %v5031
    %v5184 = vpack.c.b16 %v5036, %v5032
    %v5185 = vpack.c.b16 %v5037, %v5033
    %v5186 = vpack.c.b16 %v5042, %v5038
    %v5187 = vpack.c.b16 %v5043, %v5039
    %v5188 = vpack.c.b16 %v5044, %v5040
    %v5189 = vpack.c.b16 %v5045, %v5041
    %v5190 = vpack.c.b16 %v5050, %v5046
    %v5191 = vpack.c.b16 %v5051, %v5047
    %v5192 = vpack.c.b16 %v5052, %v5048
    %v5193 = vpack.c.b16 %v5053, %v5049
    %v5194 = vpack.c.b16 %v5058, %v5054
    %v5195 = vpack.c.b16 %v5059, %v5055
    %v5196 = vpack.c.b16 %v5060, %v5056
    %v5197 = vpack.c.b16 %v5061, %v5057
    %v5198 = vpack.c.b16 %v5066, %v5062
    %v5199 = vpack.c.b16 %v5067, %v5063
    %v5200 = vpack.c.b16 %v5068, %v5064
    %v5201 = vpack.c.b16 %v5069, %v5065
    %v5202 = vpack.c.b16 %v5074, %v5070
    %v5203 = vpack.c.b16 %v5075, %v5071
    %v5204 = vpack.c.b16 %v5076, %v5072
    %v5205 = vpack.c.b16 %v5077, %v5073
    %5334 = vmatprep.subr.bf16.mxu0 %v5079
    %5335 = vmatpush1.bf16.msra.mxu0 %v5078
    %5336 = vmatprep.subr.bf16.mxu0 %v5083
    %5337 = vmatpush1.bf16.msra.mxu0 %v5082
    %5338 = vmatprep.subr.bf16.mxu0 %v5087
    %5339 = vmatpush1.bf16.msra.mxu0 %v5086
    %5340 = vmatprep.subr.bf16.mxu0 %v5091
    %5341 = vmatpush1.bf16.msra.mxu0 %v5090
    %5342 = vmatprep.subr.bf16.mxu0 %v5095
    %5343 = vmatpush1.bf16.msra.mxu0 %v5094
    %5344 = vmatprep.subr.bf16.mxu0 %v5099
    %5345 = vmatpush1.bf16.msra.mxu0 %v5098
    %5346 = vmatprep.subr.bf16.mxu0 %v5103
    %5347 = vmatpush1.bf16.msra.mxu0 %v5102
    %5348 = vmatprep.subr.bf16.mxu0 %v5107
    %5349 = vmatpush1.bf16.msra.mxu0 %v5106
    %5350 = vmatprep.subr.bf16.mxu0 %v5111
    %5351 = vmatpush1.bf16.msra.mxu0 %v5110
    %5352 = vmatprep.subr.bf16.mxu0 %v5115
    %5353 = vmatpush1.bf16.msra.mxu0 %v5114
    %5354 = vmatprep.subr.bf16.mxu0 %v5119
    %5355 = vmatpush1.bf16.msra.mxu0 %v5118
    %5356 = vmatprep.subr.bf16.mxu0 %v5123
    %5357 = vmatpush1.bf16.msra.mxu0 %v5122
    %5358 = vmatprep.subr.bf16.mxu0 %v5127
    %5359 = vmatpush1.bf16.msra.mxu0 %v5126
    %5360 = vmatprep.subr.bf16.mxu0 %v5131
    %5361 = vmatpush1.bf16.msra.mxu0 %v5130
    %5362 = vmatprep.subr.bf16.mxu0 %v5135
    %5363 = vmatpush1.bf16.msra.mxu0 %v5134
    %5364 = vmatprep.subr.bf16.mxu0 %v5139
    %5365 = vmatpush1.bf16.msra.mxu0 %v5138
    %5366 = vmatprep.mubr.bf16.mxu0 %v4668
    %5367 = vmatmul.mubr.bf16.gmra.mrb[0].mxu0 %v4667
    %v5368 = vpop.f32.mrb[0].mxu0
    %v5369 = vadd.f32 %v4677, %v5368
    %v5370 = vpop.f32.mrb[0].mxu0
    %v5371 = vadd.f32 %v4681, %v5370
    %v5372 = vpop.f32.mrb[0].mxu0
    %v5373 = vpop.f32.mrb[0].mxu0
    %5374 = vdwg.mxu0
    %5375 = vmatprep.subr.bf16.mxu0 %v5143
    %5376 = vmatpush1.bf16.msra.mxu0 %v5142
    %5377 = vmatprep.subr.bf16.mxu0 %v5147
    %5378 = vmatpush1.bf16.msra.mxu0 %v5146
    %5379 = vmatprep.subr.bf16.mxu0 %v5151
    %5380 = vmatpush1.bf16.msra.mxu0 %v5150
    %5381 = vmatprep.subr.bf16.mxu0 %v5155
    %5382 = vmatpush1.bf16.msra.mxu0 %v5154
    %5383 = vmatprep.subr.bf16.mxu0 %v5159
    %5384 = vmatpush1.bf16.msra.mxu0 %v5158
    %5385 = vmatprep.subr.bf16.mxu0 %v5163
    %5386 = vmatpush1.bf16.msra.mxu0 %v5162
    %5387 = vmatprep.subr.bf16.mxu0 %v5167
    %5388 = vmatpush1.bf16.msra.mxu0 %v5166
    %5389 = vmatprep.subr.bf16.mxu0 %v5171
    %5390 = vmatpush1.bf16.msra.mxu0 %v5170
    %5391 = vmatprep.subr.bf16.mxu0 %v5175
    %5392 = vmatpush1.bf16.msra.mxu0 %v5174
    %5393 = vmatprep.subr.bf16.mxu0 %v5179
    %5394 = vmatpush1.bf16.msra.mxu0 %v5178
    %5395 = vmatprep.subr.bf16.mxu0 %v5183
    %5396 = vmatpush1.bf16.msra.mxu0 %v5182
    %5397 = vmatprep.subr.bf16.mxu0 %v5187
    %5398 = vmatpush1.bf16.msra.mxu0 %v5186
    %5399 = vmatprep.subr.bf16.mxu0 %v5191
    %5400 = vmatpush1.bf16.msra.mxu0 %v5190
    %5401 = vmatprep.subr.bf16.mxu0 %v5195
    %5402 = vmatpush1.bf16.msra.mxu0 %v5194
    %5403 = vmatprep.subr.bf16.mxu0 %v5199
    %5404 = vmatpush1.bf16.msra.mxu0 %v5198
    %5405 = vmatprep.subr.bf16.mxu0 %v5203
    %5406 = vmatpush1.bf16.msra.mxu0 %v5202
    %5407 = vmatprep.mubr.bf16.mxu0 %v4670
    %5408 = vmatmul.mubr.bf16.gmra.mrb[0].mxu0 %v4669
    %v5409 = vpop.f32.mrb[0].mxu0
    %v5410 = vadd.f32 %v5369, %v5409
    %v5411 = vpop.f32.mrb[0].mxu0
    %v5412 = vadd.f32 %v5371, %v5411
    %v5413 = vpop.f32.mrb[0].mxu0
    %v5414 = vpop.f32.mrb[0].mxu0
    %5415 = vdwg.mxu0
    %5416 = vmatprep.subr.bf16.mxu0 %v5081
    %5417 = vmatpush1.bf16.msra.mxu0 %v5080
    %5418 = vmatprep.subr.bf16.mxu0 %v5085
    %5419 = vmatpush1.bf16.msra.mxu0 %v5084
    %5420 = vmatprep.subr.bf16.mxu0 %v5089
    %5421 = vmatpush1.bf16.msra.mxu0 %v5088
    %5422 = vmatprep.subr.bf16.mxu0 %v5093
    %5423 = vmatpush1.bf16.msra.mxu0 %v5092
    %5424 = vmatprep.subr.bf16.mxu0 %v5097
    %5425 = vmatpush1.bf16.msra.mxu0 %v5096
    %5426 = vmatprep.subr.bf16.mxu0 %v5101
    %5427 = vmatpush1.bf16.msra.mxu0 %v5100
    %5428 = vmatprep.subr.bf16.mxu0 %v5105
    %5429 = vmatpush1.bf16.msra.mxu0 %v5104
    %5430 = vmatprep.subr.bf16.mxu0 %v5109
    %5431 = vmatpush1.bf16.msra.mxu0 %v5108
    %5432 = vmatprep.subr.bf16.mxu0 %v5113
    %5433 = vmatpush1.bf16.msra.mxu0 %v5112
    %5434 = vmatprep.subr.bf16.mxu0 %v5117
    %5435 = vmatpush1.bf16.msra.mxu0 %v5116
    %5436 = vmatprep.subr.bf16.mxu0 %v5121
    %5437 = vmatpush1.bf16.msra.mxu0 %v5120
    %5438 = vmatprep.subr.bf16.mxu0 %v5125
    %5439 = vmatpush1.bf16.msra.mxu0 %v5124
    %5440 = vmatprep.subr.bf16.mxu0 %v5129
    %5441 = vmatpush1.bf16.msra.mxu0 %v5128
    %5442 = vmatprep.subr.bf16.mxu0 %v5133
    %5443 = vmatpush1.bf16.msra.mxu0 %v5132
    %5444 = vmatprep.subr.bf16.mxu0 %v5137
    %5445 = vmatpush1.bf16.msra.mxu0 %v5136
    %5446 = vmatprep.subr.bf16.mxu0 %v5141
    %5447 = vmatpush1.bf16.msra.mxu0 %v5140
    %5448 = vmatprep.mubr.bf16.mxu0 %v4668
    %5449 = vmatmul.mubr.bf16.gmra.mrb[0].mxu0 %v4667
    %v5450 = vpop.f32.mrb[0].mxu0
    %v5451 = vadd.f32 %v4685, %v5450
    %v5452 = vpop.f32.mrb[0].mxu0
    %v5453 = vadd.f32 %v4689, %v5452
    %v5454 = vpop.f32.mrb[0].mxu0
    %v5455 = vpop.f32.mrb[0].mxu0
    %5456 = vdwg.mxu0
    %5457 = vmatprep.subr.bf16.mxu0 %v5145
    %5458 = vmatpush1.bf16.msra.mxu0 %v5144
    %5459 = vmatprep.subr.bf16.mxu0 %v5149
    %5460 = vmatpush1.bf16.msra.mxu0 %v5148
    %5461 = vmatprep.subr.bf16.mxu0 %v5153
    %5462 = vmatpush1.bf16.msra.mxu0 %v5152
    %5463 = vmatprep.subr.bf16.mxu0 %v5157
    %5464 = vmatpush1.bf16.msra.mxu0 %v5156
    %5465 = vmatprep.subr.bf16.mxu0 %v5161
    %5466 = vmatpush1.bf16.msra.mxu0 %v5160
    %5467 = vmatprep.subr.bf16.mxu0 %v5165
    %5468 = vmatpush1.bf16.msra.mxu0 %v5164
    %5469 = vmatprep.subr.bf16.mxu0 %v5169
    %5470 = vmatpush1.bf16.msra.mxu0 %v5168
    %5471 = vmatprep.subr.bf16.mxu0 %v5173
    %5472 = vmatpush1.bf16.msra.mxu0 %v5172
    %5473 = vmatprep.subr.bf16.mxu0 %v5177
    %5474 = vmatpush1.bf16.msra.mxu0 %v5176
    %5475 = vmatprep.subr.bf16.mxu0 %v5181
    %5476 = vmatpush1.bf16.msra.mxu0 %v5180
    %5477 = vmatprep.subr.bf16.mxu0 %v5185
    %5478 = vmatpush1.bf16.msra.mxu0 %v5184
    %5479 = vmatprep.subr.bf16.mxu0 %v5189
    %5480 = vmatpush1.bf16.msra.mxu0 %v5188
    %5481 = vmatprep.subr.bf16.mxu0 %v5193
    %5482 = vmatpush1.bf16.msra.mxu0 %v5192
    %5483 = vmatprep.subr.bf16.mxu0 %v5197
    %5484 = vmatpush1.bf16.msra.mxu0 %v5196
    %5485 = vmatprep.subr.bf16.mxu0 %v5201
    %5486 = vmatpush1.bf16.msra.mxu0 %v5200
    %5487 = vmatprep.subr.bf16.mxu0 %v5205
    %5488 = vmatpush1.bf16.msra.mxu0 %v5204
    %5489 = vmatprep.mubr.bf16.mxu0 %v4670
    %5490 = vmatmul.mubr.bf16.gmra.mrb[0].mxu0 %v4669
    %v5491 = vpop.f32.mrb[0].mxu0
    %v5492 = vadd.f32 %v5451, %v5491
    %v5493 = vpop.f32.mrb[0].mxu0
    %v5494 = vadd.f32 %v5453, %v5493
    %v5495 = vpop.f32.mrb[0].mxu0
    %v5496 = vpop.f32.mrb[0].mxu0
    %5497 = vdwg.mxu0
    %v5498 = vmax.f32 %v5410, 0.0
    %v5499 = vmax.f32 %v5412, 0.0
    %v5500 = vmax.f32 %v5492, 0.0
    %v5501 = vmax.f32 %v5494, 0.0
    %v5502 = vadd.f32 %v5498, %v3572
    %v5503 = vadd.f32 %v5499, %v3573
    %v5504 = vadd.f32 %v5500, %v3574
    %v5505 = vadd.f32 %v5501, %v3575
    %v5506 = vmax.f32 %v5502, 0.0
    %v5507 = vmax.f32 %v5503, 0.0
    %v5508 = vmax.f32 %v5504, 0.0
    %v5509 = vmax.f32 %v5505, 0.0
    %v5510 = vpack.c.bf16 %v5506, %v5506
    %v5511 = vpack.c.bf16 %v5507, %v5507
    %v5512 = vpack.c.bf16 %v5508, %v5508
    %v5513 = vpack.c.bf16 %v5509, %v5509
    %v5514 = vld [vmem:[%s3] sm:$0xf]
    %v5515 = vld [vmem:[%s3 + $0x4] sm:$0xf]
    %v5516 = vld [vmem:[%s3 + $0x8] sm:$0xf]
    %v5517 = vld [vmem:[%s3 + $0xc] sm:$0xf]
    %v5518 = vld [vmem:[%s3 + $0x10] sm:$0xf]
    %v5519 = vld [vmem:[%s3 + $0x14] sm:$0xf]
    %v5520 = vld [vmem:[%s3 + $0x18] sm:$0xf]
    %v5521 = vld [vmem:[%s3 + $0x1c] sm:$0xf]
    %v5522 = vld [vmem:[%s3 + $0x20] sm:$0xf]
    %v5523 = vld [vmem:[%s3 + $0x24] sm:$0xf]
    %v5524 = vld [vmem:[%s3 + $0x28] sm:$0xf]
    %v5525 = vld [vmem:[%s3 + $0x2c] sm:$0xf]
    %v5526 = vld [vmem:[%s3 + $0x30] sm:$0xf]
    %v5527 = vld [vmem:[%s3 + $0x34] sm:$0xf]
    %v5528 = vld [vmem:[%s3 + $0x38] sm:$0xf]
    %v5529 = vld [vmem:[%s3 + $0x3c] sm:$0xf]
    %v5530 = vld [vmem:[%s3 + $0x40] sm:$0xf]
    %v5531 = vld [vmem:[%s3 + $0x44] sm:$0xf]
    %v5532 = vld [vmem:[%s3 + $0x48] sm:$0xf]
    %v5533 = vld [vmem:[%s3 + $0x4c] sm:$0xf]
    %v5534 = vld [vmem:[%s3 + $0x50] sm:$0xf]
    %v5535 = vld [vmem:[%s3 + $0x54] sm:$0xf]
    %v5536 = vld [vmem:[%s3 + $0x58] sm:$0xf]
    %v5537 = vld [vmem:[%s3 + $0x5c] sm:$0xf]
    %v5538 = vld [vmem:[%s3 + $0x60] sm:$0xf]
    %v5539 = vld [vmem:[%s3 + $0x64] sm:$0xf]
    %v5540 = vld [vmem:[%s3 + $0x68] sm:$0xf]
    %v5541 = vld [vmem:[%s3 + $0x6c] sm:$0xf]
    %v5542 = vld [vmem:[%s3 + $0x70] sm:$0xf]
    %v5543 = vld [vmem:[%s3 + $0x74] sm:$0xf]
    %v5544 = vld [vmem:[%s3 + $0x78] sm:$0xf]
    %v5545 = vld [vmem:[%s3 + $0x7c] sm:$0xf]
    %v5546 = vld [vmem:[%s3 + $0x80] sm:$0xf]
    %v5547 = vld [vmem:[%s3 + $0x84] sm:$0xf]
    %v5548 = vld [vmem:[%s3 + $0x88] sm:$0xf]
    %v5549 = vld [vmem:[%s3 + $0x8c] sm:$0xf]
    %v5550 = vld [vmem:[%s3 + $0x90] sm:$0xf]
    %v5551 = vld [vmem:[%s3 + $0x94] sm:$0xf]
    %v5552 = vld [vmem:[%s3 + $0x98] sm:$0xf]
    %v5553 = vld [vmem:[%s3 + $0x9c] sm:$0xf]
    %v5554 = vld [vmem:[%s3 + $0xa0] sm:$0xf]
    %v5555 = vld [vmem:[%s3 + $0xa4] sm:$0xf]
    %v5556 = vld [vmem:[%s3 + $0xa8] sm:$0xf]
    %v5557 = vld [vmem:[%s3 + $0xac] sm:$0xf]
    %v5558 = vld [vmem:[%s3 + $0xb0] sm:$0xf]
    %v5559 = vld [vmem:[%s3 + $0xb4] sm:$0xf]
    %v5560 = vld [vmem:[%s3 + $0xb8] sm:$0xf]
    %v5561 = vld [vmem:[%s3 + $0xbc] sm:$0xf]
    %v5562 = vld [vmem:[%s3 + $0xc0] sm:$0xf]
    %v5563 = vld [vmem:[%s3 + $0xc4] sm:$0xf]
    %v5564 = vld [vmem:[%s3 + $0xc8] sm:$0xf]
    %v5565 = vld [vmem:[%s3 + $0xcc] sm:$0xf]
    %v5566 = vld [vmem:[%s3 + $0xd0] sm:$0xf]
    %v5567 = vld [vmem:[%s3 + $0xd4] sm:$0xf]
    %v5568 = vld [vmem:[%s3 + $0xd8] sm:$0xf]
    %v5569 = vld [vmem:[%s3 + $0xdc] sm:$0xf]
    %v5570 = vld [vmem:[%s3 + $0xe0] sm:$0xf]
    %v5571 = vld [vmem:[%s3 + $0xe4] sm:$0xf]
    %v5572 = vld [vmem:[%s3 + $0xe8] sm:$0xf]
    %v5573 = vld [vmem:[%s3 + $0xec] sm:$0xf]
    %v5574 = vld [vmem:[%s3 + $0xf0] sm:$0xf]
    %v5575 = vld [vmem:[%s3 + $0xf4] sm:$0xf]
    %v5576 = vld [vmem:[%s3 + $0xf8] sm:$0xf]
    %v5577 = vld [vmem:[%s3 + $0xfc] sm:$0xf]
    %v5578 = vld [vmem:[#allocation8 + $0x6] ss:$0 sm:$0xff]
    %v5643 = vunpack.c.l.b16 %v5514
    %v5644 = vunpack.c.l.b16 %v5515
    %v5645 = vunpack.c.l.b16 %v5516
    %v5646 = vunpack.c.l.b16 %v5517
    %v5647 = vunpack.c.l.b16 %v5518
    %v5648 = vunpack.c.l.b16 %v5519
    %v5649 = vunpack.c.l.b16 %v5520
    %v5650 = vunpack.c.l.b16 %v5521
    %v5651 = vunpack.c.l.b16 %v5522
    %v5652 = vunpack.c.l.b16 %v5523
    %v5653 = vunpack.c.l.b16 %v5524
    %v5654 = vunpack.c.l.b16 %v5525
    %v5655 = vunpack.c.l.b16 %v5526
    %v5656 = vunpack.c.l.b16 %v5527
    %v5657 = vunpack.c.l.b16 %v5528
    %v5658 = vunpack.c.l.b16 %v5529
    %v5659 = vunpack.c.l.b16 %v5530
    %v5660 = vunpack.c.l.b16 %v5531
    %v5661 = vunpack.c.l.b16 %v5532
    %v5662 = vunpack.c.l.b16 %v5533
    %v5663 = vunpack.c.l.b16 %v5534
    %v5664 = vunpack.c.l.b16 %v5535
    %v5665 = vunpack.c.l.b16 %v5536
    %v5666 = vunpack.c.l.b16 %v5537
    %v5667 = vunpack.c.l.b16 %v5538
    %v5668 = vunpack.c.l.b16 %v5539
    %v5669 = vunpack.c.l.b16 %v5540
    %v5670 = vunpack.c.l.b16 %v5541
    %v5671 = vunpack.c.l.b16 %v5542
    %v5672 = vunpack.c.l.b16 %v5543
    %v5673 = vunpack.c.l.b16 %v5544
    %v5674 = vunpack.c.l.b16 %v5545
    %v5675 = vunpack.c.l.b16 %v5546
    %v5676 = vunpack.c.l.b16 %v5547
    %v5677 = vunpack.c.l.b16 %v5548
    %v5678 = vunpack.c.l.b16 %v5549
    %v5679 = vunpack.c.l.b16 %v5550
    %v5680 = vunpack.c.l.b16 %v5551
    %v5681 = vunpack.c.l.b16 %v5552
    %v5682 = vunpack.c.l.b16 %v5553
    %v5683 = vunpack.c.l.b16 %v5554
    %v5684 = vunpack.c.l.b16 %v5555
    %v5685 = vunpack.c.l.b16 %v5556
    %v5686 = vunpack.c.l.b16 %v5557
    %v5687 = vunpack.c.l.b16 %v5558
    %v5688 = vunpack.c.l.b16 %v5559
    %v5689 = vunpack.c.l.b16 %v5560
    %v5690 = vunpack.c.l.b16 %v5561
    %v5691 = vunpack.c.l.b16 %v5562
    %v5692 = vunpack.c.l.b16 %v5563
    %v5693 = vunpack.c.l.b16 %v5564
    %v5694 = vunpack.c.l.b16 %v5565
    %v5695 = vunpack.c.l.b16 %v5566
    %v5696 = vunpack.c.l.b16 %v5567
    %v5697 = vunpack.c.l.b16 %v5568
    %v5698 = vunpack.c.l.b16 %v5569
    %v5699 = vunpack.c.l.b16 %v5570
    %v5700 = vunpack.c.l.b16 %v5571
    %v5701 = vunpack.c.l.b16 %v5572
    %v5702 = vunpack.c.l.b16 %v5573
    %v5703 = vunpack.c.l.b16 %v5574
    %v5704 = vunpack.c.l.b16 %v5575
    %v5705 = vunpack.c.l.b16 %v5576
    %v5706 = vunpack.c.l.b16 %v5577
    %v5707 = vpack.c.b16 %v5644, %v5643
    %v5708 = vpack.c.b16 %v5646, %v5645
    %v5709 = vpack.c.b16 %v5648, %v5647
    %v5710 = vpack.c.b16 %v5650, %v5649
    %v5711 = vpack.c.b16 %v5652, %v5651
    %v5712 = vpack.c.b16 %v5654, %v5653
    %v5713 = vpack.c.b16 %v5656, %v5655
    %v5714 = vpack.c.b16 %v5658, %v5657
    %v5715 = vpack.c.b16 %v5660, %v5659
    %v5716 = vpack.c.b16 %v5662, %v5661
    %v5717 = vpack.c.b16 %v5664, %v5663
    %v5718 = vpack.c.b16 %v5666, %v5665
    %v5719 = vpack.c.b16 %v5668, %v5667
    %v5720 = vpack.c.b16 %v5670, %v5669
    %v5721 = vpack.c.b16 %v5672, %v5671
    %v5722 = vpack.c.b16 %v5674, %v5673
    %v5723 = vpack.c.b16 %v5676, %v5675
    %v5724 = vpack.c.b16 %v5678, %v5677
    %v5725 = vpack.c.b16 %v5680, %v5679
    %v5726 = vpack.c.b16 %v5682, %v5681
    %v5727 = vpack.c.b16 %v5684, %v5683
    %v5728 = vpack.c.b16 %v5686, %v5685
    %v5729 = vpack.c.b16 %v5688, %v5687
    %v5730 = vpack.c.b16 %v5690, %v5689
    %v5731 = vpack.c.b16 %v5692, %v5691
    %v5732 = vpack.c.b16 %v5694, %v5693
    %v5733 = vpack.c.b16 %v5696, %v5695
    %v5734 = vpack.c.b16 %v5698, %v5697
    %v5735 = vpack.c.b16 %v5700, %v5699
    %v5736 = vpack.c.b16 %v5702, %v5701
    %v5737 = vpack.c.b16 %v5704, %v5703
    %v5738 = vpack.c.b16 %v5706, %v5705
    %5771 = vmatprep.subr.bf16.mxu0 0
    %5772 = vmatpush1.bf16.msra.mxu0 %v5707
    %5773 = vmatprep.subr.bf16.mxu0 0
    %5774 = vmatpush1.bf16.msra.mxu0 %v5708
    %5775 = vmatprep.subr.bf16.mxu0 0
    %5776 = vmatpush1.bf16.msra.mxu0 %v5709
    %5777 = vmatprep.subr.bf16.mxu0 0
    %5778 = vmatpush1.bf16.msra.mxu0 %v5710
    %5779 = vmatprep.subr.bf16.mxu0 0
    %5780 = vmatpush1.bf16.msra.mxu0 %v5711
    %5781 = vmatprep.subr.bf16.mxu0 0
    %5782 = vmatpush1.bf16.msra.mxu0 %v5712
    %5783 = vmatprep.subr.bf16.mxu0 0
    %5784 = vmatpush1.bf16.msra.mxu0 %v5713
    %5785 = vmatprep.subr.bf16.mxu0 0
    %5786 = vmatpush1.bf16.msra.mxu0 %v5714
    %5787 = vmatprep.subr.bf16.mxu0 0
    %5788 = vmatpush1.bf16.msra.mxu0 %v5715
    %5789 = vmatprep.subr.bf16.mxu0 0
    %5790 = vmatpush1.bf16.msra.mxu0 %v5716
    %5791 = vmatprep.subr.bf16.mxu0 0
    %5792 = vmatpush1.bf16.msra.mxu0 %v5717
    %5793 = vmatprep.subr.bf16.mxu0 0
    %5794 = vmatpush1.bf16.msra.mxu0 %v5718
    %5795 = vmatprep.subr.bf16.mxu0 0
    %5796 = vmatpush1.bf16.msra.mxu0 %v5719
    %5797 = vmatprep.subr.bf16.mxu0 0
    %5798 = vmatpush1.bf16.msra.mxu0 %v5720
    %5799 = vmatprep.subr.bf16.mxu0 0
    %5800 = vmatpush1.bf16.msra.mxu0 %v5721
    %5801 = vmatprep.subr.bf16.mxu0 0
    %5802 = vmatpush1.bf16.msra.mxu0 %v5722
    %5803 = vmatprep.mubr.bf16.mxu0 %v5511
    %5804 = vmatmul.mubr.bf16.gmra.mrb[0].mxu0 %v5510
    %v5805 = vpop.f32.mrb[0].mxu0
    %v5806 = vadd.f32 %v5578, %v5805
    %v5807 = vpop.f32.mrb[0].mxu0
    %v5808 = vpop.f32.mrb[0].mxu0
    %v5809 = vpop.f32.mrb[0].mxu0
    %5810 = vdwg.mxu0
    %5811 = vmatprep.subr.bf16.mxu0 0
    %5812 = vmatpush1.bf16.msra.mxu0 %v5723
    %5813 = vmatprep.subr.bf16.mxu0 0
    %5814 = vmatpush1.bf16.msra.mxu0 %v5724
    %5815 = vmatprep.subr.bf16.mxu0 0
    %5816 = vmatpush1.bf16.msra.mxu0 %v5725
    %5817 = vmatprep.subr.bf16.mxu0 0
    %5818 = vmatpush1.bf16.msra.mxu0 %v5726
    %5819 = vmatprep.subr.bf16.mxu0 0
    %5820 = vmatpush1.bf16.msra.mxu0 %v5727
    %5821 = vmatprep.subr.bf16.mxu0 0
    %5822 = vmatpush1.bf16.msra.mxu0 %v5728
    %5823 = vmatprep.subr.bf16.mxu0 0
    %5824 = vmatpush1.bf16.msra.mxu0 %v5729
    %5825 = vmatprep.subr.bf16.mxu0 0
    %5826 = vmatpush1.bf16.msra.mxu0 %v5730
    %5827 = vmatprep.subr.bf16.mxu0 0
    %5828 = vmatpush1.bf16.msra.mxu0 %v5731
    %5829 = vmatprep.subr.bf16.mxu0 0
    %5830 = vmatpush1.bf16.msra.mxu0 %v5732
    %5831 = vmatprep.subr.bf16.mxu0 0
    %5832 = vmatpush1.bf16.msra.mxu0 %v5733
    %5833 = vmatprep.subr.bf16.mxu0 0
    %5834 = vmatpush1.bf16.msra.mxu0 %v5734
    %5835 = vmatprep.subr.bf16.mxu0 0
    %5836 = vmatpush1.bf16.msra.mxu0 %v5735
    %5837 = vmatprep.subr.bf16.mxu0 0
    %5838 = vmatpush1.bf16.msra.mxu0 %v5736
    %5839 = vmatprep.subr.bf16.mxu0 0
    %5840 = vmatpush1.bf16.msra.mxu0 %v5737
    %5841 = vmatprep.subr.bf16.mxu0 0
    %5842 = vmatpush1.bf16.msra.mxu0 %v5738
    %5843 = vmatprep.mubr.bf16.mxu0 %v5513
    %5844 = vmatmul.mubr.bf16.gmra.mrb[0].mxu0 %v5512
    %v5845 = vpop.f32.mrb[0].mxu0
    %v5846 = vadd.f32 %v5806, %v5845
    %v5847 = vpop.f32.mrb[0].mxu0
    %v5848 = vpop.f32.mrb[0].mxu0
    %v5849 = vpop.f32.mrb[0].mxu0
    %5850 = vdwg.mxu0
    %vm5851 = vcmask 64512
    %5852 = vst.msk [vmem:[#allocation10] sm:$0xff] %vm5851, %v5846
    // Predicated region
    $region38: #{tpu_custom_call.1} parent=1 // pred_check
      _
    $region39: #{tpu_custom_call.1} parent=1 // pred_check_branch
      %5854 = sbr.rel (0) target = $region41
    $region40: #{tpu_custom_call.1} parent=1 // pred_region
      %s5856 = ssub.s32 128, 128
      %5857 = vsyncadd [#allocation4], %s5856
      %s5859 = sshll.u32 [#allocation10], 4
      %s5860 = int_to_ptr.vmem [resolvable:$true] %s5859
      %5862 = dma.vmem_to_hbm [thread:$0]  %s5860, 128, %s5, [#allocation4]
    $region41: #{tpu_custom_call.1} parent=1 // pred_fallthru
      _
    // Predicated region
    $region42: #{tpu_custom_call.1} parent=1 // pred_check
      _
    $region43: #{tpu_custom_call.1} parent=1 // pred_check_branch
      %5864 = sbr.rel (0) target = $region45
    $region44: #{tpu_custom_call.1} parent=1 // pred_region
      %5865 = dma.done [#allocation4], 128
    $region45: #{tpu_custom_call.1} parent=1 // pred_fallthru
      _
    %5866 = vsyncpa [#allocation3], 1
    %5867 = vsyncpa [#allocation6], 1
    %5868 = vsyncpa [#allocation9], 1
    %5869 = vsyncpa [#allocation4], 1

</llo_original>
